<compile_context>
chip_gen: v6e
topology: v6e:2x2x1
jax: 0.10.0
libtpu: 0.0.40
codegen_flags: <defaults>
</compile_context>

<pallas_src>
import functools
import math

import jax
import jax.numpy as jnp
from jax.experimental import pallas as pl
from jax.experimental.pallas import tpu as pltpu


# ----------------------------- Pallas kernel --------------------------------

def _block_kernel(
    x_ref,                                   # (1, T, C)  full sequence for b
    ln1g_ref, ln1b_ref,                      # (1, C) each
    wq_ref,                                  # (C, C)   bf16
    wkv_ref,                                 # (C, 2C)  bf16 (K, V fused)
    wo_ref, bo_ref,                          # (C, C) bf16, (1, C) f32
    ln2g_ref, ln2b_ref,                      # (1, C) each
    w1_ref, b1_ref,                          # (C, 4C) bf16, (1, 4C) f32
    w2_ref, b2_ref,                          # (4C, C) bf16, (1, C) f32
    o_ref,                                   # (1, tq, C)
    k_scr, v_scr,                            # (n_head, T, hs) bf16 scratch
    m_scr, l_scr, acc_scr,                   # online-softmax state (f32)
    *, n_head: int, head_size: int, tq: int, tk: int, seq_len: int,
):
    f32 = jnp.float32
    bf16 = jnp.bfloat16
    C = n_head * head_size
    T = seq_len
    n_kv = T // tk
    NEG = -1e30   # finite "masked" value (avoids NaN for fully-masked rows)

    def layernorm(y, g, b, eps=1e-5):
        mu = jnp.mean(y, axis=-1, keepdims=True)
        var = jnp.mean((y - mu) ** 2, axis=-1, keepdims=True)
        return (y - mu) * jax.lax.rsqrt(var + eps) * g + b

    ln1g = ln1g_ref[...].astype(f32)
    ln1b = ln1b_ref[...].astype(f32)

    qi = pl.program_id(1)
    q_start = pl.multiple_of(qi * tq, tq)

    # ---- K / V: computed once per batch element, cached in VMEM scratch ----
    @pl.when(qi == 0)
    def _():
        xf = x_ref[0].astype(f32)                                     # (T, C)
        h1f = layernorm(xf, ln1g, ln1b)
        kv = jnp.dot(h1f.astype(bf16), wkv_ref[...],
                     preferred_element_type=f32)                      # (T, 2C)
        k = kv[:, 0:C].reshape(T, n_head, head_size).transpose(1, 0, 2)
        v = kv[:, C:2 * C].reshape(T, n_head, head_size).transpose(1, 0, 2)
        k_scr[...] = k.astype(bf16)
        v_scr[...] = v.astype(bf16)

    # ---- Q projection for this query tile ----------------------------------
    x_tile = x_ref[0, pl.ds(q_start, tq), :].astype(f32)              # (tq, C)
    h1t = layernorm(x_tile, ln1g, ln1b)
    q_lin = jnp.dot(h1t.astype(bf16), wq_ref[...],
                    preferred_element_type=f32)                       # (tq, C)
    scale = 1.0 / math.sqrt(head_size)
    q = (q_lin * scale).reshape(tq, n_head, head_size).transpose(1, 0, 2)
    q = q.astype(bf16)                                                # (h,tq,hs)

    # ---- flash-style online softmax over KV tiles ---------------------------
    m_scr[...] = jnp.full_like(m_scr, NEG)
    l_scr[...] = jnp.zeros_like(l_scr)
    acc_scr[...] = jnp.zeros_like(acc_scr)

    rows = q_start + jax.lax.broadcasted_iota(jnp.int32, (tq, tk), 0)
    cols = jax.lax.broadcasted_iota(jnp.int32, (tq, tk), 1)

    if tq == T:
        n_kv_needed = n_kv                       # static trip count
    else:
        # Causal: KV tiles entirely above the last query row contribute nothing.
        n_kv_needed = jnp.minimum(pl.cdiv(q_start + tq, tk), n_kv)

    @pl.loop(0, n_kv_needed)
    def _(ki):
        k_start = pl.multiple_of(ki * tk, tk)
        kb = k_scr[:, pl.ds(k_start, tk), :]                          # (h,tk,hs)
        vb = v_scr[:, pl.ds(k_start, tk), :]
        s = jnp.einsum("hqd,hkd->hqk", q, kb,
                       preferred_element_type=f32)                    # (h,tq,tk)
        causal = ((k_start + cols) <= rows)[None, :, :]
        s = jnp.where(causal, s, NEG)
        m_prev = m_scr[...]
        m_new = jnp.maximum(m_prev, jnp.max(s, axis=-1, keepdims=True))
        alpha = jnp.exp(m_prev - m_new)
        p = jnp.exp(s - m_new)
        l_scr[...] = alpha * l_scr[...] + jnp.sum(p, axis=-1, keepdims=True)
        acc_scr[...] = alpha * acc_scr[...] + jnp.einsum(
            "hqk,hkd->hqd", p.astype(bf16), vb, preferred_element_type=f32)
        m_scr[...] = m_new

    ctx = acc_scr[...] * pl.reciprocal(l_scr[...], approx=True)       # (h,tq,hs)
    att = ctx.transpose(1, 0, 2).reshape(tq, C)                       # (tq, C)
    # TODO(synk): attention / residual / MLP dropout omitted (eval-mode identity).

    att = jnp.dot(att.astype(bf16), wo_ref[...],
                  preferred_element_type=f32) + bo_ref[...].astype(f32)
    x1 = x_tile + att                                                 # residual 1

    h2 = layernorm(x1, ln2g_ref[...].astype(f32), ln2b_ref[...].astype(f32))
    ff = jnp.dot(h2.astype(bf16), w1_ref[...],
                 preferred_element_type=f32) + b1_ref[...].astype(f32)
    ff = jnp.maximum(ff, 0.0)                                         # ReLU
    ff = jnp.dot(ff.astype(bf16), w2_ref[...],
                 preferred_element_type=f32) + b2_ref[...].astype(f32)
    out = x1 + ff                                                     # residual 2

    o_ref[0] = out.astype(o_ref.dtype)


# ------------------------------ host wrapper ---------------------------------

def _vmem_capacity_bytes():
    try:
        return int(pltpu.get_tpu_info().vmem_capacity_bytes)
    except Exception:
        return 64 * 1024 * 1024      # conservative (v7x per-core) fallback


def _pick_tile(total, target):
    """Largest multiple of 8 dividing `total` that is <= target, else total."""
    if total <= target or total % 8 != 0:
        return total
    cand = (min(target, total) // 8) * 8
    while cand >= 8:
        if total % cand == 0:
            return cand
        cand -= 8
    return total


def block_forward(x, params, *, n_head, q_tile=None, k_tile=512):
    B, T, C = x.shape
    head_size = C // n_head
    H = 4 * C

    vmem_cap = _vmem_capacity_bytes()
    # ~82% of per-core VMEM: ~52 MiB on v7x (64 MiB), ~105 MiB on v5e/v6e (128 MiB).
    vmem_limit = max(32 * 1024 * 1024, int(vmem_cap * 0.82))
    if q_tile is None:
        # Bigger query tiles on the 128 MiB generations, smaller on v7x.
        q_tile = 512 if vmem_cap >= 100 * 1024 * 1024 else 256

    tq = _pick_tile(T, q_tile)
    tk = _pick_tile(T, k_tile)
    nq = T // tq

    (ln1g, ln1b, wqkv, wo, bo, ln2g, ln2b, w1, b1, w2, b2) = params
    # bf16 MXU operands; accumulation stays f32 inside the kernel.
    # TODO(synk): optional fp8 (v7x) / int8 (v6e) weight-only quantization of
    # the MLP / QKV weights (not drop-in; needs per-channel scales).
    wq = wqkv[:, :C].astype(jnp.bfloat16)
    wkv = wqkv[:, C:].astype(jnp.bfloat16)
    wo = wo.astype(jnp.bfloat16)
    w1 = w1.astype(jnp.bfloat16)
    w2 = w2.astype(jnp.bfloat16)

    kernel = functools.partial(
        _block_kernel, n_head=n_head, head_size=head_size,
        tq=tq, tk=tk, seq_len=T)

    args = (x, ln1g, ln1b, wq, wkv, wo, bo, ln2g, ln2b, w1, b1, w2, b2)

    def build(single_buffer):
        pm = {"pipeline_mode": pl.Buffered(1)} if single_buffer else {}

        def const(shape):
            return pl.BlockSpec(shape, lambda b, qi: (0,) * len(shape), **pm)

        return pl.pallas_call(
            kernel,
            out_shape=jax.ShapeDtypeStruct((B, T, C), x.dtype),
            grid_spec=pltpu.PrefetchScalarGridSpec(
                num_scalar_prefetch=0,
                grid=(B, nq),
                in_specs=[
                    # Full-sequence x: block index constant along qi -> fetched
                    # once per batch element; query tile is sliced in VMEM.
                    pl.BlockSpec((1, T, C), lambda b, qi: (b, 0, 0), **pm),
                    const((1, C)), const((1, C)),           # ln1 g, b
                    const((C, C)),                          # Wq
                    const((C, 2 * C)),                      # Wkv (fused)
                    const((C, C)), const((1, C)),           # Wo, bo
                    const((1, C)), const((1, C)),           # ln2 g, b
                    const((C, H)), const((1, H)),           # W1, b1
                    const((H, C)), const((1, C)),           # W2, b2
                ],
                out_specs=pl.BlockSpec((1, tq, C), lambda b, qi: (b, qi, 0)),
                scratch_shapes=[
                    pltpu.VMEM((n_head, T, head_size), jnp.bfloat16),   # K cache
                    pltpu.VMEM((n_head, T, head_size), jnp.bfloat16),   # V cache
                    pltpu.VMEM((n_head, tq, 1), jnp.float32),           # m
                    pltpu.VMEM((n_head, tq, 1), jnp.float32),           # l
                    pltpu.VMEM((n_head, tq, head_size), jnp.float32),   # acc
                ]),
            compiler_params=pltpu.CompilerParams(
                # qi must be sequential (per-batch K/V scratch is carried
                # across query tiles); batch stays parallel for megacore.
                dimension_semantics=("parallel", "arbitrary"),
                vmem_limit_bytes=vmem_limit),
        )

    try:
        return build(single_buffer=True)(*args)
    except Exception:
        # Some JAX versions reject Buffered(1); default double-buffering is
        # functionally identical (just uses more VMEM).
        return build(single_buffer=False)(*args)


# ------------------------------ pure-JAX reference ---------------------------

def block_reference(x, params, *, n_head):
    (ln1g, ln1b, wqkv, wo, bo, ln2g, ln2b, w1, b1, w2, b2) = params
    B, T, C = x.shape
    hs = C // n_head
    x = x.astype(jnp.float32)

    def ln(y, g, b, eps=1e-5):
        mu = jnp.mean(y, -1, keepdims=True)
        var = jnp.mean((y - mu) ** 2, -1, keepdims=True)
        return (y - mu) * jax.lax.rsqrt(var + eps) * g + b

    h1 = ln(x, ln1g, ln1b)
    qkv = h1 @ wqkv
    q, k, v = jnp.split(qkv, 3, axis=-1)
    q = q.reshape(B, T, n_head, hs).transpose(0, 2, 1, 3)
    k = k.reshape(B, T, n_head, hs).transpose(0, 2, 1, 3)
    v = v.reshape(B, T, n_head, hs).transpose(0, 2, 1, 3)
    scores = jnp.einsum("bhqd,bhkd->bhqk", q, k) / math.sqrt(hs)
    mask = jnp.tril(jnp.ones((T, T), bool))
    scores = jnp.where(mask, scores, -jnp.inf)
    p = jax.nn.softmax(scores, axis=-1)
    att = jnp.einsum("bhqk,bhkd->bhqd", p, v).transpose(0, 2, 1, 3).reshape(B, T, C)
    x = x + att @ wo + bo

    h2 = ln(x, ln2g, ln2b)
    ff = jnp.maximum(h2 @ w1 + b1, 0.0) @ w2 + b2
    return x + ff


# ----------------------------------- main -------------------------------------

if __name__ == "__main__":
    n_embd, n_head = 32, 4
    H = 4 * n_embd

    key = jax.random.PRNGKey(0)
    keys = jax.random.split(key, 10)

    def init(k, shape, fan_in):
        bound = 1.0 / math.sqrt(fan_in)
        return jax.random.uniform(k, shape, jnp.float32, -bound, bound)

    params = (
        jnp.ones((1, n_embd), jnp.float32),               # ln1 gamma
        jnp.zeros((1, n_embd), jnp.float32),              # ln1 beta
        init(keys[0], (n_embd, 3 * n_embd), n_embd),      # Wqkv (heads fused, bias=False)
        init(keys[1], (n_embd, n_embd), n_embd),          # Wo (proj)
        init(keys[2], (1, n_embd), n_embd),               # bo
        jnp.ones((1, n_embd), jnp.float32),               # ln2 gamma
        jnp.zeros((1, n_embd), jnp.float32),              # ln2 beta
        init(keys[3], (n_embd, H), n_embd),               # W1
        init(keys[4], (1, H), n_embd),                    # b1
        init(keys[5], (H, n_embd), H),                    # W2
        init(keys[6], (1, n_embd), H),                    # b2
    )

    # Case 1: small sequence, single query tile (tq == T == 8).
    x1 = jax.random.normal(keys[7], (2, 8, n_embd), jnp.float32)
    out1 = jax.block_until_ready(block_forward(x1, params, n_head=n_head))
    ref1 = block_reference(x1, params, n_head=n_head)
    assert out1.shape == x1.shape
    err1 = float(jnp.max(jnp.abs(out1 - ref1)))
    assert jnp.allclose(out1, ref1, atol=3e-2, rtol=3e-2), (
        f"case1 mismatch vs reference: max abs err = {err1}")

    # Case 2: tiled path (4 query tiles, 4 KV tiles) — exercises the per-batch
    # K/V scratch reuse across qi and the online-softmax KV loop.
    x2 = jax.random.normal(keys[8], (2, 32, n_embd), jnp.float32)
    out2 = jax.block_until_ready(
        block_forward(x2, params, n_head=n_head, q_tile=8, k_tile=8))
    ref2 = block_reference(x2, params, n_head=n_head)
    assert out2.shape == x2.shape
    err2 = float(jnp.max(jnp.abs(out2 - ref2)))
    assert jnp.allclose(out2, ref2, atol=3e-2, rtol=3e-2), (
        f"case2 mismatch vs reference: max abs err = {err2}")

    print("KERNEL_OK")
</pallas_src>

<mosaic_0001>
module attributes {stable_mosaic.version = 11 : i64} {
  func.func @_block_kernel(%arg0: i32, %arg1: i32, %arg2: memref<1x8x32xf32, #tpu.memory_space<vmem>>, %arg3: memref<1x32xf32, #tpu.memory_space<vmem>>, %arg4: memref<1x32xf32, #tpu.memory_space<vmem>>, %arg5: memref<32x32xbf16, #tpu.memory_space<vmem>>, %arg6: memref<32x64xbf16, #tpu.memory_space<vmem>>, %arg7: memref<32x32xbf16, #tpu.memory_space<vmem>>, %arg8: memref<1x32xf32, #tpu.memory_space<vmem>>, %arg9: memref<1x32xf32, #tpu.memory_space<vmem>>, %arg10: memref<1x32xf32, #tpu.memory_space<vmem>>, %arg11: memref<32x128xbf16, #tpu.memory_space<vmem>>, %arg12: memref<1x128xf32, #tpu.memory_space<vmem>>, %arg13: memref<128x32xbf16, #tpu.memory_space<vmem>>, %arg14: memref<1x32xf32, #tpu.memory_space<vmem>>, %arg15: memref<1x8x32xf32, #tpu.memory_space<vmem>>, %arg16: memref<4x8x8xbf16, #tpu.memory_space<vmem>>, %arg17: memref<4x8x8xbf16, #tpu.memory_space<vmem>>, %arg18: memref<4x8x1xf32, #tpu.memory_space<vmem>>, %arg19: memref<4x8x1xf32, #tpu.memory_space<vmem>>, %arg20: memref<4x8x8xf32, #tpu.memory_space<vmem>>) attributes {dimension_semantics = [#tpu.dimension_semantics<parallel>, #tpu.dimension_semantics<arbitrary>], iteration_bounds = array<i64: 2, 1>, scalar_prefetch = 0 : i64, scratch_operands = 5 : i64, tpu.core_type = #tpu.core_type<tc>, window_params = [{pipeline_mode = #tpu.pipeline_mode<synchronous>, transform_indices = @transform_0, window_bounds = array<i64: 1, 8, 32>}, {pipeline_mode = #tpu.pipeline_mode<synchronous>, transform_indices = @transform_1, window_bounds = array<i64: 1, 32>}, {pipeline_mode = #tpu.pipeline_mode<synchronous>, transform_indices = @transform_2, window_bounds = array<i64: 1, 32>}, {pipeline_mode = #tpu.pipeline_mode<synchronous>, transform_indices = @transform_3, window_bounds = array<i64: 32, 32>}, {pipeline_mode = #tpu.pipeline_mode<synchronous>, transform_indices = @transform_4, window_bounds = array<i64: 32, 64>}, {pipeline_mode = #tpu.pipeline_mode<synchronous>, transform_indices = @transform_5, window_bounds = array<i64: 32, 32>}, {pipeline_mode = #tpu.pipeline_mode<synchronous>, transform_indices = @transform_6, window_bounds = array<i64: 1, 32>}, {pipeline_mode = #tpu.pipeline_mode<synchronous>, transform_indices = @transform_7, window_bounds = array<i64: 1, 32>}, {pipeline_mode = #tpu.pipeline_mode<synchronous>, transform_indices = @transform_8, window_bounds = array<i64: 1, 32>}, {pipeline_mode = #tpu.pipeline_mode<synchronous>, transform_indices = @transform_9, window_bounds = array<i64: 32, 128>}, {pipeline_mode = #tpu.pipeline_mode<synchronous>, transform_indices = @transform_10, window_bounds = array<i64: 1, 128>}, {pipeline_mode = #tpu.pipeline_mode<synchronous>, transform_indices = @transform_11, window_bounds = array<i64: 128, 32>}, {pipeline_mode = #tpu.pipeline_mode<synchronous>, transform_indices = @transform_12, window_bounds = array<i64: 1, 32>}, {transform_indices = @transform_13, window_bounds = array<i64: 1, 8, 32>}]} {
    %c0 = arith.constant 0 : index
    %c0_0 = arith.constant 0 : index
    %0 = vector.load %arg3[%c0, %c0_0] : memref<1x32xf32, #tpu.memory_space<vmem>>, vector<1x32xf32>
    %c0_1 = arith.constant 0 : index
    %c0_2 = arith.constant 0 : index
    %1 = vector.load %arg4[%c0_1, %c0_2] : memref<1x32xf32, #tpu.memory_space<vmem>>, vector<1x32xf32>
    %c8_i32 = arith.constant 8 : i32
    %2 = arith.muli %arg1, %c8_i32 : i32
    %3 = tpu.assume_multiple %2, 8 : i32
    %c0_i32 = arith.constant 0 : i32
    %4 = arith.cmpi eq, %arg1, %c0_i32 : i32
    %5 = arith.extui %4 : i1 to i32
    %c0_i32_3 = arith.constant 0 : i32
    %6 = arith.cmpi ne, %5, %c0_i32_3 : i32
    scf.if %6 {
      %c0_91 = arith.constant 0 : index
      %c0_92 = arith.constant 0 : index
      %c0_93 = arith.constant 0 : index
      %146 = vector.load %arg2[%c0_91, %c0_92, %c0_93] : memref<1x8x32xf32, #tpu.memory_space<vmem>>, vector<1x8x32xf32>
      %147 = vector.shape_cast %146 : vector<1x8x32xf32> to vector<8x32xf32>
      %cst_94 = arith.constant dense<0.000000e+00> : vector<8xf32>
      %148 = vector.multi_reduction <add>, %147, %cst_94 [1] : vector<8x32xf32> to vector<8xf32>
      %149 = vector.shape_cast %148 : vector<8xf32> to vector<8x1xf32>
      %cst_95 = arith.constant 3.200000e+01 : f32
      %150 = vector.broadcast %cst_95 : f32 to vector<8x1xf32>
      %151 = arith.divf %149, %150 : vector<8x1xf32>
      %152 = vector.broadcast %151 : vector<8x1xf32> to vector<8x32xf32>
      %153 = arith.subf %147, %152 : vector<8x32xf32>
      %154 = arith.mulf %153, %153 : vector<8x32xf32>
      %cst_96 = arith.constant dense<0.000000e+00> : vector<8xf32>
      %155 = vector.multi_reduction <add>, %154, %cst_96 [1] : vector<8x32xf32> to vector<8xf32>
      %156 = vector.shape_cast %155 : vector<8xf32> to vector<8x1xf32>
      %cst_97 = arith.constant 3.200000e+01 : f32
      %157 = vector.broadcast %cst_97 : f32 to vector<8x1xf32>
      %158 = arith.divf %156, %157 : vector<8x1xf32>
      %159 = vector.broadcast %151 : vector<8x1xf32> to vector<8x32xf32>
      %160 = arith.subf %147, %159 : vector<8x32xf32>
      %cst_98 = arith.constant 9.99999974E-6 : f32
      %161 = vector.broadcast %cst_98 : f32 to vector<8x1xf32>
      %162 = arith.addf %158, %161 : vector<8x1xf32>
      %163 = math.rsqrt %162 : vector<8x1xf32>
      %164 = vector.broadcast %163 : vector<8x1xf32> to vector<8x32xf32>
      %165 = arith.mulf %160, %164 : vector<8x32xf32>
      %166 = vector.broadcast %0 : vector<1x32xf32> to vector<8x32xf32>
      %167 = arith.mulf %165, %166 : vector<8x32xf32>
      %168 = vector.broadcast %1 : vector<1x32xf32> to vector<8x32xf32>
      %169 = arith.addf %167, %168 : vector<8x32xf32>
      %170 = arith.truncf %169 : vector<8x32xf32> to vector<8x32xbf16>
      %c0_99 = arith.constant 0 : index
      %c0_100 = arith.constant 0 : index
      %171 = vector.load %arg6[%c0_99, %c0_100] : memref<32x64xbf16, #tpu.memory_space<vmem>>, vector<32x64xbf16>
      %cst_101 = arith.constant dense<0.000000e+00> : vector<8x64xf32>
      %172 = tpu.matmul %170, %171, %cst_101 {dimension_numbers = #tpu.dot_dimension_numbers<[1], [0], [0], [1], [0, 0, 1, 1], [], []>} : vector<8x32xbf16>, vector<32x64xbf16>, vector<8x64xf32> -> vector<8x64xf32>
      %173 = vector.extract_strided_slice %172 {offsets = [0, 0], sizes = [8, 32], strides = [1, 1]} : vector<8x64xf32> to vector<8x32xf32>
      %174 = vector.shape_cast %173 : vector<8x32xf32> to vector<8x4x8xf32>
      %175 = tpu.transpose %174, [1, 0, 2] : vector<8x4x8xf32> -> vector<4x8x8xf32>
      %176 = vector.extract_strided_slice %172 {offsets = [0, 32], sizes = [8, 32], strides = [1, 1]} : vector<8x64xf32> to vector<8x32xf32>
      %177 = vector.shape_cast %176 : vector<8x32xf32> to vector<8x4x8xf32>
      %178 = tpu.transpose %177, [1, 0, 2] : vector<8x4x8xf32> -> vector<4x8x8xf32>
      %179 = arith.truncf %175 : vector<4x8x8xf32> to vector<4x8x8xbf16>
      %c0_102 = arith.constant 0 : index
      %c0_103 = arith.constant 0 : index
      %c0_104 = arith.constant 0 : index
      %180 = vector.load %arg16[%c0_102, %c0_103, %c0_104] : memref<4x8x8xbf16, #tpu.memory_space<vmem>>, vector<4x8x8xbf16>
      tpu.vector_store %arg16[%c0_102, %c0_103, %c0_104], %179 {strides = array<i32>} : memref<4x8x8xbf16, #tpu.memory_space<vmem>>, vector<4x8x8xbf16>,
      %181 = arith.truncf %178 : vector<4x8x8xf32> to vector<4x8x8xbf16>
      %c0_105 = arith.constant 0 : index
      %c0_106 = arith.constant 0 : index
      %c0_107 = arith.constant 0 : index
      %182 = vector.load %arg17[%c0_105, %c0_106, %c0_107] : memref<4x8x8xbf16, #tpu.memory_space<vmem>>, vector<4x8x8xbf16>
      tpu.vector_store %arg17[%c0_105, %c0_106, %c0_107], %181 {strides = array<i32>} : memref<4x8x8xbf16, #tpu.memory_space<vmem>>, vector<4x8x8xbf16>,
    } else {
    }
    %c0_4 = arith.constant 0 : index
    %7 = arith.index_cast %3 : i32 to index
    %c0_5 = arith.constant 0 : index
    %8 = vector.load %arg2[%c0_4, %7, %c0_5] : memref<1x8x32xf32, #tpu.memory_space<vmem>>, vector<1x8x32xf32>
    %9 = vector.shape_cast %8 : vector<1x8x32xf32> to vector<8x32xf32>
    %cst = arith.constant dense<0.000000e+00> : vector<8xf32>
    %10 = vector.multi_reduction <add>, %9, %cst [1] : vector<8x32xf32> to vector<8xf32>
    %11 = vector.shape_cast %10 : vector<8xf32> to vector<8x1xf32>
    %cst_6 = arith.constant 3.200000e+01 : f32
    %12 = vector.broadcast %cst_6 : f32 to vector<8x1xf32>
    %13 = arith.divf %11, %12 : vector<8x1xf32>
    %14 = vector.broadcast %13 : vector<8x1xf32> to vector<8x32xf32>
    %15 = arith.subf %9, %14 : vector<8x32xf32>
    %16 = arith.mulf %15, %15 : vector<8x32xf32>
    %cst_7 = arith.constant dense<0.000000e+00> : vector<8xf32>
    %17 = vector.multi_reduction <add>, %16, %cst_7 [1] : vector<8x32xf32> to vector<8xf32>
    %18 = vector.shape_cast %17 : vector<8xf32> to vector<8x1xf32>
    %cst_8 = arith.constant 3.200000e+01 : f32
    %19 = vector.broadcast %cst_8 : f32 to vector<8x1xf32>
    %20 = arith.divf %18, %19 : vector<8x1xf32>
    %21 = vector.broadcast %13 : vector<8x1xf32> to vector<8x32xf32>
    %22 = arith.subf %9, %21 : vector<8x32xf32>
    %cst_9 = arith.constant 9.99999974E-6 : f32
    %23 = vector.broadcast %cst_9 : f32 to vector<8x1xf32>
    %24 = arith.addf %20, %23 : vector<8x1xf32>
    %25 = math.rsqrt %24 : vector<8x1xf32>
    %26 = vector.broadcast %25 : vector<8x1xf32> to vector<8x32xf32>
    %27 = arith.mulf %22, %26 : vector<8x32xf32>
    %28 = vector.broadcast %0 : vector<1x32xf32> to vector<8x32xf32>
    %29 = arith.mulf %27, %28 : vector<8x32xf32>
    %30 = vector.broadcast %1 : vector<1x32xf32> to vector<8x32xf32>
    %31 = arith.addf %29, %30 : vector<8x32xf32>
    %32 = arith.truncf %31 : vector<8x32xf32> to vector<8x32xbf16>
    %c0_10 = arith.constant 0 : index
    %c0_11 = arith.constant 0 : index
    %33 = vector.load %arg5[%c0_10, %c0_11] : memref<32x32xbf16, #tpu.memory_space<vmem>>, vector<32x32xbf16>
    %cst_12 = arith.constant dense<0.000000e+00> : vector<8x32xf32>
    %34 = tpu.matmul %32, %33, %cst_12 {dimension_numbers = #tpu.dot_dimension_numbers<[1], [0], [0], [1], [0, 0, 1, 1], [], []>} : vector<8x32xbf16>, vector<32x32xbf16>, vector<8x32xf32> -> vector<8x32xf32>
    %cst_13 = arith.constant 0.353553385 : f32
    %35 = vector.broadcast %cst_13 : f32 to vector<8x32xf32>
    %36 = arith.mulf %34, %35 : vector<8x32xf32>
    %37 = vector.shape_cast %36 : vector<8x32xf32> to vector<8x4x8xf32>
    %38 = tpu.transpose %37, [1, 0, 2] : vector<8x4x8xf32> -> vector<4x8x8xf32>
    %39 = arith.truncf %38 : vector<4x8x8xf32> to vector<4x8x8xbf16>
    %cst_14 = arith.constant -1.000000e+30 : f32
    %40 = vector.broadcast %cst_14 : f32 to vector<4x8x1xf32>
    %c0_15 = arith.constant 0 : index
    %c0_16 = arith.constant 0 : index
    %c0_17 = arith.constant 0 : index
    %41 = vector.load %arg18[%c0_15, %c0_16, %c0_17] : memref<4x8x1xf32, #tpu.memory_space<vmem>>, vector<4x8x1xf32>
    tpu.vector_store %arg18[%c0_15, %c0_16, %c0_17], %40 {strides = array<i32>} : memref<4x8x1xf32, #tpu.memory_space<vmem>>, vector<4x8x1xf32>,
    %cst_18 = arith.constant 0.000000e+00 : f32
    %42 = vector.broadcast %cst_18 : f32 to vector<4x8x1xf32>
    %c0_19 = arith.constant 0 : index
    %c0_20 = arith.constant 0 : index
    %c0_21 = arith.constant 0 : index
    %43 = vector.load %arg19[%c0_19, %c0_20, %c0_21] : memref<4x8x1xf32, #tpu.memory_space<vmem>>, vector<4x8x1xf32>
    tpu.vector_store %arg19[%c0_19, %c0_20, %c0_21], %42 {strides = array<i32>} : memref<4x8x1xf32, #tpu.memory_space<vmem>>, vector<4x8x1xf32>,
    %cst_22 = arith.constant 0.000000e+00 : f32
    %44 = vector.broadcast %cst_22 : f32 to vector<4x8x8xf32>
    %c0_23 = arith.constant 0 : index
    %c0_24 = arith.constant 0 : index
    %c0_25 = arith.constant 0 : index
    %45 = vector.load %arg20[%c0_23, %c0_24, %c0_25] : memref<4x8x8xf32, #tpu.memory_space<vmem>>, vector<4x8x8xf32>
    tpu.vector_store %arg20[%c0_23, %c0_24, %c0_25], %44 {strides = array<i32>} : memref<4x8x8xf32, #tpu.memory_space<vmem>>, vector<4x8x8xf32>,
    %46 = tpu.iota {dimensions = array<i32: 0>} : vector<8x8xi32>
    %47 = vector.broadcast %3 : i32 to vector<8x8xi32>
    %48 = arith.addi %47, %46 : vector<8x8xi32>
    %49 = tpu.iota {dimensions = array<i32: 1>} : vector<8x8xi32>
    %c0_i32_26 = arith.constant 0 : i32
    %c1_i32 = arith.constant 1 : i32
    %50 = arith.muli %c0_i32_26, %c1_i32 : i32
    %c0_i32_27 = arith.constant 0 : i32
    %51 = arith.addi %c0_i32_27, %50 : i32
    %c8_i32_28 = arith.constant 8 : i32
    %52 = arith.muli %51, %c8_i32_28 : i32
    %53 = tpu.assume_multiple %52, 8 : i32
    %c0_29 = arith.constant 0 : index
    %54 = arith.index_cast %53 : i32 to index
    %c0_30 = arith.constant 0 : index
    %55 = vector.load %arg16[%c0_29, %54, %c0_30] : memref<4x8x8xbf16, #tpu.memory_space<vmem>>, vector<4x8x8xbf16>
    %c0_31 = arith.constant 0 : index
    %56 = arith.index_cast %53 : i32 to index
    %c0_32 = arith.constant 0 : index
    %57 = vector.load %arg17[%c0_31, %56, %c0_32] : memref<4x8x8xbf16, #tpu.memory_space<vmem>>, vector<4x8x8xbf16>
    "tpu.trace_start"() <{level = 10 : i32, message = "hqd,hkd->hqk"}> : () -> ()
    %cst_33 = arith.constant dense<0.000000e+00> : vector<4x8x8xf32>
    %58 = tpu.matmul %39, %55, %cst_33 {dimension_numbers = #tpu.dot_dimension_numbers<[2], [2], [1], [1], [0, 0, 0, 1, 1, 1], [0], [0]>} : vector<4x8x8xbf16>, vector<4x8x8xbf16>, vector<4x8x8xf32> -> vector<4x8x8xf32>
    "tpu.trace_stop"() : () -> ()
    %59 = vector.broadcast %53 : i32 to vector<8x8xi32>
    %60 = arith.addi %59, %49 : vector<8x8xi32>
    %61 = arith.cmpi sle, %60, %48 : vector<8x8xi32>
    %62 = vector.shape_cast %61 : vector<8x8xi1> to vector<1x8x8xi1>
    %cst_34 = arith.constant -1.000000e+30 : f32
    %63 = vector.shape_cast %62 : vector<1x8x8xi1> to vector<1x8x8xi1>
    %64 = vector.broadcast %63 : vector<1x8x8xi1> to vector<4x8x8xi1>
    %65 = vector.broadcast %cst_34 : f32 to vector<4x8x8xf32>
    %66 = arith.select %64, %58, %65 : vector<4x8x8xi1>, vector<4x8x8xf32>
    %c0_35 = arith.constant 0 : index
    %c0_36 = arith.constant 0 : index
    %c0_37 = arith.constant 0 : index
    %67 = vector.load %arg18[%c0_35, %c0_36, %c0_37] : memref<4x8x1xf32, #tpu.memory_space<vmem>>, vector<4x8x1xf32>
    %cst_38 = arith.constant dense<0xFF800000> : vector<4x8xf32>
    %68 = vector.multi_reduction <maximumf>, %66, %cst_38 [2] : vector<4x8x8xf32> to vector<4x8xf32>
    %69 = vector.shape_cast %68 : vector<4x8xf32> to vector<4x8x1xf32>
    %70 = arith.maximumf %67, %69 : vector<4x8x1xf32>
    %71 = arith.subf %67, %70 : vector<4x8x1xf32>
    %72 = math.exp %71 : vector<4x8x1xf32>
    %73 = vector.broadcast %70 : vector<4x8x1xf32> to vector<4x8x8xf32>
    %74 = arith.subf %66, %73 : vector<4x8x8xf32>
    %75 = math.exp %74 : vector<4x8x8xf32>
    %c0_39 = arith.constant 0 : index
    %c0_40 = arith.constant 0 : index
    %c0_41 = arith.constant 0 : index
    %76 = vector.load %arg19[%c0_39, %c0_40, %c0_41] : memref<4x8x1xf32, #tpu.memory_space<vmem>>, vector<4x8x1xf32>
    %77 = arith.mulf %72, %76 : vector<4x8x1xf32>
    %cst_42 = arith.constant dense<0.000000e+00> : vector<4x8xf32>
    %78 = vector.multi_reduction <add>, %75, %cst_42 [2] : vector<4x8x8xf32> to vector<4x8xf32>
    %79 = vector.shape_cast %78 : vector<4x8xf32> to vector<4x8x1xf32>
    %80 = arith.addf %77, %79 : vector<4x8x1xf32>
    %c0_43 = arith.constant 0 : index
    %c0_44 = arith.constant 0 : index
    %c0_45 = arith.constant 0 : index
    %81 = vector.load %arg19[%c0_43, %c0_44, %c0_45] : memref<4x8x1xf32, #tpu.memory_space<vmem>>, vector<4x8x1xf32>
    tpu.vector_store %arg19[%c0_43, %c0_44, %c0_45], %80 {strides = array<i32>} : memref<4x8x1xf32, #tpu.memory_space<vmem>>, vector<4x8x1xf32>,
    %c0_46 = arith.constant 0 : index
    %c0_47 = arith.constant 0 : index
    %c0_48 = arith.constant 0 : index
    %82 = vector.load %arg20[%c0_46, %c0_47, %c0_48] : memref<4x8x8xf32, #tpu.memory_space<vmem>>, vector<4x8x8xf32>
    %83 = vector.broadcast %72 : vector<4x8x1xf32> to vector<4x8x8xf32>
    %84 = arith.mulf %83, %82 : vector<4x8x8xf32>
    %85 = arith.truncf %75 : vector<4x8x8xf32> to vector<4x8x8xbf16>
    "tpu.trace_start"() <{level = 10 : i32, message = "hqk,hkd->hqd"}> : () -> ()
    %cst_49 = arith.constant dense<0.000000e+00> : vector<4x8x8xf32>
    %86 = tpu.matmul %85, %57, %cst_49 {dimension_numbers = #tpu.dot_dimension_numbers<[2], [1], [1], [2], [0, 0, 0, 1, 1, 2], [0], [0]>} : vector<4x8x8xbf16>, vector<4x8x8xbf16>, vector<4x8x8xf32> -> vector<4x8x8xf32>
    "tpu.trace_stop"() : () -> ()
    %87 = arith.addf %84, %86 : vector<4x8x8xf32>
    %c0_50 = arith.constant 0 : index
    %c0_51 = arith.constant 0 : index
    %c0_52 = arith.constant 0 : index
    %88 = vector.load %arg20[%c0_50, %c0_51, %c0_52] : memref<4x8x8xf32, #tpu.memory_space<vmem>>, vector<4x8x8xf32>
    tpu.vector_store %arg20[%c0_50, %c0_51, %c0_52], %87 {strides = array<i32>} : memref<4x8x8xf32, #tpu.memory_space<vmem>>, vector<4x8x8xf32>,
    %c0_53 = arith.constant 0 : index
    %c0_54 = arith.constant 0 : index
    %c0_55 = arith.constant 0 : index
    %89 = vector.load %arg18[%c0_53, %c0_54, %c0_55] : memref<4x8x1xf32, #tpu.memory_space<vmem>>, vector<4x8x1xf32>
    tpu.vector_store %arg18[%c0_53, %c0_54, %c0_55], %70 {strides = array<i32>} : memref<4x8x1xf32, #tpu.memory_space<vmem>>, vector<4x8x1xf32>,
    %c1_i32_56 = arith.constant 1 : i32
    %c0_57 = arith.constant 0 : index
    %c0_58 = arith.constant 0 : index
    %c0_59 = arith.constant 0 : index
    %90 = vector.load %arg20[%c0_57, %c0_58, %c0_59] : memref<4x8x8xf32, #tpu.memory_space<vmem>>, vector<4x8x8xf32>
    %c0_60 = arith.constant 0 : index
    %c0_61 = arith.constant 0 : index
    %c0_62 = arith.constant 0 : index
    %91 = vector.load %arg19[%c0_60, %c0_61, %c0_62] : memref<4x8x1xf32, #tpu.memory_space<vmem>>, vector<4x8x1xf32>
    %92 = tpu.reciprocal %91 {approx = true} : vector<4x8x1xf32> -> vector<4x8x1xf32>
    %93 = vector.broadcast %92 : vector<4x8x1xf32> to vector<4x8x8xf32>
    %94 = arith.mulf %90, %93 : vector<4x8x8xf32>
    %95 = tpu.transpose %94, [1, 0, 2] : vector<4x8x8xf32> -> vector<8x4x8xf32>
    %96 = vector.shape_cast %95 : vector<8x4x8xf32> to vector<8x32xf32>
    %97 = arith.truncf %96 : vector<8x32xf32> to vector<8x32xbf16>
    %c0_63 = arith.constant 0 : index
    %c0_64 = arith.constant 0 : index
    %98 = vector.load %arg7[%c0_63, %c0_64] : memref<32x32xbf16, #tpu.memory_space<vmem>>, vector<32x32xbf16>
    %cst_65 = arith.constant dense<0.000000e+00> : vector<8x32xf32>
    %99 = tpu.matmul %97, %98, %cst_65 {dimension_numbers = #tpu.dot_dimension_numbers<[1], [0], [0], [1], [0, 0, 1, 1], [], []>} : vector<8x32xbf16>, vector<32x32xbf16>, vector<8x32xf32> -> vector<8x32xf32>
    %c0_66 = arith.constant 0 : index
    %c0_67 = arith.constant 0 : index
    %100 = vector.load %arg8[%c0_66, %c0_67] : memref<1x32xf32, #tpu.memory_space<vmem>>, vector<1x32xf32>
    %101 = vector.broadcast %100 : vector<1x32xf32> to vector<8x32xf32>
    %102 = arith.addf %99, %101 : vector<8x32xf32>
    %103 = arith.addf %9, %102 : vector<8x32xf32>
    %c0_68 = arith.constant 0 : index
    %c0_69 = arith.constant 0 : index
    %104 = vector.load %arg9[%c0_68, %c0_69] : memref<1x32xf32, #tpu.memory_space<vmem>>, vector<1x32xf32>
    %c0_70 = arith.constant 0 : index
    %c0_71 = arith.constant 0 : index
    %105 = vector.load %arg10[%c0_70, %c0_71] : memref<1x32xf32, #tpu.memory_space<vmem>>, vector<1x32xf32>
    %cst_72 = arith.constant dense<0.000000e+00> : vector<8xf32>
    %106 = vector.multi_reduction <add>, %103, %cst_72 [1] : vector<8x32xf32> to vector<8xf32>
    %107 = vector.shape_cast %106 : vector<8xf32> to vector<8x1xf32>
    %cst_73 = arith.constant 3.200000e+01 : f32
    %108 = vector.broadcast %cst_73 : f32 to vector<8x1xf32>
    %109 = arith.divf %107, %108 : vector<8x1xf32>
    %110 = vector.broadcast %109 : vector<8x1xf32> to vector<8x32xf32>
    %111 = arith.subf %103, %110 : vector<8x32xf32>
    %112 = arith.mulf %111, %111 : vector<8x32xf32>
    %cst_74 = arith.constant dense<0.000000e+00> : vector<8xf32>
    %113 = vector.multi_reduction <add>, %112, %cst_74 [1] : vector<8x32xf32> to vector<8xf32>
    %114 = vector.shape_cast %113 : vector<8xf32> to vector<8x1xf32>
    %cst_75 = arith.constant 3.200000e+01 : f32
    %115 = vector.broadcast %cst_75 : f32 to vector<8x1xf32>
    %116 = arith.divf %114, %115 : vector<8x1xf32>
    %117 = vector.broadcast %109 : vector<8x1xf32> to vector<8x32xf32>
    %118 = arith.subf %103, %117 : vector<8x32xf32>
    %cst_76 = arith.constant 9.99999974E-6 : f32
    %119 = vector.broadcast %cst_76 : f32 to vector<8x1xf32>
    %120 = arith.addf %116, %119 : vector<8x1xf32>
    %121 = math.rsqrt %120 : vector<8x1xf32>
    %122 = vector.broadcast %121 : vector<8x1xf32> to vector<8x32xf32>
    %123 = arith.mulf %118, %122 : vector<8x32xf32>
    %124 = vector.broadcast %104 : vector<1x32xf32> to vector<8x32xf32>
    %125 = arith.mulf %123, %124 : vector<8x32xf32>
    %126 = vector.broadcast %105 : vector<1x32xf32> to vector<8x32xf32>
    %127 = arith.addf %125, %126 : vector<8x32xf32>
    %128 = arith.truncf %127 : vector<8x32xf32> to vector<8x32xbf16>
    %c0_77 = arith.constant 0 : index
    %c0_78 = arith.constant 0 : index
    %129 = vector.load %arg11[%c0_77, %c0_78] : memref<32x128xbf16, #tpu.memory_space<vmem>>, vector<32x128xbf16>
    %cst_79 = arith.constant dense<0.000000e+00> : vector<8x128xf32>
    %130 = tpu.matmul %128, %129, %cst_79 {dimension_numbers = #tpu.dot_dimension_numbers<[1], [0], [0], [1], [0, 0, 1, 1], [], []>} : vector<8x32xbf16>, vector<32x128xbf16>, vector<8x128xf32> -> vector<8x128xf32>
    %c0_80 = arith.constant 0 : index
    %c0_81 = arith.constant 0 : index
    %131 = vector.load %arg12[%c0_80, %c0_81] : memref<1x128xf32, #tpu.memory_space<vmem>>, vector<1x128xf32>
    %132 = vector.broadcast %131 : vector<1x128xf32> to vector<8x128xf32>
    %133 = arith.addf %130, %132 : vector<8x128xf32>
    %cst_82 = arith.constant 0.000000e+00 : f32
    %134 = vector.broadcast %cst_82 : f32 to vector<8x128xf32>
    %135 = arith.maximumf %133, %134 : vector<8x128xf32>
    %136 = arith.truncf %135 : vector<8x128xf32> to vector<8x128xbf16>
    %c0_83 = arith.constant 0 : index
    %c0_84 = arith.constant 0 : index
    %137 = vector.load %arg13[%c0_83, %c0_84] : memref<128x32xbf16, #tpu.memory_space<vmem>>, vector<128x32xbf16>
    %cst_85 = arith.constant dense<0.000000e+00> : vector<8x32xf32>
    %138 = tpu.matmul %136, %137, %cst_85 {dimension_numbers = #tpu.dot_dimension_numbers<[1], [0], [0], [1], [0, 0, 1, 1], [], []>} : vector<8x128xbf16>, vector<128x32xbf16>, vector<8x32xf32> -> vector<8x32xf32>
    %c0_86 = arith.constant 0 : index
    %c0_87 = arith.constant 0 : index
    %139 = vector.load %arg14[%c0_86, %c0_87] : memref<1x32xf32, #tpu.memory_space<vmem>>, vector<1x32xf32>
    %140 = vector.broadcast %139 : vector<1x32xf32> to vector<8x32xf32>
    %141 = arith.addf %138, %140 : vector<8x32xf32>
    %142 = arith.addf %103, %141 : vector<8x32xf32>
    %c0_88 = arith.constant 0 : index
    %c0_89 = arith.constant 0 : index
    %c0_90 = arith.constant 0 : index
    %143 = vector.load %arg15[%c0_88, %c0_89, %c0_90] : memref<1x8x32xf32, #tpu.memory_space<vmem>>, vector<1x8x32xf32>
    %144 = vector.shape_cast %143 : vector<1x8x32xf32> to vector<8x32xf32>
    %145 = vector.shape_cast %142 : vector<8x32xf32> to vector<1x8x32xf32>
    tpu.vector_store %arg15[%c0_88, %c0_89, %c0_90], %145 {strides = array<i32>} : memref<1x8x32xf32, #tpu.memory_space<vmem>>, vector<1x8x32xf32>,
    return
  }
  func.func @transform_0(%arg0: i32, %arg1: i32) -> (i32, i32, i32) {
    %c0_i32 = arith.constant 0 : i32
    %c0_i32_0 = arith.constant 0 : i32
    %c0_i32_1 = arith.constant 0 : i32
    return %arg0, %c0_i32, %c0_i32_0 : i32, i32, i32
  }
  func.func @transform_1(%arg0: i32, %arg1: i32) -> (i32, i32) {
    %c0_i32 = arith.constant 0 : i32
    %c0_i32_0 = arith.constant 0 : i32
    %c0_i32_1 = arith.constant 0 : i32
    return %c0_i32, %c0_i32_0 : i32, i32
  }
  func.func @transform_2(%arg0: i32, %arg1: i32) -> (i32, i32) {
    %c0_i32 = arith.constant 0 : i32
    %c0_i32_0 = arith.constant 0 : i32
    %c0_i32_1 = arith.constant 0 : i32
    return %c0_i32, %c0_i32_0 : i32, i32
  }
  func.func @transform_3(%arg0: i32, %arg1: i32) -> (i32, i32) {
    %c0_i32 = arith.constant 0 : i32
    %c0_i32_0 = arith.constant 0 : i32
    %c0_i32_1 = arith.constant 0 : i32
    return %c0_i32, %c0_i32_0 : i32, i32
  }
  func.func @transform_4(%arg0: i32, %arg1: i32) -> (i32, i32) {
    %c0_i32 = arith.constant 0 : i32
    %c0_i32_0 = arith.constant 0 : i32
    %c0_i32_1 = arith.constant 0 : i32
    return %c0_i32, %c0_i32_0 : i32, i32
  }
  func.func @transform_5(%arg0: i32, %arg1: i32) -> (i32, i32) {
    %c0_i32 = arith.constant 0 : i32
    %c0_i32_0 = arith.constant 0 : i32
    %c0_i32_1 = arith.constant 0 : i32
    return %c0_i32, %c0_i32_0 : i32, i32
  }
  func.func @transform_6(%arg0: i32, %arg1: i32) -> (i32, i32) {
    %c0_i32 = arith.constant 0 : i32
    %c0_i32_0 = arith.constant 0 : i32
    %c0_i32_1 = arith.constant 0 : i32
    return %c0_i32, %c0_i32_0 : i32, i32
  }
  func.func @transform_7(%arg0: i32, %arg1: i32) -> (i32, i32) {
    %c0_i32 = arith.constant 0 : i32
    %c0_i32_0 = arith.constant 0 : i32
    %c0_i32_1 = arith.constant 0 : i32
    return %c0_i32, %c0_i32_0 : i32, i32
  }
  func.func @transform_8(%arg0: i32, %arg1: i32) -> (i32, i32) {
    %c0_i32 = arith.constant 0 : i32
    %c0_i32_0 = arith.constant 0 : i32
    %c0_i32_1 = arith.constant 0 : i32
    return %c0_i32, %c0_i32_0 : i32, i32
  }
  func.func @transform_9(%arg0: i32, %arg1: i32) -> (i32, i32) {
    %c0_i32 = arith.constant 0 : i32
    %c0_i32_0 = arith.constant 0 : i32
    %c0_i32_1 = arith.constant 0 : i32
    return %c0_i32, %c0_i32_0 : i32, i32
  }
  func.func @transform_10(%arg0: i32, %arg1: i32) -> (i32, i32) {
    %c0_i32 = arith.constant 0 : i32
    %c0_i32_0 = arith.constant 0 : i32
    %c0_i32_1 = arith.constant 0 : i32
    return %c0_i32, %c0_i32_0 : i32, i32
  }
  func.func @transform_11(%arg0: i32, %arg1: i32) -> (i32, i32) {
    %c0_i32 = arith.constant 0 : i32
    %c0_i32_0 = arith.constant 0 : i32
    %c0_i32_1 = arith.constant 0 : i32
    return %c0_i32, %c0_i32_0 : i32, i32
  }
  func.func @transform_12(%arg0: i32, %arg1: i32) -> (i32, i32) {
    %c0_i32 = arith.constant 0 : i32
    %c0_i32_0 = arith.constant 0 : i32
    %c0_i32_1 = arith.constant 0 : i32
    return %c0_i32, %c0_i32_0 : i32, i32
  }
  func.func @transform_13(%arg0: i32, %arg1: i32) -> (i32, i32, i32) {
    %c0_i32 = arith.constant 0 : i32
    %c0_i32_0 = arith.constant 0 : i32
    return %arg0, %arg1, %c0_i32 : i32, i32, i32
  }
}

module attributes {stable_mosaic.version = 11 : i64} {
  func.func @_block_kernel(%arg0: i32, %arg1: i32, %arg2: memref<1x8x32xf32, #tpu.memory_space<vmem>>, %arg3: memref<1x32xf32, #tpu.memory_space<vmem>>, %arg4: memref<1x32xf32, #tpu.memory_space<vmem>>, %arg5: memref<32x32xbf16, #tpu.memory_space<vmem>>, %arg6: memref<32x64xbf16, #tpu.memory_space<vmem>>, %arg7: memref<32x32xbf16, #tpu.memory_space<vmem>>, %arg8: memref<1x32xf32, #tpu.memory_space<vmem>>, %arg9: memref<1x32xf32, #tpu.memory_space<vmem>>, %arg10: memref<1x32xf32, #tpu.memory_space<vmem>>, %arg11: memref<32x128xbf16, #tpu.memory_space<vmem>>, %arg12: memref<1x128xf32, #tpu.memory_space<vmem>>, %arg13: memref<128x32xbf16, #tpu.memory_space<vmem>>, %arg14: memref<1x32xf32, #tpu.memory_space<vmem>>, %arg15: memref<1x8x32xf32, #tpu.memory_space<vmem>>, %arg16: memref<4x8x8xbf16, #tpu.memory_space<vmem>>, %arg17: memref<4x8x8xbf16, #tpu.memory_space<vmem>>, %arg18: memref<4x8x1xf32, #tpu.memory_space<vmem>>, %arg19: memref<4x8x1xf32, #tpu.memory_space<vmem>>, %arg20: memref<4x8x8xf32, #tpu.memory_space<vmem>>) attributes {dimension_semantics = [#tpu.dimension_semantics<parallel>, #tpu.dimension_semantics<arbitrary>], iteration_bounds = array<i64: 2, 1>, scalar_prefetch = 0 : i64, scratch_operands = 5 : i64, tpu.core_type = #tpu.core_type<tc>, window_params = [{transform_indices = @transform_0, window_bounds = array<i64: 1, 8, 32>}, {pipeline_mode = #tpu.pipeline_mode<synchronous>, transform_indices = @transform_1, window_bounds = array<i64: 1, 32>}, {pipeline_mode = #tpu.pipeline_mode<synchronous>, transform_indices = @transform_2, window_bounds = array<i64: 1, 32>}, {pipeline_mode = #tpu.pipeline_mode<synchronous>, transform_indices = @transform_3, window_bounds = array<i64: 32, 32>}, {pipeline_mode = #tpu.pipeline_mode<synchronous>, transform_indices = @transform_4, window_bounds = array<i64: 32, 64>}, {pipeline_mode = #tpu.pipeline_mode<synchronous>, transform_indices = @transform_5, window_bounds = array<i64: 32, 32>}, {pipeline_mode = #tpu.pipeline_mode<synchronous>, transform_indices = @transform_6, window_bounds = array<i64: 1, 32>}, {pipeline_mode = #tpu.pipeline_mode<synchronous>, transform_indices = @transform_7, window_bounds = array<i64: 1, 32>}, {pipeline_mode = #tpu.pipeline_mode<synchronous>, transform_indices = @transform_8, window_bounds = array<i64: 1, 32>}, {pipeline_mode = #tpu.pipeline_mode<synchronous>, transform_indices = @transform_9, window_bounds = array<i64: 32, 128>}, {pipeline_mode = #tpu.pipeline_mode<synchronous>, transform_indices = @transform_10, window_bounds = array<i64: 1, 128>}, {pipeline_mode = #tpu.pipeline_mode<synchronous>, transform_indices = @transform_11, window_bounds = array<i64: 128, 32>}, {pipeline_mode = #tpu.pipeline_mode<synchronous>, transform_indices = @transform_12, window_bounds = array<i64: 1, 32>}, {transform_indices = @transform_13, window_bounds = array<i64: 1, 8, 32>}]} {
    %c0 = arith.constant 0 : index
    %c0_0 = arith.constant 0 : index
    %0 = vector.load %arg3[%c0, %c0_0] : memref<1x32xf32, #tpu.memory_space<vmem>>, vector<1x32xf32>
    %c0_1 = arith.constant 0 : index
    %c0_2 = arith.constant 0 : index
    %1 = vector.load %arg4[%c0_1, %c0_2] : memref<1x32xf32, #tpu.memory_space<vmem>>, vector<1x32xf32>
    %c8_i32 = arith.constant 8 : i32
    %2 = arith.muli %arg1, %c8_i32 : i32
    %3 = tpu.assume_multiple %2, 8 : i32
    %c0_i32 = arith.constant 0 : i32
    %4 = arith.cmpi eq, %arg1, %c0_i32 : i32
    %5 = arith.extui %4 : i1 to i32
    %c0_i32_3 = arith.constant 0 : i32
    %6 = arith.cmpi ne, %5, %c0_i32_3 : i32
    scf.if %6 {
      %c0_91 = arith.constant 0 : index
      %c0_92 = arith.constant 0 : index
      %c0_93 = arith.constant 0 : index
      %146 = vector.load %arg2[%c0_91, %c0_92, %c0_93] : memref<1x8x32xf32, #tpu.memory_space<vmem>>, vector<1x8x32xf32>
      %147 = vector.shape_cast %146 : vector<1x8x32xf32> to vector<8x32xf32>
      %cst_94 = arith.constant dense<0.000000e+00> : vector<8xf32>
      %148 = vector.multi_reduction <add>, %147, %cst_94 [1] : vector<8x32xf32> to vector<8xf32>
      %149 = vector.shape_cast %148 : vector<8xf32> to vector<8x1xf32>
      %cst_95 = arith.constant 3.200000e+01 : f32
      %150 = vector.broadcast %cst_95 : f32 to vector<8x1xf32>
      %151 = arith.divf %149, %150 : vector<8x1xf32>
      %152 = vector.broadcast %151 : vector<8x1xf32> to vector<8x32xf32>
      %153 = arith.subf %147, %152 : vector<8x32xf32>
      %154 = arith.mulf %153, %153 : vector<8x32xf32>
      %cst_96 = arith.constant dense<0.000000e+00> : vector<8xf32>
      %155 = vector.multi_reduction <add>, %154, %cst_96 [1] : vector<8x32xf32> to vector<8xf32>
      %156 = vector.shape_cast %155 : vector<8xf32> to vector<8x1xf32>
      %cst_97 = arith.constant 3.200000e+01 : f32
      %157 = vector.broadcast %cst_97 : f32 to vector<8x1xf32>
      %158 = arith.divf %156, %157 : vector<8x1xf32>
      %159 = vector.broadcast %151 : vector<8x1xf32> to vector<8x32xf32>
      %160 = arith.subf %147, %159 : vector<8x32xf32>
      %cst_98 = arith.constant 9.99999974E-6 : f32
      %161 = vector.broadcast %cst_98 : f32 to vector<8x1xf32>
      %162 = arith.addf %158, %161 : vector<8x1xf32>
      %163 = math.rsqrt %162 : vector<8x1xf32>
      %164 = vector.broadcast %163 : vector<8x1xf32> to vector<8x32xf32>
      %165 = arith.mulf %160, %164 : vector<8x32xf32>
      %166 = vector.broadcast %0 : vector<1x32xf32> to vector<8x32xf32>
      %167 = arith.mulf %165, %166 : vector<8x32xf32>
      %168 = vector.broadcast %1 : vector<1x32xf32> to vector<8x32xf32>
      %169 = arith.addf %167, %168 : vector<8x32xf32>
      %170 = arith.truncf %169 : vector<8x32xf32> to vector<8x32xbf16>
      %c0_99 = arith.constant 0 : index
      %c0_100 = arith.constant 0 : index
      %171 = vector.load %arg6[%c0_99, %c0_100] : memref<32x64xbf16, #tpu.memory_space<vmem>>, vector<32x64xbf16>
      %cst_101 = arith.constant dense<0.000000e+00> : vector<8x64xf32>
      %172 = tpu.matmul %170, %171, %cst_101 {dimension_numbers = #tpu.dot_dimension_numbers<[1], [0], [0], [1], [0, 0, 1, 1], [], []>} : vector<8x32xbf16>, vector<32x64xbf16>, vector<8x64xf32> -> vector<8x64xf32>
      %173 = vector.extract_strided_slice %172 {offsets = [0, 0], sizes = [8, 32], strides = [1, 1]} : vector<8x64xf32> to vector<8x32xf32>
      %174 = vector.shape_cast %173 : vector<8x32xf32> to vector<8x4x8xf32>
      %175 = tpu.transpose %174, [1, 0, 2] : vector<8x4x8xf32> -> vector<4x8x8xf32>
      %176 = vector.extract_strided_slice %172 {offsets = [0, 32], sizes = [8, 32], strides = [1, 1]} : vector<8x64xf32> to vector<8x32xf32>
      %177 = vector.shape_cast %176 : vector<8x32xf32> to vector<8x4x8xf32>
      %178 = tpu.transpose %177, [1, 0, 2] : vector<8x4x8xf32> -> vector<4x8x8xf32>
      %179 = arith.truncf %175 : vector<4x8x8xf32> to vector<4x8x8xbf16>
      %c0_102 = arith.constant 0 : index
      %c0_103 = arith.constant 0 : index
      %c0_104 = arith.constant 0 : index
      %180 = vector.load %arg16[%c0_102, %c0_103, %c0_104] : memref<4x8x8xbf16, #tpu.memory_space<vmem>>, vector<4x8x8xbf16>
      tpu.vector_store %arg16[%c0_102, %c0_103, %c0_104], %179 {strides = array<i32>} : memref<4x8x8xbf16, #tpu.memory_space<vmem>>, vector<4x8x8xbf16>,
      %181 = arith.truncf %178 : vector<4x8x8xf32> to vector<4x8x8xbf16>
      %c0_105 = arith.constant 0 : index
      %c0_106 = arith.constant 0 : index
      %c0_107 = arith.constant 0 : index
      %182 = vector.load %arg17[%c0_105, %c0_106, %c0_107] : memref<4x8x8xbf16, #tpu.memory_space<vmem>>, vector<4x8x8xbf16>
      tpu.vector_store %arg17[%c0_105, %c0_106, %c0_107], %181 {strides = array<i32>} : memref<4x8x8xbf16, #tpu.memory_space<vmem>>, vector<4x8x8xbf16>,
    } else {
    }
    %c0_4 = arith.constant 0 : index
    %7 = arith.index_cast %3 : i32 to index
    %c0_5 = arith.constant 0 : index
    %8 = vector.load %arg2[%c0_4, %7, %c0_5] : memref<1x8x32xf32, #tpu.memory_space<vmem>>, vector<1x8x32xf32>
    %9 = vector.shape_cast %8 : vector<1x8x32xf32> to vector<8x32xf32>
    %cst = arith.constant dense<0.000000e+00> : vector<8xf32>
    %10 = vector.multi_reduction <add>, %9, %cst [1] : vector<8x32xf32> to vector<8xf32>
    %11 = vector.shape_cast %10 : vector<8xf32> to vector<8x1xf32>
    %cst_6 = arith.constant 3.200000e+01 : f32
    %12 = vector.broadcast %cst_6 : f32 to vector<8x1xf32>
    %13 = arith.divf %11, %12 : vector<8x1xf32>
    %14 = vector.broadcast %13 : vector<8x1xf32> to vector<8x32xf32>
    %15 = arith.subf %9, %14 : vector<8x32xf32>
    %16 = arith.mulf %15, %15 : vector<8x32xf32>
    %cst_7 = arith.constant dense<0.000000e+00> : vector<8xf32>
    %17 = vector.multi_reduction <add>, %16, %cst_7 [1] : vector<8x32xf32> to vector<8xf32>
    %18 = vector.shape_cast %17 : vector<8xf32> to vector<8x1xf32>
    %cst_8 = arith.constant 3.200000e+01 : f32
    %19 = vector.broadcast %cst_8 : f32 to vector<8x1xf32>
    %20 = arith.divf %18, %19 : vector<8x1xf32>
    %21 = vector.broadcast %13 : vector<8x1xf32> to vector<8x32xf32>
    %22 = arith.subf %9, %21 : vector<8x32xf32>
    %cst_9 = arith.constant 9.99999974E-6 : f32
    %23 = vector.broadcast %cst_9 : f32 to vector<8x1xf32>
    %24 = arith.addf %20, %23 : vector<8x1xf32>
    %25 = math.rsqrt %24 : vector<8x1xf32>
    %26 = vector.broadcast %25 : vector<8x1xf32> to vector<8x32xf32>
    %27 = arith.mulf %22, %26 : vector<8x32xf32>
    %28 = vector.broadcast %0 : vector<1x32xf32> to vector<8x32xf32>
    %29 = arith.mulf %27, %28 : vector<8x32xf32>
    %30 = vector.broadcast %1 : vector<1x32xf32> to vector<8x32xf32>
    %31 = arith.addf %29, %30 : vector<8x32xf32>
    %32 = arith.truncf %31 : vector<8x32xf32> to vector<8x32xbf16>
    %c0_10 = arith.constant 0 : index
    %c0_11 = arith.constant 0 : index
    %33 = vector.load %arg5[%c0_10, %c0_11] : memref<32x32xbf16, #tpu.memory_space<vmem>>, vector<32x32xbf16>
    %cst_12 = arith.constant dense<0.000000e+00> : vector<8x32xf32>
    %34 = tpu.matmul %32, %33, %cst_12 {dimension_numbers = #tpu.dot_dimension_numbers<[1], [0], [0], [1], [0, 0, 1, 1], [], []>} : vector<8x32xbf16>, vector<32x32xbf16>, vector<8x32xf32> -> vector<8x32xf32>
    %cst_13 = arith.constant 0.353553385 : f32
    %35 = vector.broadcast %cst_13 : f32 to vector<8x32xf32>
    %36 = arith.mulf %34, %35 : vector<8x32xf32>
    %37 = vector.shape_cast %36 : vector<8x32xf32> to vector<8x4x8xf32>
    %38 = tpu.transpose %37, [1, 0, 2] : vector<8x4x8xf32> -> vector<4x8x8xf32>
    %39 = arith.truncf %38 : vector<4x8x8xf32> to vector<4x8x8xbf16>
    %cst_14 = arith.constant -1.000000e+30 : f32
    %40 = vector.broadcast %cst_14 : f32 to vector<4x8x1xf32>
    %c0_15 = arith.constant 0 : index
    %c0_16 = arith.constant 0 : index
    %c0_17 = arith.constant 0 : index
    %41 = vector.load %arg18[%c0_15, %c0_16, %c0_17] : memref<4x8x1xf32, #tpu.memory_space<vmem>>, vector<4x8x1xf32>
    tpu.vector_store %arg18[%c0_15, %c0_16, %c0_17], %40 {strides = array<i32>} : memref<4x8x1xf32, #tpu.memory_space<vmem>>, vector<4x8x1xf32>,
    %cst_18 = arith.constant 0.000000e+00 : f32
    %42 = vector.broadcast %cst_18 : f32 to vector<4x8x1xf32>
    %c0_19 = arith.constant 0 : index
    %c0_20 = arith.constant 0 : index
    %c0_21 = arith.constant 0 : index
    %43 = vector.load %arg19[%c0_19, %c0_20, %c0_21] : memref<4x8x1xf32, #tpu.memory_space<vmem>>, vector<4x8x1xf32>
    tpu.vector_store %arg19[%c0_19, %c0_20, %c0_21], %42 {strides = array<i32>} : memref<4x8x1xf32, #tpu.memory_space<vmem>>, vector<4x8x1xf32>,
    %cst_22 = arith.constant 0.000000e+00 : f32
    %44 = vector.broadcast %cst_22 : f32 to vector<4x8x8xf32>
    %c0_23 = arith.constant 0 : index
    %c0_24 = arith.constant 0 : index
    %c0_25 = arith.constant 0 : index
    %45 = vector.load %arg20[%c0_23, %c0_24, %c0_25] : memref<4x8x8xf32, #tpu.memory_space<vmem>>, vector<4x8x8xf32>
    tpu.vector_store %arg20[%c0_23, %c0_24, %c0_25], %44 {strides = array<i32>} : memref<4x8x8xf32, #tpu.memory_space<vmem>>, vector<4x8x8xf32>,
    %46 = tpu.iota {dimensions = array<i32: 0>} : vector<8x8xi32>
    %47 = vector.broadcast %3 : i32 to vector<8x8xi32>
    %48 = arith.addi %47, %46 : vector<8x8xi32>
    %49 = tpu.iota {dimensions = array<i32: 1>} : vector<8x8xi32>
    %c0_i32_26 = arith.constant 0 : i32
    %c1_i32 = arith.constant 1 : i32
    %50 = arith.muli %c0_i32_26, %c1_i32 : i32
    %c0_i32_27 = arith.constant 0 : i32
    %51 = arith.addi %c0_i32_27, %50 : i32
    %c8_i32_28 = arith.constant 8 : i32
    %52 = arith.muli %51, %c8_i32_28 : i32
    %53 = tpu.assume_multiple %52, 8 : i32
    %c0_29 = arith.constant 0 : index
    %54 = arith.index_cast %53 : i32 to index
    %c0_30 = arith.constant 0 : index
    %55 = vector.load %arg16[%c0_29, %54, %c0_30] : memref<4x8x8xbf16, #tpu.memory_space<vmem>>, vector<4x8x8xbf16>
    %c0_31 = arith.constant 0 : index
    %56 = arith.index_cast %53 : i32 to index
    %c0_32 = arith.constant 0 : index
    %57 = vector.load %arg17[%c0_31, %56, %c0_32] : memref<4x8x8xbf16, #tpu.memory_space<vmem>>, vector<4x8x8xbf16>
    "tpu.trace_start"() <{level = 10 : i32, message = "hqd,hkd->hqk"}> : () -> ()
    %cst_33 = arith.constant dense<0.000000e+00> : vector<4x8x8xf32>
    %58 = tpu.matmul %39, %55, %cst_33 {dimension_numbers = #tpu.dot_dimension_numbers<[2], [2], [1], [1], [0, 0, 0, 1, 1, 1], [0], [0]>} : vector<4x8x8xbf16>, vector<4x8x8xbf16>, vector<4x8x8xf32> -> vector<4x8x8xf32>
    "tpu.trace_stop"() : () -> ()
    %59 = vector.broadcast %53 : i32 to vector<8x8xi32>
    %60 = arith.addi %59, %49 : vector<8x8xi32>
    %61 = arith.cmpi sle, %60, %48 : vector<8x8xi32>
    %62 = vector.shape_cast %61 : vector<8x8xi1> to vector<1x8x8xi1>
    %cst_34 = arith.constant -1.000000e+30 : f32
    %63 = vector.shape_cast %62 : vector<1x8x8xi1> to vector<1x8x8xi1>
    %64 = vector.broadcast %63 : vector<1x8x8xi1> to vector<4x8x8xi1>
    %65 = vector.broadcast %cst_34 : f32 to vector<4x8x8xf32>
    %66 = arith.select %64, %58, %65 : vector<4x8x8xi1>, vector<4x8x8xf32>
    %c0_35 = arith.constant 0 : index
    %c0_36 = arith.constant 0 : index
    %c0_37 = arith.constant 0 : index
    %67 = vector.load %arg18[%c0_35, %c0_36, %c0_37] : memref<4x8x1xf32, #tpu.memory_space<vmem>>, vector<4x8x1xf32>
    %cst_38 = arith.constant dense<0xFF800000> : vector<4x8xf32>
    %68 = vector.multi_reduction <maximumf>, %66, %cst_38 [2] : vector<4x8x8xf32> to vector<4x8xf32>
    %69 = vector.shape_cast %68 : vector<4x8xf32> to vector<4x8x1xf32>
    %70 = arith.maximumf %67, %69 : vector<4x8x1xf32>
    %71 = arith.subf %67, %70 : vector<4x8x1xf32>
    %72 = math.exp %71 : vector<4x8x1xf32>
    %73 = vector.broadcast %70 : vector<4x8x1xf32> to vector<4x8x8xf32>
    %74 = arith.subf %66, %73 : vector<4x8x8xf32>
    %75 = math.exp %74 : vector<4x8x8xf32>
    %c0_39 = arith.constant 0 : index
    %c0_40 = arith.constant 0 : index
    %c0_41 = arith.constant 0 : index
    %76 = vector.load %arg19[%c0_39, %c0_40, %c0_41] : memref<4x8x1xf32, #tpu.memory_space<vmem>>, vector<4x8x1xf32>
    %77 = arith.mulf %72, %76 : vector<4x8x1xf32>
    %cst_42 = arith.constant dense<0.000000e+00> : vector<4x8xf32>
    %78 = vector.multi_reduction <add>, %75, %cst_42 [2] : vector<4x8x8xf32> to vector<4x8xf32>
    %79 = vector.shape_cast %78 : vector<4x8xf32> to vector<4x8x1xf32>
    %80 = arith.addf %77, %79 : vector<4x8x1xf32>
    %c0_43 = arith.constant 0 : index
    %c0_44 = arith.constant 0 : index
    %c0_45 = arith.constant 0 : index
    %81 = vector.load %arg19[%c0_43, %c0_44, %c0_45] : memref<4x8x1xf32, #tpu.memory_space<vmem>>, vector<4x8x1xf32>
    tpu.vector_store %arg19[%c0_43, %c0_44, %c0_45], %80 {strides = array<i32>} : memref<4x8x1xf32, #tpu.memory_space<vmem>>, vector<4x8x1xf32>,
    %c0_46 = arith.constant 0 : index
    %c0_47 = arith.constant 0 : index
    %c0_48 = arith.constant 0 : index
    %82 = vector.load %arg20[%c0_46, %c0_47, %c0_48] : memref<4x8x8xf32, #tpu.memory_space<vmem>>, vector<4x8x8xf32>
    %83 = vector.broadcast %72 : vector<4x8x1xf32> to vector<4x8x8xf32>
    %84 = arith.mulf %83, %82 : vector<4x8x8xf32>
    %85 = arith.truncf %75 : vector<4x8x8xf32> to vector<4x8x8xbf16>
    "tpu.trace_start"() <{level = 10 : i32, message = "hqk,hkd->hqd"}> : () -> ()
    %cst_49 = arith.constant dense<0.000000e+00> : vector<4x8x8xf32>
    %86 = tpu.matmul %85, %57, %cst_49 {dimension_numbers = #tpu.dot_dimension_numbers<[2], [1], [1], [2], [0, 0, 0, 1, 1, 2], [0], [0]>} : vector<4x8x8xbf16>, vector<4x8x8xbf16>, vector<4x8x8xf32> -> vector<4x8x8xf32>
    "tpu.trace_stop"() : () -> ()
    %87 = arith.addf %84, %86 : vector<4x8x8xf32>
    %c0_50 = arith.constant 0 : index
    %c0_51 = arith.constant 0 : index
    %c0_52 = arith.constant 0 : index
    %88 = vector.load %arg20[%c0_50, %c0_51, %c0_52] : memref<4x8x8xf32, #tpu.memory_space<vmem>>, vector<4x8x8xf32>
    tpu.vector_store %arg20[%c0_50, %c0_51, %c0_52], %87 {strides = array<i32>} : memref<4x8x8xf32, #tpu.memory_space<vmem>>, vector<4x8x8xf32>,
    %c0_53 = arith.constant 0 : index
    %c0_54 = arith.constant 0 : index
    %c0_55 = arith.constant 0 : index
    %89 = vector.load %arg18[%c0_53, %c0_54, %c0_55] : memref<4x8x1xf32, #tpu.memory_space<vmem>>, vector<4x8x1xf32>
    tpu.vector_store %arg18[%c0_53, %c0_54, %c0_55], %70 {strides = array<i32>} : memref<4x8x1xf32, #tpu.memory_space<vmem>>, vector<4x8x1xf32>,
    %c1_i32_56 = arith.constant 1 : i32
    %c0_57 = arith.constant 0 : index
    %c0_58 = arith.constant 0 : index
    %c0_59 = arith.constant 0 : index
    %90 = vector.load %arg20[%c0_57, %c0_58, %c0_59] : memref<4x8x8xf32, #tpu.memory_space<vmem>>, vector<4x8x8xf32>
    %c0_60 = arith.constant 0 : index
    %c0_61 = arith.constant 0 : index
    %c0_62 = arith.constant 0 : index
    %91 = vector.load %arg19[%c0_60, %c0_61, %c0_62] : memref<4x8x1xf32, #tpu.memory_space<vmem>>, vector<4x8x1xf32>
    %92 = tpu.reciprocal %91 {approx = true} : vector<4x8x1xf32> -> vector<4x8x1xf32>
    %93 = vector.broadcast %92 : vector<4x8x1xf32> to vector<4x8x8xf32>
    %94 = arith.mulf %90, %93 : vector<4x8x8xf32>
    %95 = tpu.transpose %94, [1, 0, 2] : vector<4x8x8xf32> -> vector<8x4x8xf32>
    %96 = vector.shape_cast %95 : vector<8x4x8xf32> to vector<8x32xf32>
    %97 = arith.truncf %96 : vector<8x32xf32> to vector<8x32xbf16>
    %c0_63 = arith.constant 0 : index
    %c0_64 = arith.constant 0 : index
    %98 = vector.load %arg7[%c0_63, %c0_64] : memref<32x32xbf16, #tpu.memory_space<vmem>>, vector<32x32xbf16>
    %cst_65 = arith.constant dense<0.000000e+00> : vector<8x32xf32>
    %99 = tpu.matmul %97, %98, %cst_65 {dimension_numbers = #tpu.dot_dimension_numbers<[1], [0], [0], [1], [0, 0, 1, 1], [], []>} : vector<8x32xbf16>, vector<32x32xbf16>, vector<8x32xf32> -> vector<8x32xf32>
    %c0_66 = arith.constant 0 : index
    %c0_67 = arith.constant 0 : index
    %100 = vector.load %arg8[%c0_66, %c0_67] : memref<1x32xf32, #tpu.memory_space<vmem>>, vector<1x32xf32>
    %101 = vector.broadcast %100 : vector<1x32xf32> to vector<8x32xf32>
    %102 = arith.addf %99, %101 : vector<8x32xf32>
    %103 = arith.addf %9, %102 : vector<8x32xf32>
    %c0_68 = arith.constant 0 : index
    %c0_69 = arith.constant 0 : index
    %104 = vector.load %arg9[%c0_68, %c0_69] : memref<1x32xf32, #tpu.memory_space<vmem>>, vector<1x32xf32>
    %c0_70 = arith.constant 0 : index
    %c0_71 = arith.constant 0 : index
    %105 = vector.load %arg10[%c0_70, %c0_71] : memref<1x32xf32, #tpu.memory_space<vmem>>, vector<1x32xf32>
    %cst_72 = arith.constant dense<0.000000e+00> : vector<8xf32>
    %106 = vector.multi_reduction <add>, %103, %cst_72 [1] : vector<8x32xf32> to vector<8xf32>
    %107 = vector.shape_cast %106 : vector<8xf32> to vector<8x1xf32>
    %cst_73 = arith.constant 3.200000e+01 : f32
    %108 = vector.broadcast %cst_73 : f32 to vector<8x1xf32>
    %109 = arith.divf %107, %108 : vector<8x1xf32>
    %110 = vector.broadcast %109 : vector<8x1xf32> to vector<8x32xf32>
    %111 = arith.subf %103, %110 : vector<8x32xf32>
    %112 = arith.mulf %111, %111 : vector<8x32xf32>
    %cst_74 = arith.constant dense<0.000000e+00> : vector<8xf32>
    %113 = vector.multi_reduction <add>, %112, %cst_74 [1] : vector<8x32xf32> to vector<8xf32>
    %114 = vector.shape_cast %113 : vector<8xf32> to vector<8x1xf32>
    %cst_75 = arith.constant 3.200000e+01 : f32
    %115 = vector.broadcast %cst_75 : f32 to vector<8x1xf32>
    %116 = arith.divf %114, %115 : vector<8x1xf32>
    %117 = vector.broadcast %109 : vector<8x1xf32> to vector<8x32xf32>
    %118 = arith.subf %103, %117 : vector<8x32xf32>
    %cst_76 = arith.constant 9.99999974E-6 : f32
    %119 = vector.broadcast %cst_76 : f32 to vector<8x1xf32>
    %120 = arith.addf %116, %119 : vector<8x1xf32>
    %121 = math.rsqrt %120 : vector<8x1xf32>
    %122 = vector.broadcast %121 : vector<8x1xf32> to vector<8x32xf32>
    %123 = arith.mulf %118, %122 : vector<8x32xf32>
    %124 = vector.broadcast %104 : vector<1x32xf32> to vector<8x32xf32>
    %125 = arith.mulf %123, %124 : vector<8x32xf32>
    %126 = vector.broadcast %105 : vector<1x32xf32> to vector<8x32xf32>
    %127 = arith.addf %125, %126 : vector<8x32xf32>
    %128 = arith.truncf %127 : vector<8x32xf32> to vector<8x32xbf16>
    %c0_77 = arith.constant 0 : index
    %c0_78 = arith.constant 0 : index
    %129 = vector.load %arg11[%c0_77, %c0_78] : memref<32x128xbf16, #tpu.memory_space<vmem>>, vector<32x128xbf16>
    %cst_79 = arith.constant dense<0.000000e+00> : vector<8x128xf32>
    %130 = tpu.matmul %128, %129, %cst_79 {dimension_numbers = #tpu.dot_dimension_numbers<[1], [0], [0], [1], [0, 0, 1, 1], [], []>} : vector<8x32xbf16>, vector<32x128xbf16>, vector<8x128xf32> -> vector<8x128xf32>
    %c0_80 = arith.constant 0 : index
    %c0_81 = arith.constant 0 : index
    %131 = vector.load %arg12[%c0_80, %c0_81] : memref<1x128xf32, #tpu.memory_space<vmem>>, vector<1x128xf32>
    %132 = vector.broadcast %131 : vector<1x128xf32> to vector<8x128xf32>
    %133 = arith.addf %130, %132 : vector<8x128xf32>
    %cst_82 = arith.constant 0.000000e+00 : f32
    %134 = vector.broadcast %cst_82 : f32 to vector<8x128xf32>
    %135 = arith.maximumf %133, %134 : vector<8x128xf32>
    %136 = arith.truncf %135 : vector<8x128xf32> to vector<8x128xbf16>
    %c0_83 = arith.constant 0 : index
    %c0_84 = arith.constant 0 : index
    %137 = vector.load %arg13[%c0_83, %c0_84] : memref<128x32xbf16, #tpu.memory_space<vmem>>, vector<128x32xbf16>
    %cst_85 = arith.constant dense<0.000000e+00> : vector<8x32xf32>
    %138 = tpu.matmul %136, %137, %cst_85 {dimension_numbers = #tpu.dot_dimension_numbers<[1], [0], [0], [1], [0, 0, 1, 1], [], []>} : vector<8x128xbf16>, vector<128x32xbf16>, vector<8x32xf32> -> vector<8x32xf32>
    %c0_86 = arith.constant 0 : index
    %c0_87 = arith.constant 0 : index
    %139 = vector.load %arg14[%c0_86, %c0_87] : memref<1x32xf32, #tpu.memory_space<vmem>>, vector<1x32xf32>
    %140 = vector.broadcast %139 : vector<1x32xf32> to vector<8x32xf32>
    %141 = arith.addf %138, %140 : vector<8x32xf32>
    %142 = arith.addf %103, %141 : vector<8x32xf32>
    %c0_88 = arith.constant 0 : index
    %c0_89 = arith.constant 0 : index
    %c0_90 = arith.constant 0 : index
    %143 = vector.load %arg15[%c0_88, %c0_89, %c0_90] : memref<1x8x32xf32, #tpu.memory_space<vmem>>, vector<1x8x32xf32>
    %144 = vector.shape_cast %143 : vector<1x8x32xf32> to vector<8x32xf32>
    %145 = vector.shape_cast %142 : vector<8x32xf32> to vector<1x8x32xf32>
    tpu.vector_store %arg15[%c0_88, %c0_89, %c0_90], %145 {strides = array<i32>} : memref<1x8x32xf32, #tpu.memory_space<vmem>>, vector<1x8x32xf32>,
    return
  }
  func.func @transform_0(%arg0: i32, %arg1: i32) -> (i32, i32, i32) {
    %c0_i32 = arith.constant 0 : i32
    %c0_i32_0 = arith.constant 0 : i32
    %c0_i32_1 = arith.constant 0 : i32
    return %arg0, %c0_i32, %c0_i32_0 : i32, i32, i32
  }
  func.func @transform_1(%arg0: i32, %arg1: i32) -> (i32, i32) {
    %c0_i32 = arith.constant 0 : i32
    %c0_i32_0 = arith.constant 0 : i32
    %c0_i32_1 = arith.constant 0 : i32
    return %c0_i32, %c0_i32_0 : i32, i32
  }
  func.func @transform_2(%arg0: i32, %arg1: i32) -> (i32, i32) {
    %c0_i32 = arith.constant 0 : i32
    %c0_i32_0 = arith.constant 0 : i32
    %c0_i32_1 = arith.constant 0 : i32
    return %c0_i32, %c0_i32_0 : i32, i32
  }
  func.func @transform_3(%arg0: i32, %arg1: i32) -> (i32, i32) {
    %c0_i32 = arith.constant 0 : i32
    %c0_i32_0 = arith.constant 0 : i32
    %c0_i32_1 = arith.constant 0 : i32
    return %c0_i32, %c0_i32_0 : i32, i32
  }
  func.func @transform_4(%arg0: i32, %arg1: i32) -> (i32, i32) {
    %c0_i32 = arith.constant 0 : i32
    %c0_i32_0 = arith.constant 0 : i32
    %c0_i32_1 = arith.constant 0 : i32
    return %c0_i32, %c0_i32_0 : i32, i32
  }
  func.func @transform_5(%arg0: i32, %arg1: i32) -> (i32, i32) {
    %c0_i32 = arith.constant 0 : i32
    %c0_i32_0 = arith.constant 0 : i32
    %c0_i32_1 = arith.constant 0 : i32
    return %c0_i32, %c0_i32_0 : i32, i32
  }
  func.func @transform_6(%arg0: i32, %arg1: i32) -> (i32, i32) {
    %c0_i32 = arith.constant 0 : i32
    %c0_i32_0 = arith.constant 0 : i32
    %c0_i32_1 = arith.constant 0 : i32
    return %c0_i32, %c0_i32_0 : i32, i32
  }
  func.func @transform_7(%arg0: i32, %arg1: i32) -> (i32, i32) {
    %c0_i32 = arith.constant 0 : i32
    %c0_i32_0 = arith.constant 0 : i32
    %c0_i32_1 = arith.constant 0 : i32
    return %c0_i32, %c0_i32_0 : i32, i32
  }
  func.func @transform_8(%arg0: i32, %arg1: i32) -> (i32, i32) {
    %c0_i32 = arith.constant 0 : i32
    %c0_i32_0 = arith.constant 0 : i32
    %c0_i32_1 = arith.constant 0 : i32
    return %c0_i32, %c0_i32_0 : i32, i32
  }
  func.func @transform_9(%arg0: i32, %arg1: i32) -> (i32, i32) {
    %c0_i32 = arith.constant 0 : i32
    %c0_i32_0 = arith.constant 0 : i32
    %c0_i32_1 = arith.constant 0 : i32
    return %c0_i32, %c0_i32_0 : i32, i32
  }
  func.func @transform_10(%arg0: i32, %arg1: i32) -> (i32, i32) {
    %c0_i32 = arith.constant 0 : i32
    %c0_i32_0 = arith.constant 0 : i32
    %c0_i32_1 = arith.constant 0 : i32
    return %c0_i32, %c0_i32_0 : i32, i32
  }
  func.func @transform_11(%arg0: i32, %arg1: i32) -> (i32, i32) {
    %c0_i32 = arith.constant 0 : i32
    %c0_i32_0 = arith.constant 0 : i32
    %c0_i32_1 = arith.constant 0 : i32
    return %c0_i32, %c0_i32_0 : i32, i32
  }
  func.func @transform_12(%arg0: i32, %arg1: i32) -> (i32, i32) {
    %c0_i32 = arith.constant 0 : i32
    %c0_i32_0 = arith.constant 0 : i32
    %c0_i32_1 = arith.constant 0 : i32
    return %c0_i32, %c0_i32_0 : i32, i32
  }
  func.func @transform_13(%arg0: i32, %arg1: i32) -> (i32, i32, i32) {
    %c0_i32 = arith.constant 0 : i32
    %c0_i32_0 = arith.constant 0 : i32
    return %arg0, %arg1, %c0_i32 : i32, i32, i32
  }
}

</mosaic_0001>

<llo_original>
// kernel: tpu_custom_call.1
$region0: #{tpu_custom_call.1}
  #allocation0 [shape = 'u32[]', space=smem, size = 0x4, offset = 0x4, fixed_abs, tag = 'smem constant byte address 0x4 - core index']
  #allocation1 [shape = 'u32[144,128]{1,0:T(1,128)}', space=vmem, size = 0x12000, scoped, tag = 'internal scratch']
  #allocation2 [shape = 'bf16[4,8,8]{2,1,0:T(8,128)(2,1)}', space=vmem, size = 0x2000, scoped, tag = 'scratch operand']
  #allocation3 [shape = 'bf16[4,8,8]{2,1,0:T(8,128)(2,1)}', space=vmem, size = 0x2000, scoped, tag = 'scratch operand']
  #allocation4 [shape = 'f32[4,8,1]{2,1,0:T(8,128)}', space=vmem, size = 0x4000, scoped, tag = 'scratch operand']
  #allocation5 [shape = 'f32[4,8,1]{2,1,0:T(8,128)}', space=vmem, size = 0x4000, scoped, tag = 'scratch operand']
  #allocation6 [shape = 'f32[4,8,8]{2,1,0:T(8,128)}', space=vmem, size = 0x4000, scoped, tag = 'scratch operand']
  %s0 = inlined_call_operand.vmem [shape: f32[2,8,32], index: 0, kind: input, shape index: {}]
  %s1 = inlined_call_operand.vmem [shape: f32[1,32], index: 1, kind: input, shape index: {}]
  %s2 = inlined_call_operand.vmem [shape: f32[1,32], index: 2, kind: input, shape index: {}]
  %s3 = inlined_call_operand.vmem [shape: bf16[32,32], index: 3, kind: input, shape index: {}]
  %s4 = inlined_call_operand.vmem [shape: bf16[32,64], index: 4, kind: input, shape index: {}]
  %s5 = inlined_call_operand.vmem [shape: bf16[32,32], index: 5, kind: input, shape index: {}]
  %s6 = inlined_call_operand.vmem [shape: f32[1,32], index: 6, kind: input, shape index: {}]
  %s7 = inlined_call_operand.vmem [shape: f32[1,32], index: 7, kind: input, shape index: {}]
  %s8 = inlined_call_operand.hbm [shape: f32[1,32], index: 8, kind: input, shape index: {}]
  %s9 = inlined_call_operand.vmem [shape: bf16[32,128], index: 9, kind: input, shape index: {}]
  %s10 = inlined_call_operand.hbm [shape: f32[1,128], index: 10, kind: input, shape index: {}]
  %s11 = inlined_call_operand.vmem [shape: bf16[128,32], index: 11, kind: input, shape index: {}]
  %s12 = inlined_call_operand.vmem [shape: f32[1,32], index: 12, kind: input, shape index: {}]
  %s13 = inlined_call_operand.hbm [shape: f32[2,8,32], index: 13, kind: output, shape index: {}]
  %s14 = sld [smem:[#allocation0]]
  $region97: #{tpu_custom_call.1} parent=0
    _
  %s16 = ssub.s32 1, %s14
  %s17 = scalar_select 0, %s16, %s14
  $region1: #{tpu_custom_call.1} parent=0
    #allocation7 [shape = 'u8[512]{0}', space=vmem, size = 0x400, scoped, tag = 'input window, operand 8, single buffered']
    #allocation8 [shape = 's32[2]{0}', space=sflag, size = 0x8, scoped, tag = 'scoped memory for tpu_custom_call.1']
    #allocation9 [shape = 's32[2]{0}', space=sflag, size = 0x8, scoped, tag = 'scoped memory for tpu_custom_call.1']
    #allocation10 [shape = 'u8[512]{0}', space=vmem, size = 0x400, scoped, tag = 'input window, operand 10, single buffered']
    #allocation11 [shape = 's32[1]{0}', space=sflag, size = 0x4, scoped, tag = 'scoped memory for tpu_custom_call.1']
    #allocation12 [shape = 'u8[8192]{0}', space=vmem, size = 0x2000, scoped, tag = 'output window, operand 0']
    %18 = vsyncpa [#allocation8], 0
    %19 = vsyncpa [#allocation11], 0
    %20 = vsyncpa [#allocation9], 0
    %s21 = scalar_lea.sflag [#allocation9], 1
    %22 = vsyncpa %s21, 0
    loop: start=0, step=1, limit=4
    $region2: #{tpu_custom_call.1} parent=1 // loop_pre_header
      _
    $region3: #{tpu_custom_call.1} parent=1 // loop_header
      %s24 = sphi 0, %s28
      %p25 = scmp.ge.s32.totalorder %s24, 4
      %s31 = sphi 0, %s43
      %s32 = sphi 0, %s39
      %s33 = sphi 0, %s31
      %s34 = sphi 0, %s32
      %s35 = sphi 0, %s33
      %s36 = sphi 0, %s34
      %s46 = sphi 0, %s48
      %s49 = sphi 0, %s46
      %s50 = sphi 0, %s49
      %s66 = sphi 0, %s50
      %s70 = sphi 0, %s70
      %s72 = sphi 0, %s70
      %s73 = sphi 0, %s72
      %s87 = sphi 0, %s73
      %s91 = sphi 0, %s91
      %s93 = sphi 0, %s91
      %s94 = sphi 0, %s93
      %s108 = sphi 0, %s94
      %s112 = sphi 0, %s112
      %s114 = sphi 0, %s112
      %s115 = sphi 0, %s114
      %s129 = sphi 0, %s115
      %s133 = sphi 0, %s133
      %s135 = sphi 0, %s133
      %s136 = sphi 0, %s135
      %s150 = sphi 0, %s136
      %s154 = sphi 0, %s154
      %s156 = sphi 0, %s154
      %s157 = sphi 0, %s156
      %s171 = sphi 0, %s157
      %s175 = sphi 0, %s175
      %s177 = sphi 0, %s175
      %s178 = sphi 0, %s177
      %s192 = sphi 0, %s178
      %s196 = sphi 0, %s196
      %s198 = sphi 0, %s196
      %s199 = sphi 0, %s198
      %s213 = sphi 0, %s199
      %s217 = sphi 0, %s217
      %s219 = sphi 0, %s217
      %s220 = sphi 0, %s219
      %s234 = sphi 0, %s220
      %s238 = sphi 0, %s238
      %s240 = sphi 0, %s238
      %s241 = sphi 0, %s240
      %s255 = sphi 0, %s241
      %s259 = sphi 0, %s259
      %s261 = sphi 0, %s259
      %s262 = sphi 0, %s261
      %s276 = sphi 0, %s262
      %s280 = sphi 0, %s280
      %s282 = sphi 0, %s280
      %s283 = sphi 0, %s282
      %s297 = sphi 0, %s283
      %s301 = sphi 0, %s301
      %s303 = sphi 0, %s301
      %s304 = sphi 0, %s303
      %s318 = sphi 0, %s304
      %s326 = sphi 0, %s328
      %s329 = sphi 0, %s326
      %s330 = sphi 0, %s329
      %s346 = sphi 0, %s330
    $region4: #{tpu_custom_call.1} parent=1 // loop_header_branch
      %27 = sbr.rel (%p25) target = $region8
    $region5: #{tpu_custom_call.1} parent=1 // loop_body
      %s29 = ssub.s32 %s24, 1
      %s30 = ssub.s32 %s24, 2
      %s37 = sadd.s32 1, %s32
      %p38 = scmp.ge.s32.totalorder %s37, 1
      %s39 = scalar_select %p38, 0, %s37
      %s40 = sadd.s32 1, %s31
      %s41 = scalar_select %p38, %s40, %s31
      %p42 = scmp.ge.s32.totalorder %s41, 2
      %s43 = scalar_select %p42, 0, %s41
      %s44 = ssub.s32 %s31, %s43
      %p45 = scmp.eq.s32.totalorder %s44, 0
      %s47 = sadd.s32 %s46, 1
      %s48 = scalar_select %p45, %s46, %s47
      %p51 = pneg %p45
      %p52 = scmp.eq.s32.totalorder %s24, 1
      %p53 = por %p51, %p52
      %p54 = scmp.ne.s32.totalorder %s46, %s49
      %p55 = scmp.eq.s32.totalorder %s24, 0
      %p56 = por %p54, %p55
      %p57 = scmp.ne.s32.totalorder %s46, %s49
      %p58 = scmp.eq.s32.totalorder %s29, 1
      %p59 = por %p57, %p58
      %p60 = scmp.ne.s32.totalorder %s49, %s50
      %p61 = scmp.eq.s32.totalorder %s29, 0
      %p62 = por %p60, %p61
      %p63 = scmp.ne.s32.totalorder %s49, %s50
      %p64 = scmp.eq.s32.totalorder %s30, 1
      %p65 = por %p63, %p64
      %p67 = scmp.ne.s32.totalorder %s50, %s66
      %p68 = scmp.eq.s32.totalorder %s30, 0
      %p69 = por %p67, %p68
      %s71 = sadd.s32 %s70, 1
      %p74 = scmp.eq.s32.totalorder %s24, 1
      %p75 = scmp.ne.s32.totalorder %s70, %s72
      %p76 = scmp.eq.s32.totalorder %s24, 0
      %p77 = por %p75, %p76
      %p78 = scmp.ne.s32.totalorder %s70, %s72
      %p79 = scmp.eq.s32.totalorder %s29, 1
      %p80 = por %p78, %p79
      %p81 = scmp.ne.s32.totalorder %s72, %s73
      %p82 = scmp.eq.s32.totalorder %s29, 0
      %p83 = por %p81, %p82
      %p84 = scmp.ne.s32.totalorder %s72, %s73
      %p85 = scmp.eq.s32.totalorder %s30, 1
      %p86 = por %p84, %p85
      %p88 = scmp.ne.s32.totalorder %s73, %s87
      %p89 = scmp.eq.s32.totalorder %s30, 0
      %p90 = por %p88, %p89
      %s92 = sadd.s32 %s91, 1
      %p95 = scmp.eq.s32.totalorder %s24, 1
      %p96 = scmp.ne.s32.totalorder %s91, %s93
      %p97 = scmp.eq.s32.totalorder %s24, 0
      %p98 = por %p96, %p97
      %p99 = scmp.ne.s32.totalorder %s91, %s93
      %p100 = scmp.eq.s32.totalorder %s29, 1
      %p101 = por %p99, %p100
      %p102 = scmp.ne.s32.totalorder %s93, %s94
      %p103 = scmp.eq.s32.totalorder %s29, 0
      %p104 = por %p102, %p103
      %p105 = scmp.ne.s32.totalorder %s93, %s94
      %p106 = scmp.eq.s32.totalorder %s30, 1
      %p107 = por %p105, %p106
      %p109 = scmp.ne.s32.totalorder %s94, %s108
      %p110 = scmp.eq.s32.totalorder %s30, 0
      %p111 = por %p109, %p110
      %s113 = sadd.s32 %s112, 1
      %p116 = scmp.eq.s32.totalorder %s24, 1
      %p117 = scmp.ne.s32.totalorder %s112, %s114
      %p118 = scmp.eq.s32.totalorder %s24, 0
      %p119 = por %p117, %p118
      %p120 = scmp.ne.s32.totalorder %s112, %s114
      %p121 = scmp.eq.s32.totalorder %s29, 1
      %p122 = por %p120, %p121
      %p123 = scmp.ne.s32.totalorder %s114, %s115
      %p124 = scmp.eq.s32.totalorder %s29, 0
      %p125 = por %p123, %p124
      %p126 = scmp.ne.s32.totalorder %s114, %s115
      %p127 = scmp.eq.s32.totalorder %s30, 1
      %p128 = por %p126, %p127
      %p130 = scmp.ne.s32.totalorder %s115, %s129
      %p131 = scmp.eq.s32.totalorder %s30, 0
      %p132 = por %p130, %p131
      %s134 = sadd.s32 %s133, 1
      %p137 = scmp.eq.s32.totalorder %s24, 1
      %p138 = scmp.ne.s32.totalorder %s133, %s135
      %p139 = scmp.eq.s32.totalorder %s24, 0
      %p140 = por %p138, %p139
      %p141 = scmp.ne.s32.totalorder %s133, %s135
      %p142 = scmp.eq.s32.totalorder %s29, 1
      %p143 = por %p141, %p142
      %p144 = scmp.ne.s32.totalorder %s135, %s136
      %p145 = scmp.eq.s32.totalorder %s29, 0
      %p146 = por %p144, %p145
      %p147 = scmp.ne.s32.totalorder %s135, %s136
      %p148 = scmp.eq.s32.totalorder %s30, 1
      %p149 = por %p147, %p148
      %p151 = scmp.ne.s32.totalorder %s136, %s150
      %p152 = scmp.eq.s32.totalorder %s30, 0
      %p153 = por %p151, %p152
      %s155 = sadd.s32 %s154, 1
      %p158 = scmp.eq.s32.totalorder %s24, 1
      %p159 = scmp.ne.s32.totalorder %s154, %s156
      %p160 = scmp.eq.s32.totalorder %s24, 0
      %p161 = por %p159, %p160
      %p162 = scmp.ne.s32.totalorder %s154, %s156
      %p163 = scmp.eq.s32.totalorder %s29, 1
      %p164 = por %p162, %p163
      %p165 = scmp.ne.s32.totalorder %s156, %s157
      %p166 = scmp.eq.s32.totalorder %s29, 0
      %p167 = por %p165, %p166
      %p168 = scmp.ne.s32.totalorder %s156, %s157
      %p169 = scmp.eq.s32.totalorder %s30, 1
      %p170 = por %p168, %p169
      %p172 = scmp.ne.s32.totalorder %s157, %s171
      %p173 = scmp.eq.s32.totalorder %s30, 0
      %p174 = por %p172, %p173
      %s176 = sadd.s32 %s175, 1
      %p179 = scmp.eq.s32.totalorder %s24, 1
      %p180 = scmp.ne.s32.totalorder %s175, %s177
      %p181 = scmp.eq.s32.totalorder %s24, 0
      %p182 = por %p180, %p181
      %p183 = scmp.ne.s32.totalorder %s175, %s177
      %p184 = scmp.eq.s32.totalorder %s29, 1
      %p185 = por %p183, %p184
      %p186 = scmp.ne.s32.totalorder %s177, %s178
      %p187 = scmp.eq.s32.totalorder %s29, 0
      %p188 = por %p186, %p187
      %p189 = scmp.ne.s32.totalorder %s177, %s178
      %p190 = scmp.eq.s32.totalorder %s30, 1
      %p191 = por %p189, %p190
      %p193 = scmp.ne.s32.totalorder %s178, %s192
      %p194 = scmp.eq.s32.totalorder %s30, 0
      %p195 = por %p193, %p194
      %s197 = sadd.s32 %s196, 1
      %p200 = scmp.eq.s32.totalorder %s24, 1
      %p201 = scmp.ne.s32.totalorder %s196, %s198
      %p202 = scmp.eq.s32.totalorder %s24, 0
      %p203 = por %p201, %p202
      %p204 = scmp.ne.s32.totalorder %s196, %s198
      %p205 = scmp.eq.s32.totalorder %s29, 1
      %p206 = por %p204, %p205
      %p207 = scmp.ne.s32.totalorder %s198, %s199
      %p208 = scmp.eq.s32.totalorder %s29, 0
      %p209 = por %p207, %p208
      %p210 = scmp.ne.s32.totalorder %s198, %s199
      %p211 = scmp.eq.s32.totalorder %s30, 1
      %p212 = por %p210, %p211
      %p214 = scmp.ne.s32.totalorder %s199, %s213
      %p215 = scmp.eq.s32.totalorder %s30, 0
      %p216 = por %p214, %p215
      %s218 = sadd.s32 %s217, 1
      %p221 = scmp.eq.s32.totalorder %s24, 1
      %p222 = scmp.ne.s32.totalorder %s217, %s219
      %p223 = scmp.eq.s32.totalorder %s24, 0
      %p224 = por %p222, %p223
      %p225 = scmp.ne.s32.totalorder %s217, %s219
      %p226 = scmp.eq.s32.totalorder %s29, 1
      %p227 = por %p225, %p226
      %p228 = scmp.ne.s32.totalorder %s219, %s220
      %p229 = scmp.eq.s32.totalorder %s29, 0
      %p230 = por %p228, %p229
      %p231 = scmp.ne.s32.totalorder %s219, %s220
      %p232 = scmp.eq.s32.totalorder %s30, 1
      %p233 = por %p231, %p232
      %p235 = scmp.ne.s32.totalorder %s220, %s234
      %p236 = scmp.eq.s32.totalorder %s30, 0
      %p237 = por %p235, %p236
      %s239 = sadd.s32 %s238, 1
      %p242 = scmp.eq.s32.totalorder %s24, 1
      %p243 = scmp.ne.s32.totalorder %s238, %s240
      %p244 = scmp.eq.s32.totalorder %s24, 0
      %p245 = por %p243, %p244
      %p246 = scmp.ne.s32.totalorder %s238, %s240
      %p247 = scmp.eq.s32.totalorder %s29, 1
      %p248 = por %p246, %p247
      %p249 = scmp.ne.s32.totalorder %s240, %s241
      %p250 = scmp.eq.s32.totalorder %s29, 0
      %p251 = por %p249, %p250
      %p252 = scmp.ne.s32.totalorder %s240, %s241
      %p253 = scmp.eq.s32.totalorder %s30, 1
      %p254 = por %p252, %p253
      %p256 = scmp.ne.s32.totalorder %s241, %s255
      %p257 = scmp.eq.s32.totalorder %s30, 0
      %p258 = por %p256, %p257
      %s260 = sadd.s32 %s259, 1
      %p263 = scmp.eq.s32.totalorder %s24, 1
      %p264 = scmp.ne.s32.totalorder %s259, %s261
      %p265 = scmp.eq.s32.totalorder %s24, 0
      %p266 = por %p264, %p265
      %p267 = scmp.ne.s32.totalorder %s259, %s261
      %p268 = scmp.eq.s32.totalorder %s29, 1
      %p269 = por %p267, %p268
      %p270 = scmp.ne.s32.totalorder %s261, %s262
      %p271 = scmp.eq.s32.totalorder %s29, 0
      %p272 = por %p270, %p271
      %p273 = scmp.ne.s32.totalorder %s261, %s262
      %p274 = scmp.eq.s32.totalorder %s30, 1
      %p275 = por %p273, %p274
      %p277 = scmp.ne.s32.totalorder %s262, %s276
      %p278 = scmp.eq.s32.totalorder %s30, 0
      %p279 = por %p277, %p278
      %s281 = sadd.s32 %s280, 1
      %p284 = scmp.eq.s32.totalorder %s24, 1
      %p285 = scmp.ne.s32.totalorder %s280, %s282
      %p286 = scmp.eq.s32.totalorder %s24, 0
      %p287 = por %p285, %p286
      %p288 = scmp.ne.s32.totalorder %s280, %s282
      %p289 = scmp.eq.s32.totalorder %s29, 1
      %p290 = por %p288, %p289
      %p291 = scmp.ne.s32.totalorder %s282, %s283
      %p292 = scmp.eq.s32.totalorder %s29, 0
      %p293 = por %p291, %p292
      %p294 = scmp.ne.s32.totalorder %s282, %s283
      %p295 = scmp.eq.s32.totalorder %s30, 1
      %p296 = por %p294, %p295
      %p298 = scmp.ne.s32.totalorder %s283, %s297
      %p299 = scmp.eq.s32.totalorder %s30, 0
      %p300 = por %p298, %p299
      %s302 = sadd.s32 %s301, 1
      %p305 = scmp.eq.s32.totalorder %s24, 1
      %p306 = scmp.ne.s32.totalorder %s301, %s303
      %p307 = scmp.eq.s32.totalorder %s24, 0
      %p308 = por %p306, %p307
      %p309 = scmp.ne.s32.totalorder %s301, %s303
      %p310 = scmp.eq.s32.totalorder %s29, 1
      %p311 = por %p309, %p310
      %p312 = scmp.ne.s32.totalorder %s303, %s304
      %p313 = scmp.eq.s32.totalorder %s29, 0
      %p314 = por %p312, %p313
      %p315 = scmp.ne.s32.totalorder %s303, %s304
      %p316 = scmp.eq.s32.totalorder %s30, 1
      %p317 = por %p315, %p316
      %p319 = scmp.ne.s32.totalorder %s304, %s318
      %p320 = scmp.eq.s32.totalorder %s30, 0
      %p321 = por %p319, %p320
      %s322 = ssub.s32 %s31, %s43
      %s323 = ssub.s32 %s32, %s39
      %s324 = sor.u32 %s322, %s323
      %p325 = scmp.eq.s32.totalorder %s324, 0
      %s327 = sadd.s32 %s326, 1
      %s328 = scalar_select %p325, %s326, %s327
      %p331 = pneg %p325
      %p332 = scmp.eq.s32.totalorder %s24, 1
      %p333 = por %p331, %p332
      %p334 = scmp.ne.s32.totalorder %s326, %s329
      %p335 = scmp.eq.s32.totalorder %s24, 0
      %p336 = por %p334, %p335
      %p337 = scmp.ne.s32.totalorder %s326, %s329
      %p338 = scmp.eq.s32.totalorder %s29, 1
      %p339 = por %p337, %p338
      %p340 = scmp.ne.s32.totalorder %s329, %s330
      %p341 = scmp.eq.s32.totalorder %s29, 0
      %p342 = por %p340, %p341
      %p343 = scmp.ne.s32.totalorder %s329, %s330
      %p344 = scmp.eq.s32.totalorder %s30, 1
      %p345 = por %p343, %p344
      %p347 = scmp.ne.s32.totalorder %s330, %s346
      %p348 = scmp.eq.s32.totalorder %s30, 0
      %p349 = por %p347, %p348
      %p350 = scmp.le.s32.totalorder 1, %s24
      %p351 = scmp.lt.s32.totalorder %s24, 3
      %p352 = pnand %p350, %p351
      %p353 = pneg %p352
      // Predicated region
      $region9: #{tpu_custom_call.1} parent=5 // pred_check
        _
      $region10: #{tpu_custom_call.1} parent=5 // pred_check_branch
        %355 = sbr.rel (%p352) target = $region12
      $region11: #{tpu_custom_call.1} parent=5 // pred_region
        %s356 = ssub.s32 %s24, 1
        // Predicated region
        $region13: #{tpu_custom_call.1} parent=11 // pred_check
          %p357 = pneg %p62
        $region14: #{tpu_custom_call.1} parent=11 // pred_check_branch
          %359 = sbr.rel (%p357) target = $region16
        $region15: #{tpu_custom_call.1} parent=11 // pred_region
          %p360 = scmp.lt.s32.totalorder %s33, 1
          %s361 = scalar_select %p360, %s33, 1
          %s362 = smul.addr %s361, 8
          %s363 = scalar_lea.vmem %s0, %s362
        $region16: #{tpu_custom_call.1} parent=11 // pred_fallthru
          _
        // Predicated region
        $region17: #{tpu_custom_call.1} parent=11 // pred_check
          %p364 = pneg %p83
        $region18: #{tpu_custom_call.1} parent=11 // pred_check_branch
          %366 = sbr.rel (%p364) target = $region20
        $region19: #{tpu_custom_call.1} parent=11 // pred_region
          _
        $region20: #{tpu_custom_call.1} parent=11 // pred_fallthru
          _
        // Predicated region
        $region21: #{tpu_custom_call.1} parent=11 // pred_check
          %p367 = pneg %p104
        $region22: #{tpu_custom_call.1} parent=11 // pred_check_branch
          %369 = sbr.rel (%p367) target = $region24
        $region23: #{tpu_custom_call.1} parent=11 // pred_region
          _
        $region24: #{tpu_custom_call.1} parent=11 // pred_fallthru
          _
        // Predicated region
        $region25: #{tpu_custom_call.1} parent=11 // pred_check
          %p370 = pneg %p125
        $region26: #{tpu_custom_call.1} parent=11 // pred_check_branch
          %372 = sbr.rel (%p370) target = $region28
        $region27: #{tpu_custom_call.1} parent=11 // pred_region
          _
        $region28: #{tpu_custom_call.1} parent=11 // pred_fallthru
          _
        // Predicated region
        $region29: #{tpu_custom_call.1} parent=11 // pred_check
          %p373 = pneg %p146
        $region30: #{tpu_custom_call.1} parent=11 // pred_check_branch
          %375 = sbr.rel (%p373) target = $region32
        $region31: #{tpu_custom_call.1} parent=11 // pred_region
          _
        $region32: #{tpu_custom_call.1} parent=11 // pred_fallthru
          _
        // Predicated region
        $region33: #{tpu_custom_call.1} parent=11 // pred_check
          %p376 = pneg %p167
        $region34: #{tpu_custom_call.1} parent=11 // pred_check_branch
          %378 = sbr.rel (%p376) target = $region36
        $region35: #{tpu_custom_call.1} parent=11 // pred_region
          _
        $region36: #{tpu_custom_call.1} parent=11 // pred_fallthru
          _
        // Predicated region
        $region37: #{tpu_custom_call.1} parent=11 // pred_check
          %p379 = pneg %p188
        $region38: #{tpu_custom_call.1} parent=11 // pred_check_branch
          %381 = sbr.rel (%p379) target = $region40
        $region39: #{tpu_custom_call.1} parent=11 // pred_region
          _
        $region40: #{tpu_custom_call.1} parent=11 // pred_fallthru
          _
        // Predicated region
        $region41: #{tpu_custom_call.1} parent=11 // pred_check
          %p382 = pneg %p209
        $region42: #{tpu_custom_call.1} parent=11 // pred_check_branch
          %384 = sbr.rel (%p382) target = $region44
        $region43: #{tpu_custom_call.1} parent=11 // pred_region
          _
        $region44: #{tpu_custom_call.1} parent=11 // pred_fallthru
          _
        // Predicated region
        $region45: #{tpu_custom_call.1} parent=11 // pred_check
          %p385 = pneg %p230
        $region46: #{tpu_custom_call.1} parent=11 // pred_check_branch
          %387 = sbr.rel (%p385) target = $region48
        $region47: #{tpu_custom_call.1} parent=11 // pred_region
          %s389 = ssub.s32 16, 16
          %390 = vsyncadd [#allocation8], %s389
          %s392 = sshll.u32 [#allocation7], 4
          %s393 = int_to_ptr.vmem [resolvable:$true] %s392
          %395 = dma.hbm_to_vmem [thread:$0]  %s8, 16, %s393, [#allocation8]
        $region48: #{tpu_custom_call.1} parent=11 // pred_fallthru
          _
        // Predicated region
        $region49: #{tpu_custom_call.1} parent=11 // pred_check
          %p396 = pneg %p251
        $region50: #{tpu_custom_call.1} parent=11 // pred_check_branch
          %398 = sbr.rel (%p396) target = $region52
        $region51: #{tpu_custom_call.1} parent=11 // pred_region
          _
        $region52: #{tpu_custom_call.1} parent=11 // pred_fallthru
          _
        // Predicated region
        $region53: #{tpu_custom_call.1} parent=11 // pred_check
          %p399 = pneg %p272
        $region54: #{tpu_custom_call.1} parent=11 // pred_check_branch
          %401 = sbr.rel (%p399) target = $region56
        $region55: #{tpu_custom_call.1} parent=11 // pred_region
          %s403 = ssub.s32 16, 16
          %404 = vsyncadd [#allocation11], %s403
          %s406 = sshll.u32 [#allocation10], 4
          %s407 = int_to_ptr.vmem [resolvable:$true] %s406
          %409 = dma.hbm_to_vmem [thread:$0]  %s10, 16, %s407, [#allocation11]
        $region56: #{tpu_custom_call.1} parent=11 // pred_fallthru
          _
        // Predicated region
        $region57: #{tpu_custom_call.1} parent=11 // pred_check
          %p410 = pneg %p293
        $region58: #{tpu_custom_call.1} parent=11 // pred_check_branch
          %412 = sbr.rel (%p410) target = $region60
        $region59: #{tpu_custom_call.1} parent=11 // pred_region
          _
        $region60: #{tpu_custom_call.1} parent=11 // pred_fallthru
          _
        // Predicated region
        $region61: #{tpu_custom_call.1} parent=11 // pred_check
          %p413 = pneg %p314
        $region62: #{tpu_custom_call.1} parent=11 // pred_check_branch
          %415 = sbr.rel (%p413) target = $region64
        $region63: #{tpu_custom_call.1} parent=11 // pred_region
          _
        $region64: #{tpu_custom_call.1} parent=11 // pred_fallthru
          _
      $region12: #{tpu_custom_call.1} parent=5 // pred_fallthru
        _
      %p416 = scmp.lt.s32.totalorder %s24, 2
      // Predicated region
      $region65: #{tpu_custom_call.1} parent=5 // pred_check
        %p417 = pneg %p416
      $region66: #{tpu_custom_call.1} parent=5 // pred_check_branch
        %419 = sbr.rel (%p417) target = $region68
      $region67: #{tpu_custom_call.1} parent=5 // pred_region
        _
      $region68: #{tpu_custom_call.1} parent=5 // pred_fallthru
        _
      %p420 = scmp.le.s32.totalorder 1, %s24
      %p421 = scmp.lt.s32.totalorder %s24, 3
      %p422 = pnand %p420, %p421
      %p423 = pneg %p422
      // Predicated region
      $region69: #{tpu_custom_call.1} parent=5 // pred_check
        _
      $region70: #{tpu_custom_call.1} parent=5 // pred_check_branch
        %425 = sbr.rel (%p422) target = $region72
      $region71: #{tpu_custom_call.1} parent=5 // pred_region
        %s426 = ssub.s32 %s24, 1
        // Predicated region
        $region73: #{tpu_custom_call.1} parent=71 // pred_check
          %p427 = pneg %p230
        $region74: #{tpu_custom_call.1} parent=71 // pred_check_branch
          %429 = sbr.rel (%p427) target = $region76
        $region75: #{tpu_custom_call.1} parent=71 // pred_region
          %430 = dma.done [#allocation8], 16
        $region76: #{tpu_custom_call.1} parent=71 // pred_fallthru
          _
        // Predicated region
        $region77: #{tpu_custom_call.1} parent=71 // pred_check
          %p431 = pneg %p272
        $region78: #{tpu_custom_call.1} parent=71 // pred_check_branch
          %433 = sbr.rel (%p431) target = $region80
        $region79: #{tpu_custom_call.1} parent=71 // pred_region
          %434 = dma.done [#allocation11], 16
        $region80: #{tpu_custom_call.1} parent=71 // pred_fallthru
          _
        %p435 = scmp.lt.s32.totalorder %s33, 1
        %s436 = scalar_select %p435, %s33, 1
        %s437 = smul.addr %s436, 8
        %s438 = scalar_lea.vmem %s0, %s437
        %p439 = pneg %p62
        %p440 = pneg %p59
        %p441 = pneg %p83
        %p442 = pneg %p80
        %p443 = pneg %p104
        %p444 = pneg %p101
        %p445 = pneg %p125
        %p446 = pneg %p122
        %p447 = pneg %p146
        %p448 = pneg %p143
        %p449 = pneg %p167
        %p450 = pneg %p164
        %p451 = pneg %p188
        %p452 = pneg %p185
        %p453 = pneg %p209
        %p454 = pneg %p206
        %p455 = pneg %p230
        %p456 = pneg %p227
        %p457 = pneg %p251
        %p458 = pneg %p248
        %p459 = pneg %p272
        %p460 = pneg %p269
        %p461 = pneg %p293
        %p462 = pneg %p290
        %p463 = pneg %p314
        %p464 = pneg %p311
        %p465 = pneg %p342
        %p466 = pneg %p339
        %s467 = sand.u32 %s329, 1
        %s468 = scalar_lea.sflag [#allocation9], %s467
        %s469 = sand.u32 %s329, 1
        %s470 = smul.addr %s469, 8
        %s471 = scalar_lea.vmem [#allocation12], %s470
        %p472 = scmp.lt.s32.totalorder %s33, 1
        %s473 = scalar_select %p472, %s33, 1
        %s474 = smul.addr %s473, 8
        %s475 = scalar_lea.vmem %s0, %s474
        %v477 = vld [vmem:[%s1] sm:$0x1]
        %v478 = vld [vmem:[%s2] sm:$0x1]
        %s479 = smul.u32 %s34, 8
        %p480 = scmp.eq.s32.totalorder %s34, 0
        // Predicated region
        $region81: #{tpu_custom_call.1} parent=71 // pred_check
          %p481 = pneg %p480
        $region82: #{tpu_custom_call.1} parent=71 // pred_check_branch
          %483 = sbr.rel (%p481) target = $region84
        $region83: #{tpu_custom_call.1} parent=71 // pred_region
          %v484 = vld [vmem:[%s475] sm:$0xff]
          %vm485 = vcmask 261120
          %v486 = vsel %vm485, %v484, 0.0
          %487 = vadd.xlane.f32.xlu0 %v486
          %v488 = vpop.xlane.xlu0 %487
          %v489 = vrcp.pop 32.0
          %v490 = vmul.f32 %v488, %v489
          %v491 = vsub.f32 %v484, %v490
          %v492 = vmul.f32 %v491, %v491
          %v493 = vsel %vm485, %v492, 0.0
          %494 = vadd.xlane.f32.xlu0 %v493
          %v495 = vpop.xlane.xlu0 %494
          %v496 = vmul.f32 %v495, %v489
          %v497 = vadd.f32 %v496, 1e-05
          %v498 = vrsqrt.pop %v497
          %v499 = vmul.f32 %v491, %v498
          %v501 = vlaneseq
          %v502 = vshrl.u32 %v501, 7
          %v503 = vsub.s32 0, %v502
          %v504 = vrot.slane %v477, %v503
          %v506 = vmul.f32 %v499, %v504
          %v508 = vlaneseq
          %v509 = vshrl.u32 %v508, 7
          %v510 = vsub.s32 0, %v509
          %v511 = vrot.slane %v478, %v510
          %v513 = vadd.f32 %v506, %v511
          %v514 = vpack.c.bf16 %v513, %v513
          %v515 = vld [vmem:[%s4] sm:$0xf]
          %v516 = vld [vmem:[%s4 + $0x4] sm:$0xf]
          %v517 = vld [vmem:[%s4 + $0x8] sm:$0xf]
          %v518 = vld [vmem:[%s4 + $0xc] sm:$0xf]
          %v523 = vunpack.c.l.b16 %v515
          %v524 = vunpack.c.l.b16 %v516
          %v525 = vunpack.c.l.b16 %v517
          %v526 = vunpack.c.l.b16 %v518
          %v527 = vpack.c.b16 %v524, %v523
          %v528 = vpack.c.b16 %v526, %v525
          %v532 = vsel %vm485, %v514, 0
          %534 = vmatprep.subr.bf16.mxu0 0
          %535 = vmatpush1.bf16.msra.mxu0 0
          %536 = vmatprep.subr.bf16.mxu0 0
          %537 = vmatpush1.bf16.msra.mxu0 0
          %538 = vmatprep.subr.bf16.mxu0 0
          %539 = vmatpush1.bf16.msra.mxu0 0
          %540 = vmatprep.subr.bf16.mxu0 0
          %541 = vmatpush1.bf16.msra.mxu0 0
          %542 = vmatprep.subr.bf16.mxu0 0
          %543 = vmatpush1.bf16.msra.mxu0 0
          %544 = vmatprep.subr.bf16.mxu0 0
          %545 = vmatpush1.bf16.msra.mxu0 0
          %546 = vmatprep.subr.bf16.mxu0 0
          %547 = vmatpush1.bf16.msra.mxu0 %v528
          %548 = vmatprep.subr.bf16.mxu0 0
          %549 = vmatpush1.bf16.msra.mxu0 %v527
          %550 = vmatprep.subr.bf16.mxu0 0
          %551 = vmatpush2.bf16.msra.mxu0 0
          %552 = vmatprep.subr.bf16.mxu0 0
          %553 = vmatpush2.bf16.msra.mxu0 0
          %554 = vmatprep.subr.bf16.mxu0 0
          %555 = vmatpush2.bf16.msra.mxu0 0
          %556 = vmatprep.subr.bf16.mxu0 0
          %557 = vmatpush2.bf16.msra.mxu0 0
          %558 = vmatprep.subr.bf16.mxu0 0
          %559 = vmatpush2.bf16.msra.mxu0 0
          %560 = vmatprep.subr.bf16.mxu0 0
          %561 = vmatpush2.bf16.msra.mxu0 0
          %562 = vmatprep.subr.bf16.mxu0 0
          %563 = vmatpush2.bf16.msra.mxu0 0
          %564 = vmatprep.subr.bf16.mxu0 0
          %565 = vmatpush2.bf16.msra.mxu0 0
          %566 = vmatprep.mubr.bf16.mxu0 0
          %567 = vmatmul.mubr.bf16.gmra.mxu0 %v532
          %v568 = vpop.f32.mrf.mxu0
          %v569 = vadd.f32 0.0, %v568
          %v570 = vpop.f32.mrf.mxu0
          %v571 = vpop.f32.mrf.mxu0
          %v572 = vpop.f32.mrf.mxu0
          %573 = vdwg.mxu0
          %575 = vrot.lane.b32.xlu0 %v569, 120
          %v576 = vpop.permute.xlu0 %575
          %578 = vrot.lane.b32.xlu0 %v569, 112
          %v579 = vpop.permute.xlu0 %578
          %581 = vrot.lane.b32.xlu0 %v569, 104
          %v582 = vpop.permute.xlu0 %581
          %v584 = vcombine.low %v569, %v579
          %v585 = vcombine.high %v569, %v579
          %v587 = vunpack.c.l.s4 1983009808
          %v588 = vunpack.c.0.s8 %v587
          %v589 = vlaneseq
          %v590 = vshrl.u32 %v589, 7
          %v591 = vsub.s32 %v588, %v590
          %v592 = vrot.slane %v584, %v591
          %v594 = vunpack.c.l.s4 1983009808
          %v595 = vunpack.c.0.s8 %v594
          %v596 = vlaneseq
          %v597 = vshrl.u32 %v596, 7
          %v598 = vsub.s32 %v595, %v597
          %v599 = vrot.slane %v585, %v598
          %v600 = vcombine.low %v576, %v582
          %v601 = vcombine.high %v576, %v582
          %v603 = vunpack.c.l.s4 1983009808
          %v604 = vunpack.c.0.s8 %v603
          %v605 = vlaneseq
          %v606 = vshrl.u32 %v605, 7
          %v607 = vsub.s32 %v604, %v606
          %v608 = vrot.slane %v600, %v607
          %v610 = vunpack.c.l.s4 1983009808
          %v611 = vunpack.c.0.s8 %v610
          %v612 = vlaneseq
          %v613 = vshrl.u32 %v612, 7
          %v614 = vsub.s32 %v611, %v613
          %v615 = vrot.slane %v601, %v614
          %v616 = vcombine.low %v592, %v608
          %v617 = vcombine.high %v592, %v608
          %v619 = vunpack.c.l.s4 1934713408
          %v620 = vunpack.c.0.s8 %v619
          %v621 = vlaneseq
          %v622 = vshrl.u32 %v621, 7
          %v623 = vsub.s32 %v620, %v622
          %v624 = vrot.slane %v616, %v623
          %v626 = vunpack.c.l.s4 1934713408
          %v627 = vunpack.c.0.s8 %v626
          %v628 = vlaneseq
          %v629 = vshrl.u32 %v628, 7
          %v630 = vsub.s32 %v627, %v629
          %v631 = vrot.slane %v617, %v630
          %v632 = vcombine.low %v599, %v615
          %v633 = vcombine.high %v599, %v615
          %v635 = vunpack.c.l.s4 1934713408
          %v636 = vunpack.c.0.s8 %v635
          %v637 = vlaneseq
          %v638 = vshrl.u32 %v637, 7
          %v639 = vsub.s32 %v636, %v638
          %v640 = vrot.slane %v632, %v639
          %v642 = vunpack.c.l.s4 1934713408
          %v643 = vunpack.c.0.s8 %v642
          %v644 = vlaneseq
          %v645 = vshrl.u32 %v644, 7
          %v646 = vsub.s32 %v643, %v645
          %v647 = vrot.slane %v633, %v646
          %v648 = vcombine.high %v624, 0.0
          %v649 = vcombine.high %v631, 0.0
          %v650 = vcombine.high %v640, 0.0
          %v651 = vcombine.high %v647, 0.0
          %v652 = vcombine.low %v624, %v631
          %v654 = vunpack.c.l.s4 1983009808
          %v655 = vunpack.c.0.s8 %v654
          %v656 = vlaneseq
          %v657 = vshrl.u32 %v656, 7
          %v658 = vsub.s32 %v655, %v657
          %v659 = vrot.slane %v652, %v658
          %v660 = vcombine.low %v648, %v649
          %v662 = vunpack.c.l.s4 1983009808
          %v663 = vunpack.c.0.s8 %v662
          %v664 = vlaneseq
          %v665 = vshrl.u32 %v664, 7
          %v666 = vsub.s32 %v663, %v665
          %v667 = vrot.slane %v660, %v666
          %v668 = vcombine.low %v640, %v647
          %v670 = vunpack.c.l.s4 1983009808
          %v671 = vunpack.c.0.s8 %v670
          %v672 = vlaneseq
          %v673 = vshrl.u32 %v672, 7
          %v674 = vsub.s32 %v671, %v673
          %v675 = vrot.slane %v668, %v674
          %v676 = vcombine.low %v650, %v651
          %v678 = vunpack.c.l.s4 1983009808
          %v679 = vunpack.c.0.s8 %v678
          %v680 = vlaneseq
          %v681 = vshrl.u32 %v680, 7
          %v682 = vsub.s32 %v679, %v681
          %v683 = vrot.slane %v676, %v682
          %v684 = vcombine.low %v659, %v667
          %v685 = vcombine.high %v659, %v667
          %v687 = vunpack.c.l.s4 1934713408
          %v688 = vunpack.c.0.s8 %v687
          %v689 = vlaneseq
          %v690 = vshrl.u32 %v689, 7
          %v691 = vsub.s32 %v688, %v690
          %v692 = vrot.slane %v684, %v691
          %v694 = vunpack.c.l.s4 1934713408
          %v695 = vunpack.c.0.s8 %v694
          %v696 = vlaneseq
          %v697 = vshrl.u32 %v696, 7
          %v698 = vsub.s32 %v695, %v697
          %v699 = vrot.slane %v685, %v698
          %v700 = vcombine.low %v675, %v683
          %v701 = vcombine.high %v675, %v683
          %v703 = vunpack.c.l.s4 1934713408
          %v704 = vunpack.c.0.s8 %v703
          %v705 = vlaneseq
          %v706 = vshrl.u32 %v705, 7
          %v707 = vsub.s32 %v704, %v706
          %v708 = vrot.slane %v700, %v707
          %v710 = vunpack.c.l.s4 1934713408
          %v711 = vunpack.c.0.s8 %v710
          %v712 = vlaneseq
          %v713 = vshrl.u32 %v712, 7
          %v714 = vsub.s32 %v711, %v713
          %v715 = vrot.slane %v701, %v714
          %v716 = vcombine.low %v692, %v708
          %v717 = vcombine.high %v692, %v708
          %v718 = vcombine.low %v699, %v715
          %v719 = vcombine.high %v699, %v715
          %720 = vrot.lane.b32.xlu0 %v569, 96
          %v721 = vpop.permute.xlu0 %720
          %722 = vrot.lane.b32.xlu0 %v576, 96
          %v723 = vpop.permute.xlu0 %722
          %724 = vrot.lane.b32.xlu0 %v579, 96
          %v725 = vpop.permute.xlu0 %724
          %726 = vrot.lane.b32.xlu0 %v582, 96
          %v727 = vpop.permute.xlu0 %726
          %v732 = vcombine.low %v721, %v725
          %v733 = vcombine.high %v721, %v725
          %v735 = vunpack.c.l.s4 1983009808
          %v736 = vunpack.c.0.s8 %v735
          %v737 = vlaneseq
          %v738 = vshrl.u32 %v737, 7
          %v739 = vsub.s32 %v736, %v738
          %v740 = vrot.slane %v732, %v739
          %v742 = vunpack.c.l.s4 1983009808
          %v743 = vunpack.c.0.s8 %v742
          %v744 = vlaneseq
          %v745 = vshrl.u32 %v744, 7
          %v746 = vsub.s32 %v743, %v745
          %v747 = vrot.slane %v733, %v746
          %v748 = vcombine.low %v723, %v727
          %v749 = vcombine.high %v723, %v727
          %v751 = vunpack.c.l.s4 1983009808
          %v752 = vunpack.c.0.s8 %v751
          %v753 = vlaneseq
          %v754 = vshrl.u32 %v753, 7
          %v755 = vsub.s32 %v752, %v754
          %v756 = vrot.slane %v748, %v755
          %v758 = vunpack.c.l.s4 1983009808
          %v759 = vunpack.c.0.s8 %v758
          %v760 = vlaneseq
          %v761 = vshrl.u32 %v760, 7
          %v762 = vsub.s32 %v759, %v761
          %v763 = vrot.slane %v749, %v762
          %v764 = vcombine.low %v740, %v756
          %v765 = vcombine.high %v740, %v756
          %v767 = vunpack.c.l.s4 1934713408
          %v768 = vunpack.c.0.s8 %v767
          %v769 = vlaneseq
          %v770 = vshrl.u32 %v769, 7
          %v771 = vsub.s32 %v768, %v770
          %v772 = vrot.slane %v764, %v771
          %v774 = vunpack.c.l.s4 1934713408
          %v775 = vunpack.c.0.s8 %v774
          %v776 = vlaneseq
          %v777 = vshrl.u32 %v776, 7
          %v778 = vsub.s32 %v775, %v777
          %v779 = vrot.slane %v765, %v778
          %v780 = vcombine.low %v747, %v763
          %v781 = vcombine.high %v747, %v763
          %v783 = vunpack.c.l.s4 1934713408
          %v784 = vunpack.c.0.s8 %v783
          %v785 = vlaneseq
          %v786 = vshrl.u32 %v785, 7
          %v787 = vsub.s32 %v784, %v786
          %v788 = vrot.slane %v780, %v787
          %v790 = vunpack.c.l.s4 1934713408
          %v791 = vunpack.c.0.s8 %v790
          %v792 = vlaneseq
          %v793 = vshrl.u32 %v792, 7
          %v794 = vsub.s32 %v791, %v793
          %v795 = vrot.slane %v781, %v794
          %v796 = vcombine.high %v772, 0.0
          %v797 = vcombine.high %v779, 0.0
          %v798 = vcombine.high %v788, 0.0
          %v799 = vcombine.high %v795, 0.0
          %v800 = vcombine.low %v772, %v779
          %v802 = vunpack.c.l.s4 1983009808
          %v803 = vunpack.c.0.s8 %v802
          %v804 = vlaneseq
          %v805 = vshrl.u32 %v804, 7
          %v806 = vsub.s32 %v803, %v805
          %v807 = vrot.slane %v800, %v806
          %v808 = vcombine.low %v796, %v797
          %v810 = vunpack.c.l.s4 1983009808
          %v811 = vunpack.c.0.s8 %v810
          %v812 = vlaneseq
          %v813 = vshrl.u32 %v812, 7
          %v814 = vsub.s32 %v811, %v813
          %v815 = vrot.slane %v808, %v814
          %v816 = vcombine.low %v788, %v795
          %v818 = vunpack.c.l.s4 1983009808
          %v819 = vunpack.c.0.s8 %v818
          %v820 = vlaneseq
          %v821 = vshrl.u32 %v820, 7
          %v822 = vsub.s32 %v819, %v821
          %v823 = vrot.slane %v816, %v822
          %v824 = vcombine.low %v798, %v799
          %v826 = vunpack.c.l.s4 1983009808
          %v827 = vunpack.c.0.s8 %v826
          %v828 = vlaneseq
          %v829 = vshrl.u32 %v828, 7
          %v830 = vsub.s32 %v827, %v829
          %v831 = vrot.slane %v824, %v830
          %v832 = vcombine.low %v807, %v815
          %v833 = vcombine.high %v807, %v815
          %v835 = vunpack.c.l.s4 1934713408
          %v836 = vunpack.c.0.s8 %v835
          %v837 = vlaneseq
          %v838 = vshrl.u32 %v837, 7
          %v839 = vsub.s32 %v836, %v838
          %v840 = vrot.slane %v832, %v839
          %v842 = vunpack.c.l.s4 1934713408
          %v843 = vunpack.c.0.s8 %v842
          %v844 = vlaneseq
          %v845 = vshrl.u32 %v844, 7
          %v846 = vsub.s32 %v843, %v845
          %v847 = vrot.slane %v833, %v846
          %v848 = vcombine.low %v823, %v831
          %v849 = vcombine.high %v823, %v831
          %v851 = vunpack.c.l.s4 1934713408
          %v852 = vunpack.c.0.s8 %v851
          %v853 = vlaneseq
          %v854 = vshrl.u32 %v853, 7
          %v855 = vsub.s32 %v852, %v854
          %v856 = vrot.slane %v848, %v855
          %v858 = vunpack.c.l.s4 1934713408
          %v859 = vunpack.c.0.s8 %v858
          %v860 = vlaneseq
          %v861 = vshrl.u32 %v860, 7
          %v862 = vsub.s32 %v859, %v861
          %v863 = vrot.slane %v849, %v862
          %v864 = vcombine.low %v840, %v856
          %v865 = vcombine.high %v840, %v856
          %v866 = vcombine.low %v847, %v863
          %v867 = vcombine.high %v847, %v863
          %v868 = vpack.c.bf16 %v716, %v716
          %v869 = vpack.c.bf16 %v717, %v717
          %v870 = vpack.c.bf16 %v718, %v718
          %v871 = vpack.c.bf16 %v719, %v719
          %vm872 = vcmask 60416
          %873 = vst.msk [vmem:[#allocation2] sm:$0xf] %vm872, %v868
          %874 = vst.msk [vmem:[#allocation2 + $0x4] sm:$0xf] %vm872, %v869
          %875 = vst.msk [vmem:[#allocation2 + $0x8] sm:$0xf] %vm872, %v870
          %876 = vst.msk [vmem:[#allocation2 + $0xc] sm:$0xf] %vm872, %v871
          %v877 = vpack.c.bf16 %v864, %v864
          %v878 = vpack.c.bf16 %v865, %v865
          %v879 = vpack.c.bf16 %v866, %v866
          %v880 = vpack.c.bf16 %v867, %v867
          %881 = vst.msk [vmem:[#allocation3] sm:$0xf] %vm872, %v877
          %882 = vst.msk [vmem:[#allocation3 + $0x4] sm:$0xf] %vm872, %v878
          %883 = vst.msk [vmem:[#allocation3 + $0x8] sm:$0xf] %vm872, %v879
          %884 = vst.msk [vmem:[#allocation3 + $0xc] sm:$0xf] %vm872, %v880
        $region84: #{tpu_custom_call.1} parent=71 // pred_fallthru
          _
        %s885 = scalar_lea.vmem %s475, %s479
        %v886 = vld [vmem:[%s885] sm:$0xff]
        %vm887 = vcmask 261120
        %v888 = vsel %vm887, %v886, 0.0
        %889 = vadd.xlane.f32.xlu0 %v888
        %v890 = vpop.xlane.xlu0 %889
        %v891 = vrcp.pop 32.0
        %v892 = vmul.f32 %v890, %v891
        %v893 = vsub.f32 %v886, %v892
        %v894 = vmul.f32 %v893, %v893
        %v895 = vsel %vm887, %v894, 0.0
        %896 = vadd.xlane.f32.xlu0 %v895
        %v897 = vpop.xlane.xlu0 %896
        %v898 = vmul.f32 %v897, %v891
        %v899 = vadd.f32 %v898, 1e-05
        %v900 = vrsqrt.pop %v899
        %v901 = vmul.f32 %v893, %v900
        %v903 = vlaneseq
        %v904 = vshrl.u32 %v903, 7
        %v905 = vsub.s32 0, %v904
        %v906 = vrot.slane %v477, %v905
        %v908 = vmul.f32 %v901, %v906
        %v910 = vlaneseq
        %v911 = vshrl.u32 %v910, 7
        %v912 = vsub.s32 0, %v911
        %v913 = vrot.slane %v478, %v912
        %v915 = vadd.f32 %v908, %v913
        %v916 = vpack.c.bf16 %v915, %v915
        %v917 = vld [vmem:[%s3] sm:$0xf]
        %v918 = vld [vmem:[%s3 + $0x4] sm:$0xf]
        %v919 = vld [vmem:[%s3 + $0x8] sm:$0xf]
        %v920 = vld [vmem:[%s3 + $0xc] sm:$0xf]
        %v925 = vunpack.c.l.b16 %v917
        %v926 = vunpack.c.l.b16 %v918
        %v927 = vunpack.c.l.b16 %v919
        %v928 = vunpack.c.l.b16 %v920
        %v929 = vpack.c.b16 %v926, %v925
        %v930 = vpack.c.b16 %v928, %v927
        %v934 = vsel %vm887, %v916, 0
        %936 = vmatprep.subr.bf16.mxu0 0
        %937 = vmatpush1.bf16.msra.mxu0 0
        %938 = vmatprep.subr.bf16.mxu0 0
        %939 = vmatpush1.bf16.msra.mxu0 0
        %940 = vmatprep.subr.bf16.mxu0 0
        %941 = vmatpush1.bf16.msra.mxu0 0
        %942 = vmatprep.subr.bf16.mxu0 0
        %943 = vmatpush1.bf16.msra.mxu0 0
        %944 = vmatprep.subr.bf16.mxu0 0
        %945 = vmatpush1.bf16.msra.mxu0 0
        %946 = vmatprep.subr.bf16.mxu0 0
        %947 = vmatpush1.bf16.msra.mxu0 0
        %948 = vmatprep.subr.bf16.mxu0 0
        %949 = vmatpush1.bf16.msra.mxu0 %v930
        %950 = vmatprep.subr.bf16.mxu0 0
        %951 = vmatpush1.bf16.msra.mxu0 %v929
        %952 = vmatprep.subr.bf16.mxu0 0
        %953 = vmatpush2.bf16.msra.mxu0 0
        %954 = vmatprep.subr.bf16.mxu0 0
        %955 = vmatpush2.bf16.msra.mxu0 0
        %956 = vmatprep.subr.bf16.mxu0 0
        %957 = vmatpush2.bf16.msra.mxu0 0
        %958 = vmatprep.subr.bf16.mxu0 0
        %959 = vmatpush2.bf16.msra.mxu0 0
        %960 = vmatprep.subr.bf16.mxu0 0
        %961 = vmatpush2.bf16.msra.mxu0 0
        %962 = vmatprep.subr.bf16.mxu0 0
        %963 = vmatpush2.bf16.msra.mxu0 0
        %964 = vmatprep.subr.bf16.mxu0 0
        %965 = vmatpush2.bf16.msra.mxu0 0
        %966 = vmatprep.subr.bf16.mxu0 0
        %967 = vmatpush2.bf16.msra.mxu0 0
        %968 = vmatprep.mubr.bf16.mxu0 0
        %969 = vmatmul.mubr.bf16.gmra.mxu0 %v934
        %v970 = vpop.f32.mrf.mxu0
        %v971 = vadd.f32 0.0, %v970
        %v972 = vpop.f32.mrf.mxu0
        %v973 = vpop.f32.mrf.mxu0
        %v974 = vpop.f32.mrf.mxu0
        %975 = vdwg.mxu0
        %v976 = vmul.f32 %v971, 0.35355338
        %978 = vrot.lane.b32.xlu0 %v976, 120
        %v979 = vpop.permute.xlu0 %978
        %981 = vrot.lane.b32.xlu0 %v976, 112
        %v982 = vpop.permute.xlu0 %981
        %984 = vrot.lane.b32.xlu0 %v976, 104
        %v985 = vpop.permute.xlu0 %984
        %v987 = vcombine.low %v976, %v982
        %v988 = vcombine.high %v976, %v982
        %v990 = vunpack.c.l.s4 1983009808
        %v991 = vunpack.c.0.s8 %v990
        %v992 = vlaneseq
        %v993 = vshrl.u32 %v992, 7
        %v994 = vsub.s32 %v991, %v993
        %v995 = vrot.slane %v987, %v994
        %v997 = vunpack.c.l.s4 1983009808
        %v998 = vunpack.c.0.s8 %v997
        %v999 = vlaneseq
        %v1000 = vshrl.u32 %v999, 7
        %v1001 = vsub.s32 %v998, %v1000
        %v1002 = vrot.slane %v988, %v1001
        %v1003 = vcombine.low %v979, %v985
        %v1004 = vcombine.high %v979, %v985
        %v1006 = vunpack.c.l.s4 1983009808
        %v1007 = vunpack.c.0.s8 %v1006
        %v1008 = vlaneseq
        %v1009 = vshrl.u32 %v1008, 7
        %v1010 = vsub.s32 %v1007, %v1009
        %v1011 = vrot.slane %v1003, %v1010
        %v1013 = vunpack.c.l.s4 1983009808
        %v1014 = vunpack.c.0.s8 %v1013
        %v1015 = vlaneseq
        %v1016 = vshrl.u32 %v1015, 7
        %v1017 = vsub.s32 %v1014, %v1016
        %v1018 = vrot.slane %v1004, %v1017
        %v1019 = vcombine.low %v995, %v1011
        %v1020 = vcombine.high %v995, %v1011
        %v1022 = vunpack.c.l.s4 1934713408
        %v1023 = vunpack.c.0.s8 %v1022
        %v1024 = vlaneseq
        %v1025 = vshrl.u32 %v1024, 7
        %v1026 = vsub.s32 %v1023, %v1025
        %v1027 = vrot.slane %v1019, %v1026
        %v1029 = vunpack.c.l.s4 1934713408
        %v1030 = vunpack.c.0.s8 %v1029
        %v1031 = vlaneseq
        %v1032 = vshrl.u32 %v1031, 7
        %v1033 = vsub.s32 %v1030, %v1032
        %v1034 = vrot.slane %v1020, %v1033
        %v1035 = vcombine.low %v1002, %v1018
        %v1036 = vcombine.high %v1002, %v1018
        %v1038 = vunpack.c.l.s4 1934713408
        %v1039 = vunpack.c.0.s8 %v1038
        %v1040 = vlaneseq
        %v1041 = vshrl.u32 %v1040, 7
        %v1042 = vsub.s32 %v1039, %v1041
        %v1043 = vrot.slane %v1035, %v1042
        %v1045 = vunpack.c.l.s4 1934713408
        %v1046 = vunpack.c.0.s8 %v1045
        %v1047 = vlaneseq
        %v1048 = vshrl.u32 %v1047, 7
        %v1049 = vsub.s32 %v1046, %v1048
        %v1050 = vrot.slane %v1036, %v1049
        %v1051 = vcombine.high %v1027, 0.0
        %v1052 = vcombine.high %v1034, 0.0
        %v1053 = vcombine.high %v1043, 0.0
        %v1054 = vcombine.high %v1050, 0.0
        %v1055 = vcombine.low %v1027, %v1034
        %v1057 = vunpack.c.l.s4 1983009808
        %v1058 = vunpack.c.0.s8 %v1057
        %v1059 = vlaneseq
        %v1060 = vshrl.u32 %v1059, 7
        %v1061 = vsub.s32 %v1058, %v1060
        %v1062 = vrot.slane %v1055, %v1061
        %v1063 = vcombine.low %v1051, %v1052
        %v1065 = vunpack.c.l.s4 1983009808
        %v1066 = vunpack.c.0.s8 %v1065
        %v1067 = vlaneseq
        %v1068 = vshrl.u32 %v1067, 7
        %v1069 = vsub.s32 %v1066, %v1068
        %v1070 = vrot.slane %v1063, %v1069
        %v1071 = vcombine.low %v1043, %v1050
        %v1073 = vunpack.c.l.s4 1983009808
        %v1074 = vunpack.c.0.s8 %v1073
        %v1075 = vlaneseq
        %v1076 = vshrl.u32 %v1075, 7
        %v1077 = vsub.s32 %v1074, %v1076
        %v1078 = vrot.slane %v1071, %v1077
        %v1079 = vcombine.low %v1053, %v1054
        %v1081 = vunpack.c.l.s4 1983009808
        %v1082 = vunpack.c.0.s8 %v1081
        %v1083 = vlaneseq
        %v1084 = vshrl.u32 %v1083, 7
        %v1085 = vsub.s32 %v1082, %v1084
        %v1086 = vrot.slane %v1079, %v1085
        %v1087 = vcombine.low %v1062, %v1070
        %v1088 = vcombine.high %v1062, %v1070
        %v1090 = vunpack.c.l.s4 1934713408
        %v1091 = vunpack.c.0.s8 %v1090
        %v1092 = vlaneseq
        %v1093 = vshrl.u32 %v1092, 7
        %v1094 = vsub.s32 %v1091, %v1093
        %v1095 = vrot.slane %v1087, %v1094
        %v1097 = vunpack.c.l.s4 1934713408
        %v1098 = vunpack.c.0.s8 %v1097
        %v1099 = vlaneseq
        %v1100 = vshrl.u32 %v1099, 7
        %v1101 = vsub.s32 %v1098, %v1100
        %v1102 = vrot.slane %v1088, %v1101
        %v1103 = vcombine.low %v1078, %v1086
        %v1104 = vcombine.high %v1078, %v1086
        %v1106 = vunpack.c.l.s4 1934713408
        %v1107 = vunpack.c.0.s8 %v1106
        %v1108 = vlaneseq
        %v1109 = vshrl.u32 %v1108, 7
        %v1110 = vsub.s32 %v1107, %v1109
        %v1111 = vrot.slane %v1103, %v1110
        %v1113 = vunpack.c.l.s4 1934713408
        %v1114 = vunpack.c.0.s8 %v1113
        %v1115 = vlaneseq
        %v1116 = vshrl.u32 %v1115, 7
        %v1117 = vsub.s32 %v1114, %v1116
        %v1118 = vrot.slane %v1104, %v1117
        %v1119 = vcombine.low %v1095, %v1111
        %v1120 = vcombine.high %v1095, %v1111
        %v1121 = vcombine.low %v1102, %v1118
        %v1122 = vcombine.high %v1102, %v1118
        %v1123 = vpack.c.bf16 %v1119, %v1119
        %v1124 = vpack.c.bf16 %v1120, %v1120
        %v1125 = vpack.c.bf16 %v1121, %v1121
        %v1126 = vpack.c.bf16 %v1122, %v1122
        %vm1127 = vcmask 7168
        %1128 = vst.msk [vmem:[#allocation4] sm:$0xff] %vm1127, -1e+30
        %1129 = vst.msk [vmem:[#allocation4 + $0x8] sm:$0xff] %vm1127, -1e+30
        %1130 = vst.msk [vmem:[#allocation4 + $0x10] sm:$0xff] %vm1127, -1e+30
        %1131 = vst.msk [vmem:[#allocation4 + $0x18] sm:$0xff] %vm1127, -1e+30
        %1132 = vst.msk [vmem:[#allocation5] sm:$0xff] %vm1127, 0.0
        %1133 = vst.msk [vmem:[#allocation5 + $0x8] sm:$0xff] %vm1127, 0.0
        %1134 = vst.msk [vmem:[#allocation5 + $0x10] sm:$0xff] %vm1127, 0.0
        %1135 = vst.msk [vmem:[#allocation5 + $0x18] sm:$0xff] %vm1127, 0.0
        %vm1136 = vcmask 64512
        %1137 = vst.msk [vmem:[#allocation6] sm:$0xff] %vm1136, 0.0
        %1138 = vst.msk [vmem:[#allocation6 + $0x8] sm:$0xff] %vm1136, 0.0
        %1139 = vst.msk [vmem:[#allocation6 + $0x10] sm:$0xff] %vm1136, 0.0
        %1140 = vst.msk [vmem:[#allocation6 + $0x18] sm:$0xff] %vm1136, 0.0
        %v1141 = vlaneseq
        %v1142 = vshrl.u32 %v1141, 7
        %v1143 = vstv %s479
        %v1144 = vadd.s32 %v1143, %v1142
        %v1145 = vlaneseq
        %v1146 = vand.u32 %v1145, 127
        %v1147 = vld [vmem:[#allocation2] sm:$0xf]
        %v1148 = vld [vmem:[#allocation2 + $0x4] sm:$0xf]
        %v1149 = vld [vmem:[#allocation2 + $0x8] sm:$0xf]
        %v1150 = vld [vmem:[#allocation2 + $0xc] sm:$0xf]
        %v1151 = vld [vmem:[#allocation3] sm:$0xf]
        %v1152 = vld [vmem:[#allocation3 + $0x4] sm:$0xf]
        %v1153 = vld [vmem:[#allocation3 + $0x8] sm:$0xf]
        %v1154 = vld [vmem:[#allocation3 + $0xc] sm:$0xf]
        %v1156 = vsel %vm1136, %v1123, 0
        %v1159 = vsel %vm1136, %v1147, 0
        %1161 = vmatprep.subr.bf16.mxu0 0
        %1162 = vmatpush1.bf16.xpose.msra.mxu0 0
        %1163 = vmatprep.subr.bf16.mxu0 0
        %1164 = vmatpush1.bf16.xpose.msra.mxu0 0
        %1165 = vmatprep.subr.bf16.mxu0 0
        %1166 = vmatpush1.bf16.xpose.msra.mxu0 0
        %1167 = vmatprep.subr.bf16.mxu0 0
        %1168 = vmatpush1.bf16.xpose.msra.mxu0 0
        %1169 = vmatprep.subr.bf16.mxu0 0
        %1170 = vmatpush1.bf16.xpose.msra.mxu0 0
        %1171 = vmatprep.subr.bf16.mxu0 0
        %1172 = vmatpush1.bf16.xpose.msra.mxu0 0
        %1173 = vmatprep.subr.bf16.mxu0 0
        %1174 = vmatpush1.bf16.xpose.msra.mxu0 0
        %1175 = vmatprep.subr.bf16.mxu0 0
        %1176 = vmatpush1.bf16.xpose.msra.mxu0 %v1159
        %1177 = vmatprep.subr.bf16.mxu0 0
        %1178 = vmatpush2.bf16.xpose.msra.mxu0 0
        %1179 = vmatprep.subr.bf16.mxu0 0
        %1180 = vmatpush2.bf16.xpose.msra.mxu0 0
        %1181 = vmatprep.subr.bf16.mxu0 0
        %1182 = vmatpush2.bf16.xpose.msra.mxu0 0
        %1183 = vmatprep.subr.bf16.mxu0 0
        %1184 = vmatpush2.bf16.xpose.msra.mxu0 0
        %1185 = vmatprep.subr.bf16.mxu0 0
        %1186 = vmatpush2.bf16.xpose.msra.mxu0 0
        %1187 = vmatprep.subr.bf16.mxu0 0
        %1188 = vmatpush2.bf16.xpose.msra.mxu0 0
        %1189 = vmatprep.subr.bf16.mxu0 0
        %1190 = vmatpush2.bf16.xpose.msra.mxu0 0
        %1191 = vmatprep.subr.bf16.mxu0 0
        %1192 = vmatpush2.bf16.xpose.msra.mxu0 0
        %1193 = vmatprep.mubr.bf16.mxu0 0
        %1194 = vmatmul.mubr.bf16.gmra.mxu0 %v1156
        %v1195 = vpop.f32.mrf.mxu0
        %v1196 = vadd.f32 0.0, %v1195
        %v1197 = vpop.f32.mrf.mxu0
        %v1198 = vpop.f32.mrf.mxu0
        %v1199 = vpop.f32.mrf.mxu0
        %1200 = vdwg.mxu0
        %v1202 = vsel %vm1136, %v1124, 0
        %v1205 = vsel %vm1136, %v1148, 0
        %1207 = vmatprep.subr.bf16.mxu0 0
        %1208 = vmatpush1.bf16.xpose.msra.mxu0 0
        %1209 = vmatprep.subr.bf16.mxu0 0
        %1210 = vmatpush1.bf16.xpose.msra.mxu0 0
        %1211 = vmatprep.subr.bf16.mxu0 0
        %1212 = vmatpush1.bf16.xpose.msra.mxu0 0
        %1213 = vmatprep.subr.bf16.mxu0 0
        %1214 = vmatpush1.bf16.xpose.msra.mxu0 0
        %1215 = vmatprep.subr.bf16.mxu0 0
        %1216 = vmatpush1.bf16.xpose.msra.mxu0 0
        %1217 = vmatprep.subr.bf16.mxu0 0
        %1218 = vmatpush1.bf16.xpose.msra.mxu0 0
        %1219 = vmatprep.subr.bf16.mxu0 0
        %1220 = vmatpush1.bf16.xpose.msra.mxu0 0
        %1221 = vmatprep.subr.bf16.mxu0 0
        %1222 = vmatpush1.bf16.xpose.msra.mxu0 %v1205
        %1223 = vmatprep.subr.bf16.mxu0 0
        %1224 = vmatpush2.bf16.xpose.msra.mxu0 0
        %1225 = vmatprep.subr.bf16.mxu0 0
        %1226 = vmatpush2.bf16.xpose.msra.mxu0 0
        %1227 = vmatprep.subr.bf16.mxu0 0
        %1228 = vmatpush2.bf16.xpose.msra.mxu0 0
        %1229 = vmatprep.subr.bf16.mxu0 0
        %1230 = vmatpush2.bf16.xpose.msra.mxu0 0
        %1231 = vmatprep.subr.bf16.mxu0 0
        %1232 = vmatpush2.bf16.xpose.msra.mxu0 0
        %1233 = vmatprep.subr.bf16.mxu0 0
        %1234 = vmatpush2.bf16.xpose.msra.mxu0 0
        %1235 = vmatprep.subr.bf16.mxu0 0
        %1236 = vmatpush2.bf16.xpose.msra.mxu0 0
        %1237 = vmatprep.subr.bf16.mxu0 0
        %1238 = vmatpush2.bf16.xpose.msra.mxu0 0
        %1239 = vmatprep.mubr.bf16.mxu0 0
        %1240 = vmatmul.mubr.bf16.gmra.mxu0 %v1202
        %v1241 = vpop.f32.mrf.mxu0
        %v1242 = vadd.f32 0.0, %v1241
        %v1243 = vpop.f32.mrf.mxu0
        %v1244 = vpop.f32.mrf.mxu0
        %v1245 = vpop.f32.mrf.mxu0
        %1246 = vdwg.mxu0
        %v1248 = vsel %vm1136, %v1125, 0
        %v1251 = vsel %vm1136, %v1149, 0
        %1253 = vmatprep.subr.bf16.mxu0 0
        %1254 = vmatpush1.bf16.xpose.msra.mxu0 0
        %1255 = vmatprep.subr.bf16.mxu0 0
        %1256 = vmatpush1.bf16.xpose.msra.mxu0 0
        %1257 = vmatprep.subr.bf16.mxu0 0
        %1258 = vmatpush1.bf16.xpose.msra.mxu0 0
        %1259 = vmatprep.subr.bf16.mxu0 0
        %1260 = vmatpush1.bf16.xpose.msra.mxu0 0
        %1261 = vmatprep.subr.bf16.mxu0 0
        %1262 = vmatpush1.bf16.xpose.msra.mxu0 0
        %1263 = vmatprep.subr.bf16.mxu0 0
        %1264 = vmatpush1.bf16.xpose.msra.mxu0 0
        %1265 = vmatprep.subr.bf16.mxu0 0
        %1266 = vmatpush1.bf16.xpose.msra.mxu0 0
        %1267 = vmatprep.subr.bf16.mxu0 0
        %1268 = vmatpush1.bf16.xpose.msra.mxu0 %v1251
        %1269 = vmatprep.subr.bf16.mxu0 0
        %1270 = vmatpush2.bf16.xpose.msra.mxu0 0
        %1271 = vmatprep.subr.bf16.mxu0 0
        %1272 = vmatpush2.bf16.xpose.msra.mxu0 0
        %1273 = vmatprep.subr.bf16.mxu0 0
        %1274 = vmatpush2.bf16.xpose.msra.mxu0 0
        %1275 = vmatprep.subr.bf16.mxu0 0
        %1276 = vmatpush2.bf16.xpose.msra.mxu0 0
        %1277 = vmatprep.subr.bf16.mxu0 0
        %1278 = vmatpush2.bf16.xpose.msra.mxu0 0
        %1279 = vmatprep.subr.bf16.mxu0 0
        %1280 = vmatpush2.bf16.xpose.msra.mxu0 0
        %1281 = vmatprep.subr.bf16.mxu0 0
        %1282 = vmatpush2.bf16.xpose.msra.mxu0 0
        %1283 = vmatprep.subr.bf16.mxu0 0
        %1284 = vmatpush2.bf16.xpose.msra.mxu0 0
        %1285 = vmatprep.mubr.bf16.mxu0 0
        %1286 = vmatmul.mubr.bf16.gmra.mxu0 %v1248
        %v1287 = vpop.f32.mrf.mxu0
        %v1288 = vadd.f32 0.0, %v1287
        %v1289 = vpop.f32.mrf.mxu0
        %v1290 = vpop.f32.mrf.mxu0
        %v1291 = vpop.f32.mrf.mxu0
        %1292 = vdwg.mxu0
        %v1294 = vsel %vm1136, %v1126, 0
        %v1297 = vsel %vm1136, %v1150, 0
        %1299 = vmatprep.subr.bf16.mxu0 0
        %1300 = vmatpush1.bf16.xpose.msra.mxu0 0
        %1301 = vmatprep.subr.bf16.mxu0 0
        %1302 = vmatpush1.bf16.xpose.msra.mxu0 0
        %1303 = vmatprep.subr.bf16.mxu0 0
        %1304 = vmatpush1.bf16.xpose.msra.mxu0 0
        %1305 = vmatprep.subr.bf16.mxu0 0
        %1306 = vmatpush1.bf16.xpose.msra.mxu0 0
        %1307 = vmatprep.subr.bf16.mxu0 0
        %1308 = vmatpush1.bf16.xpose.msra.mxu0 0
        %1309 = vmatprep.subr.bf16.mxu0 0
        %1310 = vmatpush1.bf16.xpose.msra.mxu0 0
        %1311 = vmatprep.subr.bf16.mxu0 0
        %1312 = vmatpush1.bf16.xpose.msra.mxu0 0
        %1313 = vmatprep.subr.bf16.mxu0 0
        %1314 = vmatpush1.bf16.xpose.msra.mxu0 %v1297
        %1315 = vmatprep.subr.bf16.mxu0 0
        %1316 = vmatpush2.bf16.xpose.msra.mxu0 0
        %1317 = vmatprep.subr.bf16.mxu0 0
        %1318 = vmatpush2.bf16.xpose.msra.mxu0 0
        %1319 = vmatprep.subr.bf16.mxu0 0
        %1320 = vmatpush2.bf16.xpose.msra.mxu0 0
        %1321 = vmatprep.subr.bf16.mxu0 0
        %1322 = vmatpush2.bf16.xpose.msra.mxu0 0
        %1323 = vmatprep.subr.bf16.mxu0 0
        %1324 = vmatpush2.bf16.xpose.msra.mxu0 0
        %1325 = vmatprep.subr.bf16.mxu0 0
        %1326 = vmatpush2.bf16.xpose.msra.mxu0 0
        %1327 = vmatprep.subr.bf16.mxu0 0
        %1328 = vmatpush2.bf16.xpose.msra.mxu0 0
        %1329 = vmatprep.subr.bf16.mxu0 0
        %1330 = vmatpush2.bf16.xpose.msra.mxu0 0
        %1331 = vmatprep.mubr.bf16.mxu0 0
        %1332 = vmatmul.mubr.bf16.gmra.mxu0 %v1294
        %v1333 = vpop.f32.mrf.mxu0
        %v1334 = vadd.f32 0.0, %v1333
        %v1335 = vpop.f32.mrf.mxu0
        %v1336 = vpop.f32.mrf.mxu0
        %v1337 = vpop.f32.mrf.mxu0
        %1338 = vdwg.mxu0
        %v1339 = vstv 0
        %v1340 = vadd.s32 %v1339, %v1146
        %vm1341 = vcmp.le.s32.totalorder %v1340, %v1144
        %v1342 = vsel %vm1341, 1, 0
        %vm1343 = vcmp.eq.s32.totalorder %v1342, 1
        %v1344 = vsel %vm1343, %v1196, -1e+30
        %v1345 = vsel %vm1343, %v1242, -1e+30
        %v1346 = vsel %vm1343, %v1288, -1e+30
        %v1347 = vsel %vm1343, %v1334, -1e+30
        %v1348 = vld [vmem:[#allocation4] sm:$0xff]
        %v1349 = vld [vmem:[#allocation4 + $0x8] sm:$0xff]
        %v1350 = vld [vmem:[#allocation4 + $0x10] sm:$0xff]
        %v1351 = vld [vmem:[#allocation4 + $0x18] sm:$0xff]
        %v1352 = vsel %vm1136, %v1344, -inf
        %1353 = vmax.xlane.f32.xlu0 %v1352
        %v1354 = vpop.xlane.xlu0 %1353
        %v1355 = vsel %vm1136, %v1345, -inf
        %1356 = vmax.xlane.f32.xlu0 %v1355
        %v1357 = vpop.xlane.xlu0 %1356
        %v1358 = vsel %vm1136, %v1346, -inf
        %1359 = vmax.xlane.f32.xlu0 %v1358
        %v1360 = vpop.xlane.xlu0 %1359
        %v1361 = vsel %vm1136, %v1347, -inf
        %1362 = vmax.xlane.f32.xlu0 %v1361
        %v1363 = vpop.xlane.xlu0 %1362
        %v1364 = vmax.f32 %v1348, %v1354
        %v1365 = vmax.f32 %v1349, %v1357
        %v1366 = vmax.f32 %v1350, %v1360
        %v1367 = vmax.f32 %v1351, %v1363
        %v1368 = vsub.f32 %v1348, %v1364
        %v1369 = vsub.f32 %v1349, %v1365
        %v1370 = vsub.f32 %v1350, %v1366
        %v1371 = vsub.f32 %v1351, %v1367
        %v1372 = vmul.f32 %v1368, 1.442695
        %v1373 = vpow.pop %v1372
        %v1374 = vmul.f32 %v1369, 1.442695
        %v1375 = vpow.pop %v1374
        %v1376 = vmul.f32 %v1370, 1.442695
        %v1377 = vpow.pop %v1376
        %v1378 = vmul.f32 %v1371, 1.442695
        %v1379 = vpow.pop %v1378
        %1381 = vset.pattern.permute.xlu0 0
        %1382 = vperm.xlu0 %1381, %v1364
        %v1383 = vpop.permute.xlu0 %1382
        %1386 = vset.pattern.permute.xlu0 0
        %1387 = vperm.xlu0 %1386, %v1365
        %v1388 = vpop.permute.xlu0 %1387
        %1391 = vset.pattern.permute.xlu0 0
        %1392 = vperm.xlu0 %1391, %v1366
        %v1393 = vpop.permute.xlu0 %1392
        %1396 = vset.pattern.permute.xlu0 0
        %1397 = vperm.xlu0 %1396, %v1367
        %v1398 = vpop.permute.xlu0 %1397
        %v1400 = vsub.f32 %v1344, %v1383
        %v1401 = vsub.f32 %v1345, %v1388
        %v1402 = vsub.f32 %v1346, %v1393
        %v1403 = vsub.f32 %v1347, %v1398
        %v1404 = vmul.f32 %v1400, 1.442695
        %v1405 = vpow.pop %v1404
        %v1406 = vmul.f32 %v1401, 1.442695
        %v1407 = vpow.pop %v1406
        %v1408 = vmul.f32 %v1402, 1.442695
        %v1409 = vpow.pop %v1408
        %v1410 = vmul.f32 %v1403, 1.442695
        %v1411 = vpow.pop %v1410
        %v1412 = vld [vmem:[#allocation5] sm:$0xff]
        %v1413 = vld [vmem:[#allocation5 + $0x8] sm:$0xff]
        %v1414 = vld [vmem:[#allocation5 + $0x10] sm:$0xff]
        %v1415 = vld [vmem:[#allocation5 + $0x18] sm:$0xff]
        %v1416 = vmul.f32 %v1373, %v1412
        %v1417 = vmul.f32 %v1375, %v1413
        %v1418 = vmul.f32 %v1377, %v1414
        %v1419 = vmul.f32 %v1379, %v1415
        %v1420 = vsel %vm1136, %v1405, 0.0
        %1421 = vadd.xlane.f32.xlu0 %v1420
        %v1422 = vpop.xlane.xlu0 %1421
        %v1423 = vsel %vm1136, %v1407, 0.0
        %1424 = vadd.xlane.f32.xlu0 %v1423
        %v1425 = vpop.xlane.xlu0 %1424
        %v1426 = vsel %vm1136, %v1409, 0.0
        %1427 = vadd.xlane.f32.xlu0 %v1426
        %v1428 = vpop.xlane.xlu0 %1427
        %v1429 = vsel %vm1136, %v1411, 0.0
        %1430 = vadd.xlane.f32.xlu0 %v1429
        %v1431 = vpop.xlane.xlu0 %1430
        %v1432 = vadd.f32 %v1416, %v1422
        %v1433 = vadd.f32 %v1417, %v1425
        %v1434 = vadd.f32 %v1418, %v1428
        %v1435 = vadd.f32 %v1419, %v1431
        %1436 = vst.msk [vmem:[#allocation5] sm:$0xff] %vm1127, %v1432
        %1437 = vst.msk [vmem:[#allocation5 + $0x8] sm:$0xff] %vm1127, %v1433
        %1438 = vst.msk [vmem:[#allocation5 + $0x10] sm:$0xff] %vm1127, %v1434
        %1439 = vst.msk [vmem:[#allocation5 + $0x18] sm:$0xff] %vm1127, %v1435
        %v1440 = vld [vmem:[#allocation6] sm:$0xff]
        %v1441 = vld [vmem:[#allocation6 + $0x8] sm:$0xff]
        %v1442 = vld [vmem:[#allocation6 + $0x10] sm:$0xff]
        %v1443 = vld [vmem:[#allocation6 + $0x18] sm:$0xff]
        %1445 = vset.pattern.permute.xlu0 0
        %1446 = vperm.xlu0 %1445, %v1373
        %v1447 = vpop.permute.xlu0 %1446
        %1450 = vset.pattern.permute.xlu0 0
        %1451 = vperm.xlu0 %1450, %v1375
        %v1452 = vpop.permute.xlu0 %1451
        %1455 = vset.pattern.permute.xlu0 0
        %1456 = vperm.xlu0 %1455, %v1377
        %v1457 = vpop.permute.xlu0 %1456
        %1460 = vset.pattern.permute.xlu0 0
        %1461 = vperm.xlu0 %1460, %v1379
        %v1462 = vpop.permute.xlu0 %1461
        %v1464 = vmul.f32 %v1447, %v1440
        %v1465 = vmul.f32 %v1452, %v1441
        %v1466 = vmul.f32 %v1457, %v1442
        %v1467 = vmul.f32 %v1462, %v1443
        %v1468 = vpack.c.bf16 %v1405, %v1405
        %v1469 = vpack.c.bf16 %v1407, %v1407
        %v1470 = vpack.c.bf16 %v1409, %v1409
        %v1471 = vpack.c.bf16 %v1411, %v1411
        %v1473 = vsel %vm1136, %v1468, 0
        %vm1475 = vcmask 1043456
        %v1477 = vsel %vm1475, %v1151, 0
        %1479 = vmatprep.subr.bf16.mxu0 0
        %1480 = vmatpush1.bf16.msra.mxu0 0
        %1481 = vmatprep.subr.bf16.mxu0 0
        %1482 = vmatpush1.bf16.msra.mxu0 0
        %1483 = vmatprep.subr.bf16.mxu0 0
        %1484 = vmatpush1.bf16.msra.mxu0 0
        %1485 = vmatprep.subr.bf16.mxu0 0
        %1486 = vmatpush1.bf16.msra.mxu0 0
        %1487 = vmatprep.subr.bf16.mxu0 0
        %1488 = vmatpush1.bf16.msra.mxu0 0
        %1489 = vmatprep.subr.bf16.mxu0 0
        %1490 = vmatpush1.bf16.msra.mxu0 0
        %1491 = vmatprep.subr.bf16.mxu0 0
        %1492 = vmatpush1.bf16.msra.mxu0 0
        %1493 = vmatprep.subr.bf16.mxu0 0
        %1494 = vmatpush1.bf16.msra.mxu0 %v1477
        %1495 = vmatprep.subr.bf16.mxu0 0
        %1496 = vmatpush2.bf16.msra.mxu0 0
        %1497 = vmatprep.subr.bf16.mxu0 0
        %1498 = vmatpush2.bf16.msra.mxu0 0
        %1499 = vmatprep.subr.bf16.mxu0 0
        %1500 = vmatpush2.bf16.msra.mxu0 0
        %1501 = vmatprep.subr.bf16.mxu0 0
        %1502 = vmatpush2.bf16.msra.mxu0 0
        %1503 = vmatprep.subr.bf16.mxu0 0
        %1504 = vmatpush2.bf16.msra.mxu0 0
        %1505 = vmatprep.subr.bf16.mxu0 0
        %1506 = vmatpush2.bf16.msra.mxu0 0
        %1507 = vmatprep.subr.bf16.mxu0 0
        %1508 = vmatpush2.bf16.msra.mxu0 0
        %1509 = vmatprep.subr.bf16.mxu0 0
        %1510 = vmatpush2.bf16.msra.mxu0 0
        %1511 = vmatprep.mubr.bf16.mxu0 0
        %1512 = vmatmul.mubr.bf16.gmra.mxu0 %v1473
        %v1513 = vpop.f32.mrf.mxu0
        %v1514 = vadd.f32 0.0, %v1513
        %v1515 = vpop.f32.mrf.mxu0
        %v1516 = vpop.f32.mrf.mxu0
        %v1517 = vpop.f32.mrf.mxu0
        %1518 = vdwg.mxu0
        %v1520 = vsel %vm1136, %v1469, 0
        %v1523 = vsel %vm1475, %v1152, 0
        %1525 = vmatprep.subr.bf16.mxu0 0
        %1526 = vmatpush1.bf16.msra.mxu0 0
        %1527 = vmatprep.subr.bf16.mxu0 0
        %1528 = vmatpush1.bf16.msra.mxu0 0
        %1529 = vmatprep.subr.bf16.mxu0 0
        %1530 = vmatpush1.bf16.msra.mxu0 0
        %1531 = vmatprep.subr.bf16.mxu0 0
        %1532 = vmatpush1.bf16.msra.mxu0 0
        %1533 = vmatprep.subr.bf16.mxu0 0
        %1534 = vmatpush1.bf16.msra.mxu0 0
        %1535 = vmatprep.subr.bf16.mxu0 0
        %1536 = vmatpush1.bf16.msra.mxu0 0
        %1537 = vmatprep.subr.bf16.mxu0 0
        %1538 = vmatpush1.bf16.msra.mxu0 0
        %1539 = vmatprep.subr.bf16.mxu0 0
        %1540 = vmatpush1.bf16.msra.mxu0 %v1523
        %1541 = vmatprep.subr.bf16.mxu0 0
        %1542 = vmatpush2.bf16.msra.mxu0 0
        %1543 = vmatprep.subr.bf16.mxu0 0
        %1544 = vmatpush2.bf16.msra.mxu0 0
        %1545 = vmatprep.subr.bf16.mxu0 0
        %1546 = vmatpush2.bf16.msra.mxu0 0
        %1547 = vmatprep.subr.bf16.mxu0 0
        %1548 = vmatpush2.bf16.msra.mxu0 0
        %1549 = vmatprep.subr.bf16.mxu0 0
        %1550 = vmatpush2.bf16.msra.mxu0 0
        %1551 = vmatprep.subr.bf16.mxu0 0
        %1552 = vmatpush2.bf16.msra.mxu0 0
        %1553 = vmatprep.subr.bf16.mxu0 0
        %1554 = vmatpush2.bf16.msra.mxu0 0
        %1555 = vmatprep.subr.bf16.mxu0 0
        %1556 = vmatpush2.bf16.msra.mxu0 0
        %1557 = vmatprep.mubr.bf16.mxu0 0
        %1558 = vmatmul.mubr.bf16.gmra.mxu0 %v1520
        %v1559 = vpop.f32.mrf.mxu0
        %v1560 = vadd.f32 0.0, %v1559
        %v1561 = vpop.f32.mrf.mxu0
        %v1562 = vpop.f32.mrf.mxu0
        %v1563 = vpop.f32.mrf.mxu0
        %1564 = vdwg.mxu0
        %v1566 = vsel %vm1136, %v1470, 0
        %v1569 = vsel %vm1475, %v1153, 0
        %1571 = vmatprep.subr.bf16.mxu0 0
        %1572 = vmatpush1.bf16.msra.mxu0 0
        %1573 = vmatprep.subr.bf16.mxu0 0
        %1574 = vmatpush1.bf16.msra.mxu0 0
        %1575 = vmatprep.subr.bf16.mxu0 0
        %1576 = vmatpush1.bf16.msra.mxu0 0
        %1577 = vmatprep.subr.bf16.mxu0 0
        %1578 = vmatpush1.bf16.msra.mxu0 0
        %1579 = vmatprep.subr.bf16.mxu0 0
        %1580 = vmatpush1.bf16.msra.mxu0 0
        %1581 = vmatprep.subr.bf16.mxu0 0
        %1582 = vmatpush1.bf16.msra.mxu0 0
        %1583 = vmatprep.subr.bf16.mxu0 0
        %1584 = vmatpush1.bf16.msra.mxu0 0
        %1585 = vmatprep.subr.bf16.mxu0 0
        %1586 = vmatpush1.bf16.msra.mxu0 %v1569
        %1587 = vmatprep.subr.bf16.mxu0 0
        %1588 = vmatpush2.bf16.msra.mxu0 0
        %1589 = vmatprep.subr.bf16.mxu0 0
        %1590 = vmatpush2.bf16.msra.mxu0 0
        %1591 = vmatprep.subr.bf16.mxu0 0
        %1592 = vmatpush2.bf16.msra.mxu0 0
        %1593 = vmatprep.subr.bf16.mxu0 0
        %1594 = vmatpush2.bf16.msra.mxu0 0
        %1595 = vmatprep.subr.bf16.mxu0 0
        %1596 = vmatpush2.bf16.msra.mxu0 0
        %1597 = vmatprep.subr.bf16.mxu0 0
        %1598 = vmatpush2.bf16.msra.mxu0 0
        %1599 = vmatprep.subr.bf16.mxu0 0
        %1600 = vmatpush2.bf16.msra.mxu0 0
        %1601 = vmatprep.subr.bf16.mxu0 0
        %1602 = vmatpush2.bf16.msra.mxu0 0
        %1603 = vmatprep.mubr.bf16.mxu0 0
        %1604 = vmatmul.mubr.bf16.gmra.mxu0 %v1566
        %v1605 = vpop.f32.mrf.mxu0
        %v1606 = vadd.f32 0.0, %v1605
        %v1607 = vpop.f32.mrf.mxu0
        %v1608 = vpop.f32.mrf.mxu0
        %v1609 = vpop.f32.mrf.mxu0
        %1610 = vdwg.mxu0
        %v1612 = vsel %vm1136, %v1471, 0
        %v1615 = vsel %vm1475, %v1154, 0
        %1617 = vmatprep.subr.bf16.mxu0 0
        %1618 = vmatpush1.bf16.msra.mxu0 0
        %1619 = vmatprep.subr.bf16.mxu0 0
        %1620 = vmatpush1.bf16.msra.mxu0 0
        %1621 = vmatprep.subr.bf16.mxu0 0
        %1622 = vmatpush1.bf16.msra.mxu0 0
        %1623 = vmatprep.subr.bf16.mxu0 0
        %1624 = vmatpush1.bf16.msra.mxu0 0
        %1625 = vmatprep.subr.bf16.mxu0 0
        %1626 = vmatpush1.bf16.msra.mxu0 0
        %1627 = vmatprep.subr.bf16.mxu0 0
        %1628 = vmatpush1.bf16.msra.mxu0 0
        %1629 = vmatprep.subr.bf16.mxu0 0
        %1630 = vmatpush1.bf16.msra.mxu0 0
        %1631 = vmatprep.subr.bf16.mxu0 0
        %1632 = vmatpush1.bf16.msra.mxu0 %v1615
        %1633 = vmatprep.subr.bf16.mxu0 0
        %1634 = vmatpush2.bf16.msra.mxu0 0
        %1635 = vmatprep.subr.bf16.mxu0 0
        %1636 = vmatpush2.bf16.msra.mxu0 0
        %1637 = vmatprep.subr.bf16.mxu0 0
        %1638 = vmatpush2.bf16.msra.mxu0 0
        %1639 = vmatprep.subr.bf16.mxu0 0
        %1640 = vmatpush2.bf16.msra.mxu0 0
        %1641 = vmatprep.subr.bf16.mxu0 0
        %1642 = vmatpush2.bf16.msra.mxu0 0
        %1643 = vmatprep.subr.bf16.mxu0 0
        %1644 = vmatpush2.bf16.msra.mxu0 0
        %1645 = vmatprep.subr.bf16.mxu0 0
        %1646 = vmatpush2.bf16.msra.mxu0 0
        %1647 = vmatprep.subr.bf16.mxu0 0
        %1648 = vmatpush2.bf16.msra.mxu0 0
        %1649 = vmatprep.mubr.bf16.mxu0 0
        %1650 = vmatmul.mubr.bf16.gmra.mxu0 %v1612
        %v1651 = vpop.f32.mrf.mxu0
        %v1652 = vadd.f32 0.0, %v1651
        %v1653 = vpop.f32.mrf.mxu0
        %v1654 = vpop.f32.mrf.mxu0
        %v1655 = vpop.f32.mrf.mxu0
        %1656 = vdwg.mxu0
        %v1657 = vadd.f32 %v1464, %v1514
        %v1658 = vadd.f32 %v1465, %v1560
        %v1659 = vadd.f32 %v1466, %v1606
        %v1660 = vadd.f32 %v1467, %v1652
        %1661 = vst.msk [vmem:[#allocation6] sm:$0xff] %vm1136, %v1657
        %1662 = vst.msk [vmem:[#allocation6 + $0x8] sm:$0xff] %vm1136, %v1658
        %1663 = vst.msk [vmem:[#allocation6 + $0x10] sm:$0xff] %vm1136, %v1659
        %1664 = vst.msk [vmem:[#allocation6 + $0x18] sm:$0xff] %vm1136, %v1660
        %1665 = vst.msk [vmem:[#allocation4] sm:$0xff] %vm1127, %v1364
        %1666 = vst.msk [vmem:[#allocation4 + $0x8] sm:$0xff] %vm1127, %v1365
        %1667 = vst.msk [vmem:[#allocation4 + $0x10] sm:$0xff] %vm1127, %v1366
        %1668 = vst.msk [vmem:[#allocation4 + $0x18] sm:$0xff] %vm1127, %v1367
        %v1669 = vld [vmem:[#allocation6] sm:$0xff]
        %v1670 = vld [vmem:[#allocation6 + $0x8] sm:$0xff]
        %v1671 = vld [vmem:[#allocation6 + $0x10] sm:$0xff]
        %v1672 = vld [vmem:[#allocation6 + $0x18] sm:$0xff]
        %v1673 = vld [vmem:[#allocation5] sm:$0xff]
        %v1674 = vld [vmem:[#allocation5 + $0x8] sm:$0xff]
        %v1675 = vld [vmem:[#allocation5 + $0x10] sm:$0xff]
        %v1676 = vld [vmem:[#allocation5 + $0x18] sm:$0xff]
        %v1677 = vrcp.pop %v1673
        %v1678 = vrcp.pop %v1674
        %v1679 = vrcp.pop %v1675
        %v1680 = vrcp.pop %v1676
        %1682 = vset.pattern.permute.xlu0 0
        %1683 = vperm.xlu0 %1682, %v1677
        %v1684 = vpop.permute.xlu0 %1683
        %1687 = vset.pattern.permute.xlu0 0
        %1688 = vperm.xlu0 %1687, %v1678
        %v1689 = vpop.permute.xlu0 %1688
        %1692 = vset.pattern.permute.xlu0 0
        %1693 = vperm.xlu0 %1692, %v1679
        %v1694 = vpop.permute.xlu0 %1693
        %1697 = vset.pattern.permute.xlu0 0
        %1698 = vperm.xlu0 %1697, %v1680
        %v1699 = vpop.permute.xlu0 %1698
        %v1701 = vmul.f32 %v1669, %v1684
        %v1702 = vmul.f32 %v1670, %v1689
        %v1703 = vmul.f32 %v1671, %v1694
        %v1704 = vmul.f32 %v1672, %v1699
        %v1705 = vcombine.low %v1701, %v1703
        %v1706 = vcombine.high %v1701, %v1703
        %v1708 = vunpack.c.l.s4 1983009808
        %v1709 = vunpack.c.0.s8 %v1708
        %v1710 = vlaneseq
        %v1711 = vshrl.u32 %v1710, 7
        %v1712 = vsub.s32 %v1709, %v1711
        %v1713 = vrot.slane %v1705, %v1712
        %v1715 = vunpack.c.l.s4 1983009808
        %v1716 = vunpack.c.0.s8 %v1715
        %v1717 = vlaneseq
        %v1718 = vshrl.u32 %v1717, 7
        %v1719 = vsub.s32 %v1716, %v1718
        %v1720 = vrot.slane %v1706, %v1719
        %v1721 = vcombine.low %v1702, %v1704
        %v1722 = vcombine.high %v1702, %v1704
        %v1724 = vunpack.c.l.s4 1983009808
        %v1725 = vunpack.c.0.s8 %v1724
        %v1726 = vlaneseq
        %v1727 = vshrl.u32 %v1726, 7
        %v1728 = vsub.s32 %v1725, %v1727
        %v1729 = vrot.slane %v1721, %v1728
        %v1731 = vunpack.c.l.s4 1983009808
        %v1732 = vunpack.c.0.s8 %v1731
        %v1733 = vlaneseq
        %v1734 = vshrl.u32 %v1733, 7
        %v1735 = vsub.s32 %v1732, %v1734
        %v1736 = vrot.slane %v1722, %v1735
        %v1737 = vcombine.low %v1713, %v1729
        %v1738 = vcombine.high %v1713, %v1729
        %v1740 = vunpack.c.l.s4 1934713408
        %v1741 = vunpack.c.0.s8 %v1740
        %v1742 = vlaneseq
        %v1743 = vshrl.u32 %v1742, 7
        %v1744 = vsub.s32 %v1741, %v1743
        %v1745 = vrot.slane %v1737, %v1744
        %v1747 = vunpack.c.l.s4 1934713408
        %v1748 = vunpack.c.0.s8 %v1747
        %v1749 = vlaneseq
        %v1750 = vshrl.u32 %v1749, 7
        %v1751 = vsub.s32 %v1748, %v1750
        %v1752 = vrot.slane %v1738, %v1751
        %v1753 = vcombine.low %v1720, %v1736
        %v1754 = vcombine.high %v1720, %v1736
        %v1756 = vunpack.c.l.s4 1934713408
        %v1757 = vunpack.c.0.s8 %v1756
        %v1758 = vlaneseq
        %v1759 = vshrl.u32 %v1758, 7
        %v1760 = vsub.s32 %v1757, %v1759
        %v1761 = vrot.slane %v1753, %v1760
        %v1763 = vunpack.c.l.s4 1934713408
        %v1764 = vunpack.c.0.s8 %v1763
        %v1765 = vlaneseq
        %v1766 = vshrl.u32 %v1765, 7
        %v1767 = vsub.s32 %v1764, %v1766
        %v1768 = vrot.slane %v1754, %v1767
        %v1769 = vcombine.high %v1745, 0.0
        %v1770 = vcombine.high %v1752, 0.0
        %v1771 = vcombine.high %v1761, 0.0
        %v1772 = vcombine.high %v1768, 0.0
        %v1773 = vcombine.low %v1745, %v1752
        %v1775 = vunpack.c.l.s4 1983009808
        %v1776 = vunpack.c.0.s8 %v1775
        %v1777 = vlaneseq
        %v1778 = vshrl.u32 %v1777, 7
        %v1779 = vsub.s32 %v1776, %v1778
        %v1780 = vrot.slane %v1773, %v1779
        %v1781 = vcombine.low %v1769, %v1770
        %v1783 = vunpack.c.l.s4 1983009808
        %v1784 = vunpack.c.0.s8 %v1783
        %v1785 = vlaneseq
        %v1786 = vshrl.u32 %v1785, 7
        %v1787 = vsub.s32 %v1784, %v1786
        %v1788 = vrot.slane %v1781, %v1787
        %v1789 = vcombine.low %v1761, %v1768
        %v1791 = vunpack.c.l.s4 1983009808
        %v1792 = vunpack.c.0.s8 %v1791
        %v1793 = vlaneseq
        %v1794 = vshrl.u32 %v1793, 7
        %v1795 = vsub.s32 %v1792, %v1794
        %v1796 = vrot.slane %v1789, %v1795
        %v1797 = vcombine.low %v1771, %v1772
        %v1799 = vunpack.c.l.s4 1983009808
        %v1800 = vunpack.c.0.s8 %v1799
        %v1801 = vlaneseq
        %v1802 = vshrl.u32 %v1801, 7
        %v1803 = vsub.s32 %v1800, %v1802
        %v1804 = vrot.slane %v1797, %v1803
        %v1805 = vcombine.low %v1780, %v1788
        %v1806 = vcombine.high %v1780, %v1788
        %v1808 = vunpack.c.l.s4 1934713408
        %v1809 = vunpack.c.0.s8 %v1808
        %v1810 = vlaneseq
        %v1811 = vshrl.u32 %v1810, 7
        %v1812 = vsub.s32 %v1809, %v1811
        %v1813 = vrot.slane %v1805, %v1812
        %v1815 = vunpack.c.l.s4 1934713408
        %v1816 = vunpack.c.0.s8 %v1815
        %v1817 = vlaneseq
        %v1818 = vshrl.u32 %v1817, 7
        %v1819 = vsub.s32 %v1816, %v1818
        %v1820 = vrot.slane %v1806, %v1819
        %v1821 = vcombine.low %v1796, %v1804
        %v1822 = vcombine.high %v1796, %v1804
        %v1824 = vunpack.c.l.s4 1934713408
        %v1825 = vunpack.c.0.s8 %v1824
        %v1826 = vlaneseq
        %v1827 = vshrl.u32 %v1826, 7
        %v1828 = vsub.s32 %v1825, %v1827
        %v1829 = vrot.slane %v1821, %v1828
        %v1831 = vunpack.c.l.s4 1934713408
        %v1832 = vunpack.c.0.s8 %v1831
        %v1833 = vlaneseq
        %v1834 = vshrl.u32 %v1833, 7
        %v1835 = vsub.s32 %v1832, %v1834
        %v1836 = vrot.slane %v1822, %v1835
        %v1837 = vcombine.low %v1813, %v1829
        %v1838 = vcombine.high %v1813, %v1829
        %v1839 = vcombine.low %v1820, %v1836
        %v1840 = vcombine.high %v1820, %v1836
        %1842 = vrot.lane.b32.xlu0 %v1838, 8
        %v1843 = vpop.permute.xlu0 %1842
        %1846 = vrot.lane.b32.xlu0 %v1839, 16
        %v1847 = vpop.permute.xlu0 %1846
        %1850 = vrot.lane.b32.xlu0 %v1840, 24
        %v1851 = vpop.permute.xlu0 %1850
        %v1853 = vsel %vm1136, %v1837, %v1843
        %vm1854 = vcmask 130048
        %v1855 = vsel %vm1854, %v1853, %v1847
        %vm1856 = vcmask 195584
        %v1857 = vsel %vm1856, %v1855, %v1851
        %v1858 = vpack.c.bf16 %v1857, %v1857
        %v1859 = vld [vmem:[%s5] sm:$0xf]
        %v1860 = vld [vmem:[%s5 + $0x4] sm:$0xf]
        %v1861 = vld [vmem:[%s5 + $0x8] sm:$0xf]
        %v1862 = vld [vmem:[%s5 + $0xc] sm:$0xf]
        %v1863 = vld [vmem:[%s6] sm:$0x1]
        %v1865 = vlaneseq
        %v1866 = vshrl.u32 %v1865, 7
        %v1867 = vsub.s32 0, %v1866
        %v1868 = vrot.slane %v1863, %v1867
        %v1874 = vunpack.c.l.b16 %v1859
        %v1875 = vunpack.c.l.b16 %v1860
        %v1876 = vunpack.c.l.b16 %v1861
        %v1877 = vunpack.c.l.b16 %v1862
        %v1878 = vpack.c.b16 %v1875, %v1874
        %v1879 = vpack.c.b16 %v1877, %v1876
        %v1883 = vsel %vm887, %v1858, 0
        %1885 = vmatprep.subr.bf16.mxu0 0
        %1886 = vmatpush1.bf16.msra.mxu0 0
        %1887 = vmatprep.subr.bf16.mxu0 0
        %1888 = vmatpush1.bf16.msra.mxu0 0
        %1889 = vmatprep.subr.bf16.mxu0 0
        %1890 = vmatpush1.bf16.msra.mxu0 0
        %1891 = vmatprep.subr.bf16.mxu0 0
        %1892 = vmatpush1.bf16.msra.mxu0 0
        %1893 = vmatprep.subr.bf16.mxu0 0
        %1894 = vmatpush1.bf16.msra.mxu0 0
        %1895 = vmatprep.subr.bf16.mxu0 0
        %1896 = vmatpush1.bf16.msra.mxu0 0
        %1897 = vmatprep.subr.bf16.mxu0 0
        %1898 = vmatpush1.bf16.msra.mxu0 %v1879
        %1899 = vmatprep.subr.bf16.mxu0 0
        %1900 = vmatpush1.bf16.msra.mxu0 %v1878
        %1901 = vmatprep.subr.bf16.mxu0 0
        %1902 = vmatpush2.bf16.msra.mxu0 0
        %1903 = vmatprep.subr.bf16.mxu0 0
        %1904 = vmatpush2.bf16.msra.mxu0 0
        %1905 = vmatprep.subr.bf16.mxu0 0
        %1906 = vmatpush2.bf16.msra.mxu0 0
        %1907 = vmatprep.subr.bf16.mxu0 0
        %1908 = vmatpush2.bf16.msra.mxu0 0
        %1909 = vmatprep.subr.bf16.mxu0 0
        %1910 = vmatpush2.bf16.msra.mxu0 0
        %1911 = vmatprep.subr.bf16.mxu0 0
        %1912 = vmatpush2.bf16.msra.mxu0 0
        %1913 = vmatprep.subr.bf16.mxu0 0
        %1914 = vmatpush2.bf16.msra.mxu0 0
        %1915 = vmatprep.subr.bf16.mxu0 0
        %1916 = vmatpush2.bf16.msra.mxu0 0
        %1917 = vmatprep.mubr.bf16.mxu0 0
        %1918 = vmatmul.mubr.bf16.gmra.mxu0 %v1883
        %v1919 = vpop.f32.mrf.mxu0
        %v1920 = vadd.f32 %v1868, %v1919
        %v1921 = vpop.f32.mrf.mxu0
        %v1922 = vpop.f32.mrf.mxu0
        %v1923 = vpop.f32.mrf.mxu0
        %1924 = vdwg.mxu0
        %v1925 = vadd.f32 %v886, %v1920
        %v1926 = vld [vmem:[%s7] sm:$0x1]
        %v1927 = vld [vmem:[#allocation7] sm:$0x1]
        %v1928 = vsel %vm887, %v1925, 0.0
        %1929 = vadd.xlane.f32.xlu0 %v1928
        %v1930 = vpop.xlane.xlu0 %1929
        %v1931 = vmul.f32 %v1930, %v891
        %v1932 = vsub.f32 %v1925, %v1931
        %v1933 = vmul.f32 %v1932, %v1932
        %v1934 = vsel %vm887, %v1933, 0.0
        %1935 = vadd.xlane.f32.xlu0 %v1934
        %v1936 = vpop.xlane.xlu0 %1935
        %v1937 = vmul.f32 %v1936, %v891
        %v1938 = vadd.f32 %v1937, 1e-05
        %v1939 = vrsqrt.pop %v1938
        %v1940 = vmul.f32 %v1932, %v1939
        %v1942 = vlaneseq
        %v1943 = vshrl.u32 %v1942, 7
        %v1944 = vsub.s32 0, %v1943
        %v1945 = vrot.slane %v1926, %v1944
        %v1947 = vmul.f32 %v1940, %v1945
        %v1949 = vlaneseq
        %v1950 = vshrl.u32 %v1949, 7
        %v1951 = vsub.s32 0, %v1950
        %v1952 = vrot.slane %v1927, %v1951
        %v1954 = vadd.f32 %v1947, %v1952
        %v1955 = vpack.c.bf16 %v1954, %v1954
        %v1956 = vld [vmem:[%s9] sm:$0xf]
        %v1957 = vld [vmem:[%s9 + $0x4] sm:$0xf]
        %v1958 = vld [vmem:[%s9 + $0x8] sm:$0xf]
        %v1959 = vld [vmem:[%s9 + $0xc] sm:$0xf]
        %v1960 = vld [vmem:[#allocation10] sm:$0x1]
        %v1962 = vlaneseq
        %v1963 = vshrl.u32 %v1962, 7
        %v1964 = vsub.s32 0, %v1963
        %v1965 = vrot.slane %v1960, %v1964
        %v1971 = vunpack.c.l.b16 %v1956
        %v1972 = vunpack.c.l.b16 %v1957
        %v1973 = vunpack.c.l.b16 %v1958
        %v1974 = vunpack.c.l.b16 %v1959
        %v1975 = vpack.c.b16 %v1972, %v1971
        %v1976 = vpack.c.b16 %v1974, %v1973
        %v1980 = vsel %vm887, %v1955, 0
        %1982 = vmatprep.subr.bf16.mxu0 0
        %1983 = vmatpush1.bf16.msra.mxu0 0
        %1984 = vmatprep.subr.bf16.mxu0 0
        %1985 = vmatpush1.bf16.msra.mxu0 0
        %1986 = vmatprep.subr.bf16.mxu0 0
        %1987 = vmatpush1.bf16.msra.mxu0 0
        %1988 = vmatprep.subr.bf16.mxu0 0
        %1989 = vmatpush1.bf16.msra.mxu0 0
        %1990 = vmatprep.subr.bf16.mxu0 0
        %1991 = vmatpush1.bf16.msra.mxu0 0
        %1992 = vmatprep.subr.bf16.mxu0 0
        %1993 = vmatpush1.bf16.msra.mxu0 0
        %1994 = vmatprep.subr.bf16.mxu0 0
        %1995 = vmatpush1.bf16.msra.mxu0 %v1976
        %1996 = vmatprep.subr.bf16.mxu0 0
        %1997 = vmatpush1.bf16.msra.mxu0 %v1975
        %1998 = vmatprep.subr.bf16.mxu0 0
        %1999 = vmatpush2.bf16.msra.mxu0 0
        %2000 = vmatprep.subr.bf16.mxu0 0
        %2001 = vmatpush2.bf16.msra.mxu0 0
        %2002 = vmatprep.subr.bf16.mxu0 0
        %2003 = vmatpush2.bf16.msra.mxu0 0
        %2004 = vmatprep.subr.bf16.mxu0 0
        %2005 = vmatpush2.bf16.msra.mxu0 0
        %2006 = vmatprep.subr.bf16.mxu0 0
        %2007 = vmatpush2.bf16.msra.mxu0 0
        %2008 = vmatprep.subr.bf16.mxu0 0
        %2009 = vmatpush2.bf16.msra.mxu0 0
        %2010 = vmatprep.subr.bf16.mxu0 0
        %2011 = vmatpush2.bf16.msra.mxu0 0
        %2012 = vmatprep.subr.bf16.mxu0 0
        %2013 = vmatpush2.bf16.msra.mxu0 0
        %2014 = vmatprep.mubr.bf16.mxu0 0
        %2015 = vmatmul.mubr.bf16.gmra.mxu0 %v1980
        %v2016 = vpop.f32.mrf.mxu0
        %v2017 = vadd.f32 %v1965, %v2016
        %v2018 = vpop.f32.mrf.mxu0
        %v2019 = vpop.f32.mrf.mxu0
        %v2020 = vpop.f32.mrf.mxu0
        %2021 = vdwg.mxu0
        %v2022 = vmax.f32 %v2017, 0.0
        %v2023 = vpack.c.bf16 %v2022, %v2022
        %v2024 = vld [vmem:[%s11] sm:$0xf]
        %v2025 = vld [vmem:[%s11 + $0x4] sm:$0xf]
        %v2026 = vld [vmem:[%s11 + $0x8] sm:$0xf]
        %v2027 = vld [vmem:[%s11 + $0xc] sm:$0xf]
        %v2028 = vld [vmem:[%s11 + $0x10] sm:$0xf]
        %v2029 = vld [vmem:[%s11 + $0x14] sm:$0xf]
        %v2030 = vld [vmem:[%s11 + $0x18] sm:$0xf]
        %v2031 = vld [vmem:[%s11 + $0x1c] sm:$0xf]
        %v2032 = vld [vmem:[%s11 + $0x20] sm:$0xf]
        %v2033 = vld [vmem:[%s11 + $0x24] sm:$0xf]
        %v2034 = vld [vmem:[%s11 + $0x28] sm:$0xf]
        %v2035 = vld [vmem:[%s11 + $0x2c] sm:$0xf]
        %v2036 = vld [vmem:[%s11 + $0x30] sm:$0xf]
        %v2037 = vld [vmem:[%s11 + $0x34] sm:$0xf]
        %v2038 = vld [vmem:[%s11 + $0x38] sm:$0xf]
        %v2039 = vld [vmem:[%s11 + $0x3c] sm:$0xf]
        %v2040 = vld [vmem:[%s12] sm:$0x1]
        %v2042 = vlaneseq
        %v2043 = vshrl.u32 %v2042, 7
        %v2044 = vsub.s32 0, %v2043
        %v2045 = vrot.slane %v2040, %v2044
        %v2063 = vunpack.c.l.b16 %v2024
        %v2064 = vunpack.c.l.b16 %v2025
        %v2065 = vunpack.c.l.b16 %v2026
        %v2066 = vunpack.c.l.b16 %v2027
        %v2067 = vunpack.c.l.b16 %v2028
        %v2068 = vunpack.c.l.b16 %v2029
        %v2069 = vunpack.c.l.b16 %v2030
        %v2070 = vunpack.c.l.b16 %v2031
        %v2071 = vunpack.c.l.b16 %v2032
        %v2072 = vunpack.c.l.b16 %v2033
        %v2073 = vunpack.c.l.b16 %v2034
        %v2074 = vunpack.c.l.b16 %v2035
        %v2075 = vunpack.c.l.b16 %v2036
        %v2076 = vunpack.c.l.b16 %v2037
        %v2077 = vunpack.c.l.b16 %v2038
        %v2078 = vunpack.c.l.b16 %v2039
        %v2079 = vpack.c.b16 %v2064, %v2063
        %v2080 = vpack.c.b16 %v2066, %v2065
        %v2081 = vpack.c.b16 %v2068, %v2067
        %v2082 = vpack.c.b16 %v2070, %v2069
        %v2083 = vpack.c.b16 %v2072, %v2071
        %v2084 = vpack.c.b16 %v2074, %v2073
        %v2085 = vpack.c.b16 %v2076, %v2075
        %v2086 = vpack.c.b16 %v2078, %v2077
        %2095 = vmatprep.subr.bf16.mxu0 0
        %2096 = vmatpush1.bf16.msra.mxu0 %v2086
        %2097 = vmatprep.subr.bf16.mxu0 0
        %2098 = vmatpush1.bf16.msra.mxu0 %v2085
        %2099 = vmatprep.subr.bf16.mxu0 0
        %2100 = vmatpush1.bf16.msra.mxu0 %v2084
        %2101 = vmatprep.subr.bf16.mxu0 0
        %2102 = vmatpush1.bf16.msra.mxu0 %v2083
        %2103 = vmatprep.subr.bf16.mxu0 0
        %2104 = vmatpush1.bf16.msra.mxu0 %v2082
        %2105 = vmatprep.subr.bf16.mxu0 0
        %2106 = vmatpush1.bf16.msra.mxu0 %v2081
        %2107 = vmatprep.subr.bf16.mxu0 0
        %2108 = vmatpush1.bf16.msra.mxu0 %v2080
        %2109 = vmatprep.subr.bf16.mxu0 0
        %2110 = vmatpush1.bf16.msra.mxu0 %v2079
        %2111 = vmatprep.subr.bf16.mxu0 0
        %2112 = vmatpush2.bf16.msra.mxu0 0
        %2113 = vmatprep.subr.bf16.mxu0 0
        %2114 = vmatpush2.bf16.msra.mxu0 0
        %2115 = vmatprep.subr.bf16.mxu0 0
        %2116 = vmatpush2.bf16.msra.mxu0 0
        %2117 = vmatprep.subr.bf16.mxu0 0
        %2118 = vmatpush2.bf16.msra.mxu0 0
        %2119 = vmatprep.subr.bf16.mxu0 0
        %2120 = vmatpush2.bf16.msra.mxu0 0
        %2121 = vmatprep.subr.bf16.mxu0 0
        %2122 = vmatpush2.bf16.msra.mxu0 0
        %2123 = vmatprep.subr.bf16.mxu0 0
        %2124 = vmatpush2.bf16.msra.mxu0 0
        %2125 = vmatprep.subr.bf16.mxu0 0
        %2126 = vmatpush2.bf16.msra.mxu0 0
        %2127 = vmatprep.mubr.bf16.mxu0 0
        %2128 = vmatmul.mubr.bf16.gmra.mxu0 %v2023
        %v2129 = vpop.f32.mrf.mxu0
        %v2130 = vadd.f32 %v2045, %v2129
        %v2131 = vpop.f32.mrf.mxu0
        %v2132 = vpop.f32.mrf.mxu0
        %v2133 = vpop.f32.mrf.mxu0
        %2134 = vdwg.mxu0
        %v2135 = vadd.f32 %v1925, %v2130
        %2136 = vst.msk [vmem:[%s471] sm:$0xff] %vm887, %v2135
        %s2137 = sand.u32 %s329, 1
        %s2138 = scalar_lea.sflag [#allocation9], %s2137
        %s2139 = sand.u32 %s329, 1
        %s2140 = smul.addr %s2139, 8
        %s2141 = scalar_lea.vmem [#allocation12], %s2140
        // Predicated region
        $region85: #{tpu_custom_call.1} parent=71 // pred_check
          %p2142 = pneg %p339
        $region86: #{tpu_custom_call.1} parent=71 // pred_check_branch
          %2144 = sbr.rel (%p2142) target = $region88
        $region87: #{tpu_custom_call.1} parent=71 // pred_region
          %s2146 = ssub.s32 128, 128
          %2147 = vsyncadd %s2138, %s2146
          %s2148 = sadd.s32 %s34, %s33
          %s2149 = smul.addr %s2148, 128
          %s2150 = scalar_lea.hbm %s13, %s2149
          %s2152 = sshll.u32 %s2141, 4
          %s2153 = int_to_ptr.vmem [resolvable:$true] %s2152
          %2155 = dma.vmem_to_hbm [thread:$0]  %s2153, 128, %s2150, %s2138
        $region88: #{tpu_custom_call.1} parent=71 // pred_fallthru
          _
      $region72: #{tpu_custom_call.1} parent=5 // pred_fallthru
        _
      %p2156 = scmp.le.s32.totalorder 2, %s24
      // Predicated region
      $region89: #{tpu_custom_call.1} parent=5 // pred_check
        %p2157 = pneg %p2156
      $region90: #{tpu_custom_call.1} parent=5 // pred_check_branch
        %2159 = sbr.rel (%p2157) target = $region92
      $region91: #{tpu_custom_call.1} parent=5 // pred_region
        %s2160 = ssub.s32 %s24, 2
        // Predicated region
        $region93: #{tpu_custom_call.1} parent=91 // pred_check
          %p2161 = pneg %p345
        $region94: #{tpu_custom_call.1} parent=91 // pred_check_branch
          %2163 = sbr.rel (%p2161) target = $region96
        $region95: #{tpu_custom_call.1} parent=91 // pred_region
          %s2164 = sand.u32 %s330, 1
          %s2165 = scalar_lea.sflag [#allocation9], %s2164
          %s2166 = sand.u32 %s330, 1
          %s2167 = smul.addr %s2166, 8
          %s2168 = scalar_lea.vmem [#allocation12], %s2167
          %2169 = dma.done %s2165, 128
        $region96: #{tpu_custom_call.1} parent=91 // pred_fallthru
          _
      $region92: #{tpu_custom_call.1} parent=5 // pred_fallthru
        _
    $region6: #{tpu_custom_call.1} parent=1 // loop_footer
      %s28 = sadd.s32 1, %s24
    $region7: #{tpu_custom_call.1} parent=1 // loop_footer_branch
      %23 = sbr.rel target = $region3
    $region8: #{tpu_custom_call.1} parent=1 // loop_exit
      _
    %2170 = vsyncpa [#allocation8], 1
    %s2171 = scalar_lea.sflag [#allocation8], 1
    %2172 = vsyncpa %s2171, 1
    %2173 = vsyncpa [#allocation11], 1
    %2174 = vsyncpa [#allocation9], 1
    %s2175 = scalar_lea.sflag [#allocation9], 1
    %2176 = vsyncpa %s2175, 1

// kernel: tpu_custom_call.1
$region0: #{tpu_custom_call.1}
  #allocation0 [shape = 'u32[]', space=smem, size = 0x4, offset = 0x4, fixed_abs, tag = 'smem constant byte address 0x4 - core index']
  #allocation1 [shape = 'u32[144,128]{1,0:T(1,128)}', space=vmem, size = 0x12000, scoped, tag = 'internal scratch']
  #allocation2 [shape = 'bf16[4,8,8]{2,1,0:T(8,128)(2,1)}', space=vmem, size = 0x2000, scoped, tag = 'scratch operand']
  #allocation3 [shape = 'bf16[4,8,8]{2,1,0:T(8,128)(2,1)}', space=vmem, size = 0x2000, scoped, tag = 'scratch operand']
  #allocation4 [shape = 'f32[4,8,1]{2,1,0:T(8,128)}', space=vmem, size = 0x4000, scoped, tag = 'scratch operand']
  #allocation5 [shape = 'f32[4,8,1]{2,1,0:T(8,128)}', space=vmem, size = 0x4000, scoped, tag = 'scratch operand']
  #allocation6 [shape = 'f32[4,8,8]{2,1,0:T(8,128)}', space=vmem, size = 0x4000, scoped, tag = 'scratch operand']
  %s0 = inlined_call_operand.vmem [shape: f32[2,8,32], index: 0, kind: input, shape index: {}]
  %s1 = inlined_call_operand.vmem [shape: f32[1,32], index: 1, kind: input, shape index: {}]
  %s2 = inlined_call_operand.vmem [shape: f32[1,32], index: 2, kind: input, shape index: {}]
  %s3 = inlined_call_operand.vmem [shape: bf16[32,32], index: 3, kind: input, shape index: {}]
  %s4 = inlined_call_operand.vmem [shape: bf16[32,64], index: 4, kind: input, shape index: {}]
  %s5 = inlined_call_operand.vmem [shape: bf16[32,32], index: 5, kind: input, shape index: {}]
  %s6 = inlined_call_operand.vmem [shape: f32[1,32], index: 6, kind: input, shape index: {}]
  %s7 = inlined_call_operand.vmem [shape: f32[1,32], index: 7, kind: input, shape index: {}]
  %s8 = inlined_call_operand.hbm [shape: f32[1,32], index: 8, kind: input, shape index: {}]
  %s9 = inlined_call_operand.vmem [shape: bf16[32,128], index: 9, kind: input, shape index: {}]
  %s10 = inlined_call_operand.hbm [shape: f32[1,128], index: 10, kind: input, shape index: {}]
  %s11 = inlined_call_operand.vmem [shape: bf16[128,32], index: 11, kind: input, shape index: {}]
  %s12 = inlined_call_operand.vmem [shape: f32[1,32], index: 12, kind: input, shape index: {}]
  %s13 = inlined_call_operand.hbm [shape: f32[2,8,32], index: 13, kind: output, shape index: {}]
  %s14 = sld [smem:[#allocation0]]
  $region97: #{tpu_custom_call.1} parent=0
    _
  %s16 = ssub.s32 1, %s14
  %s17 = scalar_select 0, %s16, %s14
  $region1: #{tpu_custom_call.1} parent=0
    #allocation7 [shape = 'u8[512]{0}', space=vmem, size = 0x400, scoped, tag = 'input window, operand 8, single buffered']
    #allocation8 [shape = 's32[2]{0}', space=sflag, size = 0x8, scoped, tag = 'scoped memory for tpu_custom_call.1']
    #allocation9 [shape = 's32[2]{0}', space=sflag, size = 0x8, scoped, tag = 'scoped memory for tpu_custom_call.1']
    #allocation10 [shape = 'u8[512]{0}', space=vmem, size = 0x400, scoped, tag = 'input window, operand 10, single buffered']
    #allocation11 [shape = 's32[1]{0}', space=sflag, size = 0x4, scoped, tag = 'scoped memory for tpu_custom_call.1']
    #allocation12 [shape = 'u8[8192]{0}', space=vmem, size = 0x2000, scoped, tag = 'output window, operand 0']
    %18 = vsyncpa [#allocation8], 0
    %19 = vsyncpa [#allocation11], 0
    %20 = vsyncpa [#allocation9], 0
    %s21 = scalar_lea.sflag [#allocation9], 1
    %22 = vsyncpa %s21, 0
    loop: start=0, step=1, limit=4
    $region2: #{tpu_custom_call.1} parent=1 // loop_pre_header
      _
    $region3: #{tpu_custom_call.1} parent=1 // loop_header
      %s24 = sphi 0, %s28
      %p25 = scmp.ge.s32.totalorder %s24, 4
      %s31 = sphi 0, %s43
      %s32 = sphi 0, %s39
      %s33 = sphi 0, %s31
      %s34 = sphi 0, %s32
      %s35 = sphi 0, %s33
      %s36 = sphi 0, %s34
      %s46 = sphi 0, %s48
      %s49 = sphi 0, %s46
      %s50 = sphi 0, %s49
      %s66 = sphi 0, %s50
      %s70 = sphi 0, %s70
      %s72 = sphi 0, %s70
      %s73 = sphi 0, %s72
      %s87 = sphi 0, %s73
      %s91 = sphi 0, %s91
      %s93 = sphi 0, %s91
      %s94 = sphi 0, %s93
      %s108 = sphi 0, %s94
      %s112 = sphi 0, %s112
      %s114 = sphi 0, %s112
      %s115 = sphi 0, %s114
      %s129 = sphi 0, %s115
      %s133 = sphi 0, %s133
      %s135 = sphi 0, %s133
      %s136 = sphi 0, %s135
      %s150 = sphi 0, %s136
      %s154 = sphi 0, %s154
      %s156 = sphi 0, %s154
      %s157 = sphi 0, %s156
      %s171 = sphi 0, %s157
      %s175 = sphi 0, %s175
      %s177 = sphi 0, %s175
      %s178 = sphi 0, %s177
      %s192 = sphi 0, %s178
      %s196 = sphi 0, %s196
      %s198 = sphi 0, %s196
      %s199 = sphi 0, %s198
      %s213 = sphi 0, %s199
      %s217 = sphi 0, %s217
      %s219 = sphi 0, %s217
      %s220 = sphi 0, %s219
      %s234 = sphi 0, %s220
      %s238 = sphi 0, %s238
      %s240 = sphi 0, %s238
      %s241 = sphi 0, %s240
      %s255 = sphi 0, %s241
      %s259 = sphi 0, %s259
      %s261 = sphi 0, %s259
      %s262 = sphi 0, %s261
      %s276 = sphi 0, %s262
      %s280 = sphi 0, %s280
      %s282 = sphi 0, %s280
      %s283 = sphi 0, %s282
      %s297 = sphi 0, %s283
      %s301 = sphi 0, %s301
      %s303 = sphi 0, %s301
      %s304 = sphi 0, %s303
      %s318 = sphi 0, %s304
      %s326 = sphi 0, %s328
      %s329 = sphi 0, %s326
      %s330 = sphi 0, %s329
      %s346 = sphi 0, %s330
    $region4: #{tpu_custom_call.1} parent=1 // loop_header_branch
      %27 = sbr.rel (%p25) target = $region8
    $region5: #{tpu_custom_call.1} parent=1 // loop_body
      %s29 = ssub.s32 %s24, 1
      %s30 = ssub.s32 %s24, 2
      %s37 = sadd.s32 1, %s32
      %p38 = scmp.ge.s32.totalorder %s37, 1
      %s39 = scalar_select %p38, 0, %s37
      %s40 = sadd.s32 1, %s31
      %s41 = scalar_select %p38, %s40, %s31
      %p42 = scmp.ge.s32.totalorder %s41, 2
      %s43 = scalar_select %p42, 0, %s41
      %s44 = ssub.s32 %s31, %s43
      %p45 = scmp.eq.s32.totalorder %s44, 0
      %s47 = sadd.s32 %s46, 1
      %s48 = scalar_select %p45, %s46, %s47
      %p51 = pneg %p45
      %p52 = scmp.eq.s32.totalorder %s24, 1
      %p53 = por %p51, %p52
      %p54 = scmp.ne.s32.totalorder %s46, %s49
      %p55 = scmp.eq.s32.totalorder %s24, 0
      %p56 = por %p54, %p55
      %p57 = scmp.ne.s32.totalorder %s46, %s49
      %p58 = scmp.eq.s32.totalorder %s29, 1
      %p59 = por %p57, %p58
      %p60 = scmp.ne.s32.totalorder %s49, %s50
      %p61 = scmp.eq.s32.totalorder %s29, 0
      %p62 = por %p60, %p61
      %p63 = scmp.ne.s32.totalorder %s49, %s50
      %p64 = scmp.eq.s32.totalorder %s30, 1
      %p65 = por %p63, %p64
      %p67 = scmp.ne.s32.totalorder %s50, %s66
      %p68 = scmp.eq.s32.totalorder %s30, 0
      %p69 = por %p67, %p68
      %s71 = sadd.s32 %s70, 1
      %p74 = scmp.eq.s32.totalorder %s24, 1
      %p75 = scmp.ne.s32.totalorder %s70, %s72
      %p76 = scmp.eq.s32.totalorder %s24, 0
      %p77 = por %p75, %p76
      %p78 = scmp.ne.s32.totalorder %s70, %s72
      %p79 = scmp.eq.s32.totalorder %s29, 1
      %p80 = por %p78, %p79
      %p81 = scmp.ne.s32.totalorder %s72, %s73
      %p82 = scmp.eq.s32.totalorder %s29, 0
      %p83 = por %p81, %p82
      %p84 = scmp.ne.s32.totalorder %s72, %s73
      %p85 = scmp.eq.s32.totalorder %s30, 1
      %p86 = por %p84, %p85
      %p88 = scmp.ne.s32.totalorder %s73, %s87
      %p89 = scmp.eq.s32.totalorder %s30, 0
      %p90 = por %p88, %p89
      %s92 = sadd.s32 %s91, 1
      %p95 = scmp.eq.s32.totalorder %s24, 1
      %p96 = scmp.ne.s32.totalorder %s91, %s93
      %p97 = scmp.eq.s32.totalorder %s24, 0
      %p98 = por %p96, %p97
      %p99 = scmp.ne.s32.totalorder %s91, %s93
      %p100 = scmp.eq.s32.totalorder %s29, 1
      %p101 = por %p99, %p100
      %p102 = scmp.ne.s32.totalorder %s93, %s94
      %p103 = scmp.eq.s32.totalorder %s29, 0
      %p104 = por %p102, %p103
      %p105 = scmp.ne.s32.totalorder %s93, %s94
      %p106 = scmp.eq.s32.totalorder %s30, 1
      %p107 = por %p105, %p106
      %p109 = scmp.ne.s32.totalorder %s94, %s108
      %p110 = scmp.eq.s32.totalorder %s30, 0
      %p111 = por %p109, %p110
      %s113 = sadd.s32 %s112, 1
      %p116 = scmp.eq.s32.totalorder %s24, 1
      %p117 = scmp.ne.s32.totalorder %s112, %s114
      %p118 = scmp.eq.s32.totalorder %s24, 0
      %p119 = por %p117, %p118
      %p120 = scmp.ne.s32.totalorder %s112, %s114
      %p121 = scmp.eq.s32.totalorder %s29, 1
      %p122 = por %p120, %p121
      %p123 = scmp.ne.s32.totalorder %s114, %s115
      %p124 = scmp.eq.s32.totalorder %s29, 0
      %p125 = por %p123, %p124
      %p126 = scmp.ne.s32.totalorder %s114, %s115
      %p127 = scmp.eq.s32.totalorder %s30, 1
      %p128 = por %p126, %p127
      %p130 = scmp.ne.s32.totalorder %s115, %s129
      %p131 = scmp.eq.s32.totalorder %s30, 0
      %p132 = por %p130, %p131
      %s134 = sadd.s32 %s133, 1
      %p137 = scmp.eq.s32.totalorder %s24, 1
      %p138 = scmp.ne.s32.totalorder %s133, %s135
      %p139 = scmp.eq.s32.totalorder %s24, 0
      %p140 = por %p138, %p139
      %p141 = scmp.ne.s32.totalorder %s133, %s135
      %p142 = scmp.eq.s32.totalorder %s29, 1
      %p143 = por %p141, %p142
      %p144 = scmp.ne.s32.totalorder %s135, %s136
      %p145 = scmp.eq.s32.totalorder %s29, 0
      %p146 = por %p144, %p145
      %p147 = scmp.ne.s32.totalorder %s135, %s136
      %p148 = scmp.eq.s32.totalorder %s30, 1
      %p149 = por %p147, %p148
      %p151 = scmp.ne.s32.totalorder %s136, %s150
      %p152 = scmp.eq.s32.totalorder %s30, 0
      %p153 = por %p151, %p152
      %s155 = sadd.s32 %s154, 1
      %p158 = scmp.eq.s32.totalorder %s24, 1
      %p159 = scmp.ne.s32.totalorder %s154, %s156
      %p160 = scmp.eq.s32.totalorder %s24, 0
      %p161 = por %p159, %p160
      %p162 = scmp.ne.s32.totalorder %s154, %s156
      %p163 = scmp.eq.s32.totalorder %s29, 1
      %p164 = por %p162, %p163
      %p165 = scmp.ne.s32.totalorder %s156, %s157
      %p166 = scmp.eq.s32.totalorder %s29, 0
      %p167 = por %p165, %p166
      %p168 = scmp.ne.s32.totalorder %s156, %s157
      %p169 = scmp.eq.s32.totalorder %s30, 1
      %p170 = por %p168, %p169
      %p172 = scmp.ne.s32.totalorder %s157, %s171
      %p173 = scmp.eq.s32.totalorder %s30, 0
      %p174 = por %p172, %p173
      %s176 = sadd.s32 %s175, 1
      %p179 = scmp.eq.s32.totalorder %s24, 1
      %p180 = scmp.ne.s32.totalorder %s175, %s177
      %p181 = scmp.eq.s32.totalorder %s24, 0
      %p182 = por %p180, %p181
      %p183 = scmp.ne.s32.totalorder %s175, %s177
      %p184 = scmp.eq.s32.totalorder %s29, 1
      %p185 = por %p183, %p184
      %p186 = scmp.ne.s32.totalorder %s177, %s178
      %p187 = scmp.eq.s32.totalorder %s29, 0
      %p188 = por %p186, %p187
      %p189 = scmp.ne.s32.totalorder %s177, %s178
      %p190 = scmp.eq.s32.totalorder %s30, 1
      %p191 = por %p189, %p190
      %p193 = scmp.ne.s32.totalorder %s178, %s192
      %p194 = scmp.eq.s32.totalorder %s30, 0
      %p195 = por %p193, %p194
      %s197 = sadd.s32 %s196, 1
      %p200 = scmp.eq.s32.totalorder %s24, 1
      %p201 = scmp.ne.s32.totalorder %s196, %s198
      %p202 = scmp.eq.s32.totalorder %s24, 0
      %p203 = por %p201, %p202
      %p204 = scmp.ne.s32.totalorder %s196, %s198
      %p205 = scmp.eq.s32.totalorder %s29, 1
      %p206 = por %p204, %p205
      %p207 = scmp.ne.s32.totalorder %s198, %s199
      %p208 = scmp.eq.s32.totalorder %s29, 0
      %p209 = por %p207, %p208
      %p210 = scmp.ne.s32.totalorder %s198, %s199
      %p211 = scmp.eq.s32.totalorder %s30, 1
      %p212 = por %p210, %p211
      %p214 = scmp.ne.s32.totalorder %s199, %s213
      %p215 = scmp.eq.s32.totalorder %s30, 0
      %p216 = por %p214, %p215
      %s218 = sadd.s32 %s217, 1
      %p221 = scmp.eq.s32.totalorder %s24, 1
      %p222 = scmp.ne.s32.totalorder %s217, %s219
      %p223 = scmp.eq.s32.totalorder %s24, 0
      %p224 = por %p222, %p223
      %p225 = scmp.ne.s32.totalorder %s217, %s219
      %p226 = scmp.eq.s32.totalorder %s29, 1
      %p227 = por %p225, %p226
      %p228 = scmp.ne.s32.totalorder %s219, %s220
      %p229 = scmp.eq.s32.totalorder %s29, 0
      %p230 = por %p228, %p229
      %p231 = scmp.ne.s32.totalorder %s219, %s220
      %p232 = scmp.eq.s32.totalorder %s30, 1
      %p233 = por %p231, %p232
      %p235 = scmp.ne.s32.totalorder %s220, %s234
      %p236 = scmp.eq.s32.totalorder %s30, 0
      %p237 = por %p235, %p236
      %s239 = sadd.s32 %s238, 1
      %p242 = scmp.eq.s32.totalorder %s24, 1
      %p243 = scmp.ne.s32.totalorder %s238, %s240
      %p244 = scmp.eq.s32.totalorder %s24, 0
      %p245 = por %p243, %p244
      %p246 = scmp.ne.s32.totalorder %s238, %s240
      %p247 = scmp.eq.s32.totalorder %s29, 1
      %p248 = por %p246, %p247
      %p249 = scmp.ne.s32.totalorder %s240, %s241
      %p250 = scmp.eq.s32.totalorder %s29, 0
      %p251 = por %p249, %p250
      %p252 = scmp.ne.s32.totalorder %s240, %s241
      %p253 = scmp.eq.s32.totalorder %s30, 1
      %p254 = por %p252, %p253
      %p256 = scmp.ne.s32.totalorder %s241, %s255
      %p257 = scmp.eq.s32.totalorder %s30, 0
      %p258 = por %p256, %p257
      %s260 = sadd.s32 %s259, 1
      %p263 = scmp.eq.s32.totalorder %s24, 1
      %p264 = scmp.ne.s32.totalorder %s259, %s261
      %p265 = scmp.eq.s32.totalorder %s24, 0
      %p266 = por %p264, %p265
      %p267 = scmp.ne.s32.totalorder %s259, %s261
      %p268 = scmp.eq.s32.totalorder %s29, 1
      %p269 = por %p267, %p268
      %p270 = scmp.ne.s32.totalorder %s261, %s262
      %p271 = scmp.eq.s32.totalorder %s29, 0
      %p272 = por %p270, %p271
      %p273 = scmp.ne.s32.totalorder %s261, %s262
      %p274 = scmp.eq.s32.totalorder %s30, 1
      %p275 = por %p273, %p274
      %p277 = scmp.ne.s32.totalorder %s262, %s276
      %p278 = scmp.eq.s32.totalorder %s30, 0
      %p279 = por %p277, %p278
      %s281 = sadd.s32 %s280, 1
      %p284 = scmp.eq.s32.totalorder %s24, 1
      %p285 = scmp.ne.s32.totalorder %s280, %s282
      %p286 = scmp.eq.s32.totalorder %s24, 0
      %p287 = por %p285, %p286
      %p288 = scmp.ne.s32.totalorder %s280, %s282
      %p289 = scmp.eq.s32.totalorder %s29, 1
      %p290 = por %p288, %p289
      %p291 = scmp.ne.s32.totalorder %s282, %s283
      %p292 = scmp.eq.s32.totalorder %s29, 0
      %p293 = por %p291, %p292
      %p294 = scmp.ne.s32.totalorder %s282, %s283
      %p295 = scmp.eq.s32.totalorder %s30, 1
      %p296 = por %p294, %p295
      %p298 = scmp.ne.s32.totalorder %s283, %s297
      %p299 = scmp.eq.s32.totalorder %s30, 0
      %p300 = por %p298, %p299
      %s302 = sadd.s32 %s301, 1
      %p305 = scmp.eq.s32.totalorder %s24, 1
      %p306 = scmp.ne.s32.totalorder %s301, %s303
      %p307 = scmp.eq.s32.totalorder %s24, 0
      %p308 = por %p306, %p307
      %p309 = scmp.ne.s32.totalorder %s301, %s303
      %p310 = scmp.eq.s32.totalorder %s29, 1
      %p311 = por %p309, %p310
      %p312 = scmp.ne.s32.totalorder %s303, %s304
      %p313 = scmp.eq.s32.totalorder %s29, 0
      %p314 = por %p312, %p313
      %p315 = scmp.ne.s32.totalorder %s303, %s304
      %p316 = scmp.eq.s32.totalorder %s30, 1
      %p317 = por %p315, %p316
      %p319 = scmp.ne.s32.totalorder %s304, %s318
      %p320 = scmp.eq.s32.totalorder %s30, 0
      %p321 = por %p319, %p320
      %s322 = ssub.s32 %s31, %s43
      %s323 = ssub.s32 %s32, %s39
      %s324 = sor.u32 %s322, %s323
      %p325 = scmp.eq.s32.totalorder %s324, 0
      %s327 = sadd.s32 %s326, 1
      %s328 = scalar_select %p325, %s326, %s327
      %p331 = pneg %p325
      %p332 = scmp.eq.s32.totalorder %s24, 1
      %p333 = por %p331, %p332
      %p334 = scmp.ne.s32.totalorder %s326, %s329
      %p335 = scmp.eq.s32.totalorder %s24, 0
      %p336 = por %p334, %p335
      %p337 = scmp.ne.s32.totalorder %s326, %s329
      %p338 = scmp.eq.s32.totalorder %s29, 1
      %p339 = por %p337, %p338
      %p340 = scmp.ne.s32.totalorder %s329, %s330
      %p341 = scmp.eq.s32.totalorder %s29, 0
      %p342 = por %p340, %p341
      %p343 = scmp.ne.s32.totalorder %s329, %s330
      %p344 = scmp.eq.s32.totalorder %s30, 1
      %p345 = por %p343, %p344
      %p347 = scmp.ne.s32.totalorder %s330, %s346
      %p348 = scmp.eq.s32.totalorder %s30, 0
      %p349 = por %p347, %p348
      %p350 = scmp.le.s32.totalorder 1, %s24
      %p351 = scmp.lt.s32.totalorder %s24, 3
      %p352 = pnand %p350, %p351
      %p353 = pneg %p352
      // Predicated region
      $region9: #{tpu_custom_call.1} parent=5 // pred_check
        _
      $region10: #{tpu_custom_call.1} parent=5 // pred_check_branch
        %355 = sbr.rel (%p352) target = $region12
      $region11: #{tpu_custom_call.1} parent=5 // pred_region
        %s356 = ssub.s32 %s24, 1
        // Predicated region
        $region13: #{tpu_custom_call.1} parent=11 // pred_check
          %p357 = pneg %p83
        $region14: #{tpu_custom_call.1} parent=11 // pred_check_branch
          %359 = sbr.rel (%p357) target = $region16
        $region15: #{tpu_custom_call.1} parent=11 // pred_region
          _
        $region16: #{tpu_custom_call.1} parent=11 // pred_fallthru
          _
        // Predicated region
        $region17: #{tpu_custom_call.1} parent=11 // pred_check
          %p360 = pneg %p104
        $region18: #{tpu_custom_call.1} parent=11 // pred_check_branch
          %362 = sbr.rel (%p360) target = $region20
        $region19: #{tpu_custom_call.1} parent=11 // pred_region
          _
        $region20: #{tpu_custom_call.1} parent=11 // pred_fallthru
          _
        // Predicated region
        $region21: #{tpu_custom_call.1} parent=11 // pred_check
          %p363 = pneg %p125
        $region22: #{tpu_custom_call.1} parent=11 // pred_check_branch
          %365 = sbr.rel (%p363) target = $region24
        $region23: #{tpu_custom_call.1} parent=11 // pred_region
          _
        $region24: #{tpu_custom_call.1} parent=11 // pred_fallthru
          _
        // Predicated region
        $region25: #{tpu_custom_call.1} parent=11 // pred_check
          %p366 = pneg %p146
        $region26: #{tpu_custom_call.1} parent=11 // pred_check_branch
          %368 = sbr.rel (%p366) target = $region28
        $region27: #{tpu_custom_call.1} parent=11 // pred_region
          _
        $region28: #{tpu_custom_call.1} parent=11 // pred_fallthru
          _
        // Predicated region
        $region29: #{tpu_custom_call.1} parent=11 // pred_check
          %p369 = pneg %p167
        $region30: #{tpu_custom_call.1} parent=11 // pred_check_branch
          %371 = sbr.rel (%p369) target = $region32
        $region31: #{tpu_custom_call.1} parent=11 // pred_region
          _
        $region32: #{tpu_custom_call.1} parent=11 // pred_fallthru
          _
        // Predicated region
        $region33: #{tpu_custom_call.1} parent=11 // pred_check
          %p372 = pneg %p188
        $region34: #{tpu_custom_call.1} parent=11 // pred_check_branch
          %374 = sbr.rel (%p372) target = $region36
        $region35: #{tpu_custom_call.1} parent=11 // pred_region
          _
        $region36: #{tpu_custom_call.1} parent=11 // pred_fallthru
          _
        // Predicated region
        $region37: #{tpu_custom_call.1} parent=11 // pred_check
          %p375 = pneg %p209
        $region38: #{tpu_custom_call.1} parent=11 // pred_check_branch
          %377 = sbr.rel (%p375) target = $region40
        $region39: #{tpu_custom_call.1} parent=11 // pred_region
          _
        $region40: #{tpu_custom_call.1} parent=11 // pred_fallthru
          _
        // Predicated region
        $region41: #{tpu_custom_call.1} parent=11 // pred_check
          %p378 = pneg %p230
        $region42: #{tpu_custom_call.1} parent=11 // pred_check_branch
          %380 = sbr.rel (%p378) target = $region44
        $region43: #{tpu_custom_call.1} parent=11 // pred_region
          %s382 = ssub.s32 16, 16
          %383 = vsyncadd [#allocation8], %s382
          %s385 = sshll.u32 [#allocation7], 4
          %s386 = int_to_ptr.vmem [resolvable:$true] %s385
          %388 = dma.hbm_to_vmem [thread:$0]  %s8, 16, %s386, [#allocation8]
        $region44: #{tpu_custom_call.1} parent=11 // pred_fallthru
          _
        // Predicated region
        $region45: #{tpu_custom_call.1} parent=11 // pred_check
          %p389 = pneg %p251
        $region46: #{tpu_custom_call.1} parent=11 // pred_check_branch
          %391 = sbr.rel (%p389) target = $region48
        $region47: #{tpu_custom_call.1} parent=11 // pred_region
          _
        $region48: #{tpu_custom_call.1} parent=11 // pred_fallthru
          _
        // Predicated region
        $region49: #{tpu_custom_call.1} parent=11 // pred_check
          %p392 = pneg %p272
        $region50: #{tpu_custom_call.1} parent=11 // pred_check_branch
          %394 = sbr.rel (%p392) target = $region52
        $region51: #{tpu_custom_call.1} parent=11 // pred_region
          %s396 = ssub.s32 16, 16
          %397 = vsyncadd [#allocation11], %s396
          %s399 = sshll.u32 [#allocation10], 4
          %s400 = int_to_ptr.vmem [resolvable:$true] %s399
          %402 = dma.hbm_to_vmem [thread:$0]  %s10, 16, %s400, [#allocation11]
        $region52: #{tpu_custom_call.1} parent=11 // pred_fallthru
          _
        // Predicated region
        $region53: #{tpu_custom_call.1} parent=11 // pred_check
          %p403 = pneg %p293
        $region54: #{tpu_custom_call.1} parent=11 // pred_check_branch
          %405 = sbr.rel (%p403) target = $region56
        $region55: #{tpu_custom_call.1} parent=11 // pred_region
          _
        $region56: #{tpu_custom_call.1} parent=11 // pred_fallthru
          _
        // Predicated region
        $region57: #{tpu_custom_call.1} parent=11 // pred_check
          %p406 = pneg %p314
        $region58: #{tpu_custom_call.1} parent=11 // pred_check_branch
          %408 = sbr.rel (%p406) target = $region60
        $region59: #{tpu_custom_call.1} parent=11 // pred_region
          _
        $region60: #{tpu_custom_call.1} parent=11 // pred_fallthru
          _
      $region12: #{tpu_custom_call.1} parent=5 // pred_fallthru
        _
      %p409 = scmp.lt.s32.totalorder %s24, 2
      // Predicated region
      $region61: #{tpu_custom_call.1} parent=5 // pred_check
        %p410 = pneg %p409
      $region62: #{tpu_custom_call.1} parent=5 // pred_check_branch
        %412 = sbr.rel (%p410) target = $region64
      $region63: #{tpu_custom_call.1} parent=5 // pred_region
        // Predicated region
        $region65: #{tpu_custom_call.1} parent=63 // pred_check
          %p413 = pneg %p56
        $region66: #{tpu_custom_call.1} parent=63 // pred_check_branch
          %415 = sbr.rel (%p413) target = $region68
        $region67: #{tpu_custom_call.1} parent=63 // pred_region
          %p416 = scmp.lt.s32.totalorder %s31, 1
          %s417 = scalar_select %p416, %s31, 1
          %s418 = smul.addr %s417, 8
          %s419 = scalar_lea.vmem %s0, %s418
        $region68: #{tpu_custom_call.1} parent=63 // pred_fallthru
          _
      $region64: #{tpu_custom_call.1} parent=5 // pred_fallthru
        _
      %p420 = scmp.le.s32.totalorder 1, %s24
      %p421 = scmp.lt.s32.totalorder %s24, 3
      %p422 = pnand %p420, %p421
      %p423 = pneg %p422
      // Predicated region
      $region69: #{tpu_custom_call.1} parent=5 // pred_check
        _
      $region70: #{tpu_custom_call.1} parent=5 // pred_check_branch
        %425 = sbr.rel (%p422) target = $region72
      $region71: #{tpu_custom_call.1} parent=5 // pred_region
        %s426 = ssub.s32 %s24, 1
        // Predicated region
        $region73: #{tpu_custom_call.1} parent=71 // pred_check
          %p427 = pneg %p230
        $region74: #{tpu_custom_call.1} parent=71 // pred_check_branch
          %429 = sbr.rel (%p427) target = $region76
        $region75: #{tpu_custom_call.1} parent=71 // pred_region
          %430 = dma.done [#allocation8], 16
        $region76: #{tpu_custom_call.1} parent=71 // pred_fallthru
          _
        // Predicated region
        $region77: #{tpu_custom_call.1} parent=71 // pred_check
          %p431 = pneg %p272
        $region78: #{tpu_custom_call.1} parent=71 // pred_check_branch
          %433 = sbr.rel (%p431) target = $region80
        $region79: #{tpu_custom_call.1} parent=71 // pred_region
          %434 = dma.done [#allocation11], 16
        $region80: #{tpu_custom_call.1} parent=71 // pred_fallthru
          _
        %p435 = scmp.lt.s32.totalorder %s33, 1
        %s436 = scalar_select %p435, %s33, 1
        %s437 = smul.addr %s436, 8
        %s438 = scalar_lea.vmem %s0, %s437
        %p439 = pneg %p62
        %p440 = pneg %p59
        %p441 = pneg %p83
        %p442 = pneg %p80
        %p443 = pneg %p104
        %p444 = pneg %p101
        %p445 = pneg %p125
        %p446 = pneg %p122
        %p447 = pneg %p146
        %p448 = pneg %p143
        %p449 = pneg %p167
        %p450 = pneg %p164
        %p451 = pneg %p188
        %p452 = pneg %p185
        %p453 = pneg %p209
        %p454 = pneg %p206
        %p455 = pneg %p230
        %p456 = pneg %p227
        %p457 = pneg %p251
        %p458 = pneg %p248
        %p459 = pneg %p272
        %p460 = pneg %p269
        %p461 = pneg %p293
        %p462 = pneg %p290
        %p463 = pneg %p314
        %p464 = pneg %p311
        %p465 = pneg %p342
        %p466 = pneg %p339
        %s467 = sand.u32 %s329, 1
        %s468 = scalar_lea.sflag [#allocation9], %s467
        %s469 = sand.u32 %s329, 1
        %s470 = smul.addr %s469, 8
        %s471 = scalar_lea.vmem [#allocation12], %s470
        %p472 = scmp.lt.s32.totalorder %s33, 1
        %s473 = scalar_select %p472, %s33, 1
        %s474 = smul.addr %s473, 8
        %s475 = scalar_lea.vmem %s0, %s474
        %v477 = vld [vmem:[%s1] sm:$0x1]
        %v478 = vld [vmem:[%s2] sm:$0x1]
        %s479 = smul.u32 %s34, 8
        %p480 = scmp.eq.s32.totalorder %s34, 0
        // Predicated region
        $region81: #{tpu_custom_call.1} parent=71 // pred_check
          %p481 = pneg %p480
        $region82: #{tpu_custom_call.1} parent=71 // pred_check_branch
          %483 = sbr.rel (%p481) target = $region84
        $region83: #{tpu_custom_call.1} parent=71 // pred_region
          %v484 = vld [vmem:[%s475] sm:$0xff]
          %vm485 = vcmask 261120
          %v486 = vsel %vm485, %v484, 0.0
          %487 = vadd.xlane.f32.xlu0 %v486
          %v488 = vpop.xlane.xlu0 %487
          %v489 = vrcp.pop 32.0
          %v490 = vmul.f32 %v488, %v489
          %v491 = vsub.f32 %v484, %v490
          %v492 = vmul.f32 %v491, %v491
          %v493 = vsel %vm485, %v492, 0.0
          %494 = vadd.xlane.f32.xlu0 %v493
          %v495 = vpop.xlane.xlu0 %494
          %v496 = vmul.f32 %v495, %v489
          %v497 = vadd.f32 %v496, 1e-05
          %v498 = vrsqrt.pop %v497
          %v499 = vmul.f32 %v491, %v498
          %v501 = vlaneseq
          %v502 = vshrl.u32 %v501, 7
          %v503 = vsub.s32 0, %v502
          %v504 = vrot.slane %v477, %v503
          %v506 = vmul.f32 %v499, %v504
          %v508 = vlaneseq
          %v509 = vshrl.u32 %v508, 7
          %v510 = vsub.s32 0, %v509
          %v511 = vrot.slane %v478, %v510
          %v513 = vadd.f32 %v506, %v511
          %v514 = vpack.c.bf16 %v513, %v513
          %v515 = vld [vmem:[%s4] sm:$0xf]
          %v516 = vld [vmem:[%s4 + $0x4] sm:$0xf]
          %v517 = vld [vmem:[%s4 + $0x8] sm:$0xf]
          %v518 = vld [vmem:[%s4 + $0xc] sm:$0xf]
          %v523 = vunpack.c.l.b16 %v515
          %v524 = vunpack.c.l.b16 %v516
          %v525 = vunpack.c.l.b16 %v517
          %v526 = vunpack.c.l.b16 %v518
          %v527 = vpack.c.b16 %v524, %v523
          %v528 = vpack.c.b16 %v526, %v525
          %v532 = vsel %vm485, %v514, 0
          %534 = vmatprep.subr.bf16.mxu0 0
          %535 = vmatpush1.bf16.msra.mxu0 0
          %536 = vmatprep.subr.bf16.mxu0 0
          %537 = vmatpush1.bf16.msra.mxu0 0
          %538 = vmatprep.subr.bf16.mxu0 0
          %539 = vmatpush1.bf16.msra.mxu0 0
          %540 = vmatprep.subr.bf16.mxu0 0
          %541 = vmatpush1.bf16.msra.mxu0 0
          %542 = vmatprep.subr.bf16.mxu0 0
          %543 = vmatpush1.bf16.msra.mxu0 0
          %544 = vmatprep.subr.bf16.mxu0 0
          %545 = vmatpush1.bf16.msra.mxu0 0
          %546 = vmatprep.subr.bf16.mxu0 0
          %547 = vmatpush1.bf16.msra.mxu0 %v528
          %548 = vmatprep.subr.bf16.mxu0 0
          %549 = vmatpush1.bf16.msra.mxu0 %v527
          %550 = vmatprep.subr.bf16.mxu0 0
          %551 = vmatpush2.bf16.msra.mxu0 0
          %552 = vmatprep.subr.bf16.mxu0 0
          %553 = vmatpush2.bf16.msra.mxu0 0
          %554 = vmatprep.subr.bf16.mxu0 0
          %555 = vmatpush2.bf16.msra.mxu0 0
          %556 = vmatprep.subr.bf16.mxu0 0
          %557 = vmatpush2.bf16.msra.mxu0 0
          %558 = vmatprep.subr.bf16.mxu0 0
          %559 = vmatpush2.bf16.msra.mxu0 0
          %560 = vmatprep.subr.bf16.mxu0 0
          %561 = vmatpush2.bf16.msra.mxu0 0
          %562 = vmatprep.subr.bf16.mxu0 0
          %563 = vmatpush2.bf16.msra.mxu0 0
          %564 = vmatprep.subr.bf16.mxu0 0
          %565 = vmatpush2.bf16.msra.mxu0 0
          %566 = vmatprep.mubr.bf16.mxu0 0
          %567 = vmatmul.mubr.bf16.gmra.mxu0 %v532
          %v568 = vpop.f32.mrf.mxu0
          %v569 = vadd.f32 0.0, %v568
          %v570 = vpop.f32.mrf.mxu0
          %v571 = vpop.f32.mrf.mxu0
          %v572 = vpop.f32.mrf.mxu0
          %573 = vdwg.mxu0
          %575 = vrot.lane.b32.xlu0 %v569, 120
          %v576 = vpop.permute.xlu0 %575
          %578 = vrot.lane.b32.xlu0 %v569, 112
          %v579 = vpop.permute.xlu0 %578
          %581 = vrot.lane.b32.xlu0 %v569, 104
          %v582 = vpop.permute.xlu0 %581
          %v584 = vcombine.low %v569, %v579
          %v585 = vcombine.high %v569, %v579
          %v587 = vunpack.c.l.s4 1983009808
          %v588 = vunpack.c.0.s8 %v587
          %v589 = vlaneseq
          %v590 = vshrl.u32 %v589, 7
          %v591 = vsub.s32 %v588, %v590
          %v592 = vrot.slane %v584, %v591
          %v594 = vunpack.c.l.s4 1983009808
          %v595 = vunpack.c.0.s8 %v594
          %v596 = vlaneseq
          %v597 = vshrl.u32 %v596, 7
          %v598 = vsub.s32 %v595, %v597
          %v599 = vrot.slane %v585, %v598
          %v600 = vcombine.low %v576, %v582
          %v601 = vcombine.high %v576, %v582
          %v603 = vunpack.c.l.s4 1983009808
          %v604 = vunpack.c.0.s8 %v603
          %v605 = vlaneseq
          %v606 = vshrl.u32 %v605, 7
          %v607 = vsub.s32 %v604, %v606
          %v608 = vrot.slane %v600, %v607
          %v610 = vunpack.c.l.s4 1983009808
          %v611 = vunpack.c.0.s8 %v610
          %v612 = vlaneseq
          %v613 = vshrl.u32 %v612, 7
          %v614 = vsub.s32 %v611, %v613
          %v615 = vrot.slane %v601, %v614
          %v616 = vcombine.low %v592, %v608
          %v617 = vcombine.high %v592, %v608
          %v619 = vunpack.c.l.s4 1934713408
          %v620 = vunpack.c.0.s8 %v619
          %v621 = vlaneseq
          %v622 = vshrl.u32 %v621, 7
          %v623 = vsub.s32 %v620, %v622
          %v624 = vrot.slane %v616, %v623
          %v626 = vunpack.c.l.s4 1934713408
          %v627 = vunpack.c.0.s8 %v626
          %v628 = vlaneseq
          %v629 = vshrl.u32 %v628, 7
          %v630 = vsub.s32 %v627, %v629
          %v631 = vrot.slane %v617, %v630
          %v632 = vcombine.low %v599, %v615
          %v633 = vcombine.high %v599, %v615
          %v635 = vunpack.c.l.s4 1934713408
          %v636 = vunpack.c.0.s8 %v635
          %v637 = vlaneseq
          %v638 = vshrl.u32 %v637, 7
          %v639 = vsub.s32 %v636, %v638
          %v640 = vrot.slane %v632, %v639
          %v642 = vunpack.c.l.s4 1934713408
          %v643 = vunpack.c.0.s8 %v642
          %v644 = vlaneseq
          %v645 = vshrl.u32 %v644, 7
          %v646 = vsub.s32 %v643, %v645
          %v647 = vrot.slane %v633, %v646
          %v648 = vcombine.high %v624, 0.0
          %v649 = vcombine.high %v631, 0.0
          %v650 = vcombine.high %v640, 0.0
          %v651 = vcombine.high %v647, 0.0
          %v652 = vcombine.low %v624, %v631
          %v654 = vunpack.c.l.s4 1983009808
          %v655 = vunpack.c.0.s8 %v654
          %v656 = vlaneseq
          %v657 = vshrl.u32 %v656, 7
          %v658 = vsub.s32 %v655, %v657
          %v659 = vrot.slane %v652, %v658
          %v660 = vcombine.low %v648, %v649
          %v662 = vunpack.c.l.s4 1983009808
          %v663 = vunpack.c.0.s8 %v662
          %v664 = vlaneseq
          %v665 = vshrl.u32 %v664, 7
          %v666 = vsub.s32 %v663, %v665
          %v667 = vrot.slane %v660, %v666
          %v668 = vcombine.low %v640, %v647
          %v670 = vunpack.c.l.s4 1983009808
          %v671 = vunpack.c.0.s8 %v670
          %v672 = vlaneseq
          %v673 = vshrl.u32 %v672, 7
          %v674 = vsub.s32 %v671, %v673
          %v675 = vrot.slane %v668, %v674
          %v676 = vcombine.low %v650, %v651
          %v678 = vunpack.c.l.s4 1983009808
          %v679 = vunpack.c.0.s8 %v678
          %v680 = vlaneseq
          %v681 = vshrl.u32 %v680, 7
          %v682 = vsub.s32 %v679, %v681
          %v683 = vrot.slane %v676, %v682
          %v684 = vcombine.low %v659, %v667
          %v685 = vcombine.high %v659, %v667
          %v687 = vunpack.c.l.s4 1934713408
          %v688 = vunpack.c.0.s8 %v687
          %v689 = vlaneseq
          %v690 = vshrl.u32 %v689, 7
          %v691 = vsub.s32 %v688, %v690
          %v692 = vrot.slane %v684, %v691
          %v694 = vunpack.c.l.s4 1934713408
          %v695 = vunpack.c.0.s8 %v694
          %v696 = vlaneseq
          %v697 = vshrl.u32 %v696, 7
          %v698 = vsub.s32 %v695, %v697
          %v699 = vrot.slane %v685, %v698
          %v700 = vcombine.low %v675, %v683
          %v701 = vcombine.high %v675, %v683
          %v703 = vunpack.c.l.s4 1934713408
          %v704 = vunpack.c.0.s8 %v703
          %v705 = vlaneseq
          %v706 = vshrl.u32 %v705, 7
          %v707 = vsub.s32 %v704, %v706
          %v708 = vrot.slane %v700, %v707
          %v710 = vunpack.c.l.s4 1934713408
          %v711 = vunpack.c.0.s8 %v710
          %v712 = vlaneseq
          %v713 = vshrl.u32 %v712, 7
          %v714 = vsub.s32 %v711, %v713
          %v715 = vrot.slane %v701, %v714
          %v716 = vcombine.low %v692, %v708
          %v717 = vcombine.high %v692, %v708
          %v718 = vcombine.low %v699, %v715
          %v719 = vcombine.high %v699, %v715
          %720 = vrot.lane.b32.xlu0 %v569, 96
          %v721 = vpop.permute.xlu0 %720
          %722 = vrot.lane.b32.xlu0 %v576, 96
          %v723 = vpop.permute.xlu0 %722
          %724 = vrot.lane.b32.xlu0 %v579, 96
          %v725 = vpop.permute.xlu0 %724
          %726 = vrot.lane.b32.xlu0 %v582, 96
          %v727 = vpop.permute.xlu0 %726
          %v732 = vcombine.low %v721, %v725
          %v733 = vcombine.high %v721, %v725
          %v735 = vunpack.c.l.s4 1983009808
          %v736 = vunpack.c.0.s8 %v735
          %v737 = vlaneseq
          %v738 = vshrl.u32 %v737, 7
          %v739 = vsub.s32 %v736, %v738
          %v740 = vrot.slane %v732, %v739
          %v742 = vunpack.c.l.s4 1983009808
          %v743 = vunpack.c.0.s8 %v742
          %v744 = vlaneseq
          %v745 = vshrl.u32 %v744, 7
          %v746 = vsub.s32 %v743, %v745
          %v747 = vrot.slane %v733, %v746
          %v748 = vcombine.low %v723, %v727
          %v749 = vcombine.high %v723, %v727
          %v751 = vunpack.c.l.s4 1983009808
          %v752 = vunpack.c.0.s8 %v751
          %v753 = vlaneseq
          %v754 = vshrl.u32 %v753, 7
          %v755 = vsub.s32 %v752, %v754
          %v756 = vrot.slane %v748, %v755
          %v758 = vunpack.c.l.s4 1983009808
          %v759 = vunpack.c.0.s8 %v758
          %v760 = vlaneseq
          %v761 = vshrl.u32 %v760, 7
          %v762 = vsub.s32 %v759, %v761
          %v763 = vrot.slane %v749, %v762
          %v764 = vcombine.low %v740, %v756
          %v765 = vcombine.high %v740, %v756
          %v767 = vunpack.c.l.s4 1934713408
          %v768 = vunpack.c.0.s8 %v767
          %v769 = vlaneseq
          %v770 = vshrl.u32 %v769, 7
          %v771 = vsub.s32 %v768, %v770
          %v772 = vrot.slane %v764, %v771
          %v774 = vunpack.c.l.s4 1934713408
          %v775 = vunpack.c.0.s8 %v774
          %v776 = vlaneseq
          %v777 = vshrl.u32 %v776, 7
          %v778 = vsub.s32 %v775, %v777
          %v779 = vrot.slane %v765, %v778
          %v780 = vcombine.low %v747, %v763
          %v781 = vcombine.high %v747, %v763
          %v783 = vunpack.c.l.s4 1934713408
          %v784 = vunpack.c.0.s8 %v783
          %v785 = vlaneseq
          %v786 = vshrl.u32 %v785, 7
          %v787 = vsub.s32 %v784, %v786
          %v788 = vrot.slane %v780, %v787
          %v790 = vunpack.c.l.s4 1934713408
          %v791 = vunpack.c.0.s8 %v790
          %v792 = vlaneseq
          %v793 = vshrl.u32 %v792, 7
          %v794 = vsub.s32 %v791, %v793
          %v795 = vrot.slane %v781, %v794
          %v796 = vcombine.high %v772, 0.0
          %v797 = vcombine.high %v779, 0.0
          %v798 = vcombine.high %v788, 0.0
          %v799 = vcombine.high %v795, 0.0
          %v800 = vcombine.low %v772, %v779
          %v802 = vunpack.c.l.s4 1983009808
          %v803 = vunpack.c.0.s8 %v802
          %v804 = vlaneseq
          %v805 = vshrl.u32 %v804, 7
          %v806 = vsub.s32 %v803, %v805
          %v807 = vrot.slane %v800, %v806
          %v808 = vcombine.low %v796, %v797
          %v810 = vunpack.c.l.s4 1983009808
          %v811 = vunpack.c.0.s8 %v810
          %v812 = vlaneseq
          %v813 = vshrl.u32 %v812, 7
          %v814 = vsub.s32 %v811, %v813
          %v815 = vrot.slane %v808, %v814
          %v816 = vcombine.low %v788, %v795
          %v818 = vunpack.c.l.s4 1983009808
          %v819 = vunpack.c.0.s8 %v818
          %v820 = vlaneseq
          %v821 = vshrl.u32 %v820, 7
          %v822 = vsub.s32 %v819, %v821
          %v823 = vrot.slane %v816, %v822
          %v824 = vcombine.low %v798, %v799
          %v826 = vunpack.c.l.s4 1983009808
          %v827 = vunpack.c.0.s8 %v826
          %v828 = vlaneseq
          %v829 = vshrl.u32 %v828, 7
          %v830 = vsub.s32 %v827, %v829
          %v831 = vrot.slane %v824, %v830
          %v832 = vcombine.low %v807, %v815
          %v833 = vcombine.high %v807, %v815
          %v835 = vunpack.c.l.s4 1934713408
          %v836 = vunpack.c.0.s8 %v835
          %v837 = vlaneseq
          %v838 = vshrl.u32 %v837, 7
          %v839 = vsub.s32 %v836, %v838
          %v840 = vrot.slane %v832, %v839
          %v842 = vunpack.c.l.s4 1934713408
          %v843 = vunpack.c.0.s8 %v842
          %v844 = vlaneseq
          %v845 = vshrl.u32 %v844, 7
          %v846 = vsub.s32 %v843, %v845
          %v847 = vrot.slane %v833, %v846
          %v848 = vcombine.low %v823, %v831
          %v849 = vcombine.high %v823, %v831
          %v851 = vunpack.c.l.s4 1934713408
          %v852 = vunpack.c.0.s8 %v851
          %v853 = vlaneseq
          %v854 = vshrl.u32 %v853, 7
          %v855 = vsub.s32 %v852, %v854
          %v856 = vrot.slane %v848, %v855
          %v858 = vunpack.c.l.s4 1934713408
          %v859 = vunpack.c.0.s8 %v858
          %v860 = vlaneseq
          %v861 = vshrl.u32 %v860, 7
          %v862 = vsub.s32 %v859, %v861
          %v863 = vrot.slane %v849, %v862
          %v864 = vcombine.low %v840, %v856
          %v865 = vcombine.high %v840, %v856
          %v866 = vcombine.low %v847, %v863
          %v867 = vcombine.high %v847, %v863
          %v868 = vpack.c.bf16 %v716, %v716
          %v869 = vpack.c.bf16 %v717, %v717
          %v870 = vpack.c.bf16 %v718, %v718
          %v871 = vpack.c.bf16 %v719, %v719
          %vm872 = vcmask 60416
          %873 = vst.msk [vmem:[#allocation2] sm:$0xf] %vm872, %v868
          %874 = vst.msk [vmem:[#allocation2 + $0x4] sm:$0xf] %vm872, %v869
          %875 = vst.msk [vmem:[#allocation2 + $0x8] sm:$0xf] %vm872, %v870
          %876 = vst.msk [vmem:[#allocation2 + $0xc] sm:$0xf] %vm872, %v871
          %v877 = vpack.c.bf16 %v864, %v864
          %v878 = vpack.c.bf16 %v865, %v865
          %v879 = vpack.c.bf16 %v866, %v866
          %v880 = vpack.c.bf16 %v867, %v867
          %881 = vst.msk [vmem:[#allocation3] sm:$0xf] %vm872, %v877
          %882 = vst.msk [vmem:[#allocation3 + $0x4] sm:$0xf] %vm872, %v878
          %883 = vst.msk [vmem:[#allocation3 + $0x8] sm:$0xf] %vm872, %v879
          %884 = vst.msk [vmem:[#allocation3 + $0xc] sm:$0xf] %vm872, %v880
        $region84: #{tpu_custom_call.1} parent=71 // pred_fallthru
          _
        %s885 = scalar_lea.vmem %s475, %s479
        %v886 = vld [vmem:[%s885] sm:$0xff]
        %vm887 = vcmask 261120
        %v888 = vsel %vm887, %v886, 0.0
        %889 = vadd.xlane.f32.xlu0 %v888
        %v890 = vpop.xlane.xlu0 %889
        %v891 = vrcp.pop 32.0
        %v892 = vmul.f32 %v890, %v891
        %v893 = vsub.f32 %v886, %v892
        %v894 = vmul.f32 %v893, %v893
        %v895 = vsel %vm887, %v894, 0.0
        %896 = vadd.xlane.f32.xlu0 %v895
        %v897 = vpop.xlane.xlu0 %896
        %v898 = vmul.f32 %v897, %v891
        %v899 = vadd.f32 %v898, 1e-05
        %v900 = vrsqrt.pop %v899
        %v901 = vmul.f32 %v893, %v900
        %v903 = vlaneseq
        %v904 = vshrl.u32 %v903, 7
        %v905 = vsub.s32 0, %v904
        %v906 = vrot.slane %v477, %v905
        %v908 = vmul.f32 %v901, %v906
        %v910 = vlaneseq
        %v911 = vshrl.u32 %v910, 7
        %v912 = vsub.s32 0, %v911
        %v913 = vrot.slane %v478, %v912
        %v915 = vadd.f32 %v908, %v913
        %v916 = vpack.c.bf16 %v915, %v915
        %v917 = vld [vmem:[%s3] sm:$0xf]
        %v918 = vld [vmem:[%s3 + $0x4] sm:$0xf]
        %v919 = vld [vmem:[%s3 + $0x8] sm:$0xf]
        %v920 = vld [vmem:[%s3 + $0xc] sm:$0xf]
        %v925 = vunpack.c.l.b16 %v917
        %v926 = vunpack.c.l.b16 %v918
        %v927 = vunpack.c.l.b16 %v919
        %v928 = vunpack.c.l.b16 %v920
        %v929 = vpack.c.b16 %v926, %v925
        %v930 = vpack.c.b16 %v928, %v927
        %v934 = vsel %vm887, %v916, 0
        %936 = vmatprep.subr.bf16.mxu0 0
        %937 = vmatpush1.bf16.msra.mxu0 0
        %938 = vmatprep.subr.bf16.mxu0 0
        %939 = vmatpush1.bf16.msra.mxu0 0
        %940 = vmatprep.subr.bf16.mxu0 0
        %941 = vmatpush1.bf16.msra.mxu0 0
        %942 = vmatprep.subr.bf16.mxu0 0
        %943 = vmatpush1.bf16.msra.mxu0 0
        %944 = vmatprep.subr.bf16.mxu0 0
        %945 = vmatpush1.bf16.msra.mxu0 0
        %946 = vmatprep.subr.bf16.mxu0 0
        %947 = vmatpush1.bf16.msra.mxu0 0
        %948 = vmatprep.subr.bf16.mxu0 0
        %949 = vmatpush1.bf16.msra.mxu0 %v930
        %950 = vmatprep.subr.bf16.mxu0 0
        %951 = vmatpush1.bf16.msra.mxu0 %v929
        %952 = vmatprep.subr.bf16.mxu0 0
        %953 = vmatpush2.bf16.msra.mxu0 0
        %954 = vmatprep.subr.bf16.mxu0 0
        %955 = vmatpush2.bf16.msra.mxu0 0
        %956 = vmatprep.subr.bf16.mxu0 0
        %957 = vmatpush2.bf16.msra.mxu0 0
        %958 = vmatprep.subr.bf16.mxu0 0
        %959 = vmatpush2.bf16.msra.mxu0 0
        %960 = vmatprep.subr.bf16.mxu0 0
        %961 = vmatpush2.bf16.msra.mxu0 0
        %962 = vmatprep.subr.bf16.mxu0 0
        %963 = vmatpush2.bf16.msra.mxu0 0
        %964 = vmatprep.subr.bf16.mxu0 0
        %965 = vmatpush2.bf16.msra.mxu0 0
        %966 = vmatprep.subr.bf16.mxu0 0
        %967 = vmatpush2.bf16.msra.mxu0 0
        %968 = vmatprep.mubr.bf16.mxu0 0
        %969 = vmatmul.mubr.bf16.gmra.mxu0 %v934
        %v970 = vpop.f32.mrf.mxu0
        %v971 = vadd.f32 0.0, %v970
        %v972 = vpop.f32.mrf.mxu0
        %v973 = vpop.f32.mrf.mxu0
        %v974 = vpop.f32.mrf.mxu0
        %975 = vdwg.mxu0
        %v976 = vmul.f32 %v971, 0.35355338
        %978 = vrot.lane.b32.xlu0 %v976, 120
        %v979 = vpop.permute.xlu0 %978
        %981 = vrot.lane.b32.xlu0 %v976, 112
        %v982 = vpop.permute.xlu0 %981
        %984 = vrot.lane.b32.xlu0 %v976, 104
        %v985 = vpop.permute.xlu0 %984
        %v987 = vcombine.low %v976, %v982
        %v988 = vcombine.high %v976, %v982
        %v990 = vunpack.c.l.s4 1983009808
        %v991 = vunpack.c.0.s8 %v990
        %v992 = vlaneseq
        %v993 = vshrl.u32 %v992, 7
        %v994 = vsub.s32 %v991, %v993
        %v995 = vrot.slane %v987, %v994
        %v997 = vunpack.c.l.s4 1983009808
        %v998 = vunpack.c.0.s8 %v997
        %v999 = vlaneseq
        %v1000 = vshrl.u32 %v999, 7
        %v1001 = vsub.s32 %v998, %v1000
        %v1002 = vrot.slane %v988, %v1001
        %v1003 = vcombine.low %v979, %v985
        %v1004 = vcombine.high %v979, %v985
        %v1006 = vunpack.c.l.s4 1983009808
        %v1007 = vunpack.c.0.s8 %v1006
        %v1008 = vlaneseq
        %v1009 = vshrl.u32 %v1008, 7
        %v1010 = vsub.s32 %v1007, %v1009
        %v1011 = vrot.slane %v1003, %v1010
        %v1013 = vunpack.c.l.s4 1983009808
        %v1014 = vunpack.c.0.s8 %v1013
        %v1015 = vlaneseq
        %v1016 = vshrl.u32 %v1015, 7
        %v1017 = vsub.s32 %v1014, %v1016
        %v1018 = vrot.slane %v1004, %v1017
        %v1019 = vcombine.low %v995, %v1011
        %v1020 = vcombine.high %v995, %v1011
        %v1022 = vunpack.c.l.s4 1934713408
        %v1023 = vunpack.c.0.s8 %v1022
        %v1024 = vlaneseq
        %v1025 = vshrl.u32 %v1024, 7
        %v1026 = vsub.s32 %v1023, %v1025
        %v1027 = vrot.slane %v1019, %v1026
        %v1029 = vunpack.c.l.s4 1934713408
        %v1030 = vunpack.c.0.s8 %v1029
        %v1031 = vlaneseq
        %v1032 = vshrl.u32 %v1031, 7
        %v1033 = vsub.s32 %v1030, %v1032
        %v1034 = vrot.slane %v1020, %v1033
        %v1035 = vcombine.low %v1002, %v1018
        %v1036 = vcombine.high %v1002, %v1018
        %v1038 = vunpack.c.l.s4 1934713408
        %v1039 = vunpack.c.0.s8 %v1038
        %v1040 = vlaneseq
        %v1041 = vshrl.u32 %v1040, 7
        %v1042 = vsub.s32 %v1039, %v1041
        %v1043 = vrot.slane %v1035, %v1042
        %v1045 = vunpack.c.l.s4 1934713408
        %v1046 = vunpack.c.0.s8 %v1045
        %v1047 = vlaneseq
        %v1048 = vshrl.u32 %v1047, 7
        %v1049 = vsub.s32 %v1046, %v1048
        %v1050 = vrot.slane %v1036, %v1049
        %v1051 = vcombine.high %v1027, 0.0
        %v1052 = vcombine.high %v1034, 0.0
        %v1053 = vcombine.high %v1043, 0.0
        %v1054 = vcombine.high %v1050, 0.0
        %v1055 = vcombine.low %v1027, %v1034
        %v1057 = vunpack.c.l.s4 1983009808
        %v1058 = vunpack.c.0.s8 %v1057
        %v1059 = vlaneseq
        %v1060 = vshrl.u32 %v1059, 7
        %v1061 = vsub.s32 %v1058, %v1060
        %v1062 = vrot.slane %v1055, %v1061
        %v1063 = vcombine.low %v1051, %v1052
        %v1065 = vunpack.c.l.s4 1983009808
        %v1066 = vunpack.c.0.s8 %v1065
        %v1067 = vlaneseq
        %v1068 = vshrl.u32 %v1067, 7
        %v1069 = vsub.s32 %v1066, %v1068
        %v1070 = vrot.slane %v1063, %v1069
        %v1071 = vcombine.low %v1043, %v1050
        %v1073 = vunpack.c.l.s4 1983009808
        %v1074 = vunpack.c.0.s8 %v1073
        %v1075 = vlaneseq
        %v1076 = vshrl.u32 %v1075, 7
        %v1077 = vsub.s32 %v1074, %v1076
        %v1078 = vrot.slane %v1071, %v1077
        %v1079 = vcombine.low %v1053, %v1054
        %v1081 = vunpack.c.l.s4 1983009808
        %v1082 = vunpack.c.0.s8 %v1081
        %v1083 = vlaneseq
        %v1084 = vshrl.u32 %v1083, 7
        %v1085 = vsub.s32 %v1082, %v1084
        %v1086 = vrot.slane %v1079, %v1085
        %v1087 = vcombine.low %v1062, %v1070
        %v1088 = vcombine.high %v1062, %v1070
        %v1090 = vunpack.c.l.s4 1934713408
        %v1091 = vunpack.c.0.s8 %v1090
        %v1092 = vlaneseq
        %v1093 = vshrl.u32 %v1092, 7
        %v1094 = vsub.s32 %v1091, %v1093
        %v1095 = vrot.slane %v1087, %v1094
        %v1097 = vunpack.c.l.s4 1934713408
        %v1098 = vunpack.c.0.s8 %v1097
        %v1099 = vlaneseq
        %v1100 = vshrl.u32 %v1099, 7
        %v1101 = vsub.s32 %v1098, %v1100
        %v1102 = vrot.slane %v1088, %v1101
        %v1103 = vcombine.low %v1078, %v1086
        %v1104 = vcombine.high %v1078, %v1086
        %v1106 = vunpack.c.l.s4 1934713408
        %v1107 = vunpack.c.0.s8 %v1106
        %v1108 = vlaneseq
        %v1109 = vshrl.u32 %v1108, 7
        %v1110 = vsub.s32 %v1107, %v1109
        %v1111 = vrot.slane %v1103, %v1110
        %v1113 = vunpack.c.l.s4 1934713408
        %v1114 = vunpack.c.0.s8 %v1113
        %v1115 = vlaneseq
        %v1116 = vshrl.u32 %v1115, 7
        %v1117 = vsub.s32 %v1114, %v1116
        %v1118 = vrot.slane %v1104, %v1117
        %v1119 = vcombine.low %v1095, %v1111
        %v1120 = vcombine.high %v1095, %v1111
        %v1121 = vcombine.low %v1102, %v1118
        %v1122 = vcombine.high %v1102, %v1118
        %v1123 = vpack.c.bf16 %v1119, %v1119
        %v1124 = vpack.c.bf16 %v1120, %v1120
        %v1125 = vpack.c.bf16 %v1121, %v1121
        %v1126 = vpack.c.bf16 %v1122, %v1122
        %vm1127 = vcmask 7168
        %1128 = vst.msk [vmem:[#allocation4] sm:$0xff] %vm1127, -1e+30
        %1129 = vst.msk [vmem:[#allocation4 + $0x8] sm:$0xff] %vm1127, -1e+30
        %1130 = vst.msk [vmem:[#allocation4 + $0x10] sm:$0xff] %vm1127, -1e+30
        %1131 = vst.msk [vmem:[#allocation4 + $0x18] sm:$0xff] %vm1127, -1e+30
        %1132 = vst.msk [vmem:[#allocation5] sm:$0xff] %vm1127, 0.0
        %1133 = vst.msk [vmem:[#allocation5 + $0x8] sm:$0xff] %vm1127, 0.0
        %1134 = vst.msk [vmem:[#allocation5 + $0x10] sm:$0xff] %vm1127, 0.0
        %1135 = vst.msk [vmem:[#allocation5 + $0x18] sm:$0xff] %vm1127, 0.0
        %vm1136 = vcmask 64512
        %1137 = vst.msk [vmem:[#allocation6] sm:$0xff] %vm1136, 0.0
        %1138 = vst.msk [vmem:[#allocation6 + $0x8] sm:$0xff] %vm1136, 0.0
        %1139 = vst.msk [vmem:[#allocation6 + $0x10] sm:$0xff] %vm1136, 0.0
        %1140 = vst.msk [vmem:[#allocation6 + $0x18] sm:$0xff] %vm1136, 0.0
        %v1141 = vlaneseq
        %v1142 = vshrl.u32 %v1141, 7
        %v1143 = vstv %s479
        %v1144 = vadd.s32 %v1143, %v1142
        %v1145 = vlaneseq
        %v1146 = vand.u32 %v1145, 127
        %v1147 = vld [vmem:[#allocation2] sm:$0xf]
        %v1148 = vld [vmem:[#allocation2 + $0x4] sm:$0xf]
        %v1149 = vld [vmem:[#allocation2 + $0x8] sm:$0xf]
        %v1150 = vld [vmem:[#allocation2 + $0xc] sm:$0xf]
        %v1151 = vld [vmem:[#allocation3] sm:$0xf]
        %v1152 = vld [vmem:[#allocation3 + $0x4] sm:$0xf]
        %v1153 = vld [vmem:[#allocation3 + $0x8] sm:$0xf]
        %v1154 = vld [vmem:[#allocation3 + $0xc] sm:$0xf]
        %v1156 = vsel %vm1136, %v1123, 0
        %v1159 = vsel %vm1136, %v1147, 0
        %1161 = vmatprep.subr.bf16.mxu0 0
        %1162 = vmatpush1.bf16.xpose.msra.mxu0 0
        %1163 = vmatprep.subr.bf16.mxu0 0
        %1164 = vmatpush1.bf16.xpose.msra.mxu0 0
        %1165 = vmatprep.subr.bf16.mxu0 0
        %1166 = vmatpush1.bf16.xpose.msra.mxu0 0
        %1167 = vmatprep.subr.bf16.mxu0 0
        %1168 = vmatpush1.bf16.xpose.msra.mxu0 0
        %1169 = vmatprep.subr.bf16.mxu0 0
        %1170 = vmatpush1.bf16.xpose.msra.mxu0 0
        %1171 = vmatprep.subr.bf16.mxu0 0
        %1172 = vmatpush1.bf16.xpose.msra.mxu0 0
        %1173 = vmatprep.subr.bf16.mxu0 0
        %1174 = vmatpush1.bf16.xpose.msra.mxu0 0
        %1175 = vmatprep.subr.bf16.mxu0 0
        %1176 = vmatpush1.bf16.xpose.msra.mxu0 %v1159
        %1177 = vmatprep.subr.bf16.mxu0 0
        %1178 = vmatpush2.bf16.xpose.msra.mxu0 0
        %1179 = vmatprep.subr.bf16.mxu0 0
        %1180 = vmatpush2.bf16.xpose.msra.mxu0 0
        %1181 = vmatprep.subr.bf16.mxu0 0
        %1182 = vmatpush2.bf16.xpose.msra.mxu0 0
        %1183 = vmatprep.subr.bf16.mxu0 0
        %1184 = vmatpush2.bf16.xpose.msra.mxu0 0
        %1185 = vmatprep.subr.bf16.mxu0 0
        %1186 = vmatpush2.bf16.xpose.msra.mxu0 0
        %1187 = vmatprep.subr.bf16.mxu0 0
        %1188 = vmatpush2.bf16.xpose.msra.mxu0 0
        %1189 = vmatprep.subr.bf16.mxu0 0
        %1190 = vmatpush2.bf16.xpose.msra.mxu0 0
        %1191 = vmatprep.subr.bf16.mxu0 0
        %1192 = vmatpush2.bf16.xpose.msra.mxu0 0
        %1193 = vmatprep.mubr.bf16.mxu0 0
        %1194 = vmatmul.mubr.bf16.gmra.mxu0 %v1156
        %v1195 = vpop.f32.mrf.mxu0
        %v1196 = vadd.f32 0.0, %v1195
        %v1197 = vpop.f32.mrf.mxu0
        %v1198 = vpop.f32.mrf.mxu0
        %v1199 = vpop.f32.mrf.mxu0
        %1200 = vdwg.mxu0
        %v1202 = vsel %vm1136, %v1124, 0
        %v1205 = vsel %vm1136, %v1148, 0
        %1207 = vmatprep.subr.bf16.mxu0 0
        %1208 = vmatpush1.bf16.xpose.msra.mxu0 0
        %1209 = vmatprep.subr.bf16.mxu0 0
        %1210 = vmatpush1.bf16.xpose.msra.mxu0 0
        %1211 = vmatprep.subr.bf16.mxu0 0
        %1212 = vmatpush1.bf16.xpose.msra.mxu0 0
        %1213 = vmatprep.subr.bf16.mxu0 0
        %1214 = vmatpush1.bf16.xpose.msra.mxu0 0
        %1215 = vmatprep.subr.bf16.mxu0 0
        %1216 = vmatpush1.bf16.xpose.msra.mxu0 0
        %1217 = vmatprep.subr.bf16.mxu0 0
        %1218 = vmatpush1.bf16.xpose.msra.mxu0 0
        %1219 = vmatprep.subr.bf16.mxu0 0
        %1220 = vmatpush1.bf16.xpose.msra.mxu0 0
        %1221 = vmatprep.subr.bf16.mxu0 0
        %1222 = vmatpush1.bf16.xpose.msra.mxu0 %v1205
        %1223 = vmatprep.subr.bf16.mxu0 0
        %1224 = vmatpush2.bf16.xpose.msra.mxu0 0
        %1225 = vmatprep.subr.bf16.mxu0 0
        %1226 = vmatpush2.bf16.xpose.msra.mxu0 0
        %1227 = vmatprep.subr.bf16.mxu0 0
        %1228 = vmatpush2.bf16.xpose.msra.mxu0 0
        %1229 = vmatprep.subr.bf16.mxu0 0
        %1230 = vmatpush2.bf16.xpose.msra.mxu0 0
        %1231 = vmatprep.subr.bf16.mxu0 0
        %1232 = vmatpush2.bf16.xpose.msra.mxu0 0
        %1233 = vmatprep.subr.bf16.mxu0 0
        %1234 = vmatpush2.bf16.xpose.msra.mxu0 0
        %1235 = vmatprep.subr.bf16.mxu0 0
        %1236 = vmatpush2.bf16.xpose.msra.mxu0 0
        %1237 = vmatprep.subr.bf16.mxu0 0
        %1238 = vmatpush2.bf16.xpose.msra.mxu0 0
        %1239 = vmatprep.mubr.bf16.mxu0 0
        %1240 = vmatmul.mubr.bf16.gmra.mxu0 %v1202
        %v1241 = vpop.f32.mrf.mxu0
        %v1242 = vadd.f32 0.0, %v1241
        %v1243 = vpop.f32.mrf.mxu0
        %v1244 = vpop.f32.mrf.mxu0
        %v1245 = vpop.f32.mrf.mxu0
        %1246 = vdwg.mxu0
        %v1248 = vsel %vm1136, %v1125, 0
        %v1251 = vsel %vm1136, %v1149, 0
        %1253 = vmatprep.subr.bf16.mxu0 0
        %1254 = vmatpush1.bf16.xpose.msra.mxu0 0
        %1255 = vmatprep.subr.bf16.mxu0 0
        %1256 = vmatpush1.bf16.xpose.msra.mxu0 0
        %1257 = vmatprep.subr.bf16.mxu0 0
        %1258 = vmatpush1.bf16.xpose.msra.mxu0 0
        %1259 = vmatprep.subr.bf16.mxu0 0
        %1260 = vmatpush1.bf16.xpose.msra.mxu0 0
        %1261 = vmatprep.subr.bf16.mxu0 0
        %1262 = vmatpush1.bf16.xpose.msra.mxu0 0
        %1263 = vmatprep.subr.bf16.mxu0 0
        %1264 = vmatpush1.bf16.xpose.msra.mxu0 0
        %1265 = vmatprep.subr.bf16.mxu0 0
        %1266 = vmatpush1.bf16.xpose.msra.mxu0 0
        %1267 = vmatprep.subr.bf16.mxu0 0
        %1268 = vmatpush1.bf16.xpose.msra.mxu0 %v1251
        %1269 = vmatprep.subr.bf16.mxu0 0
        %1270 = vmatpush2.bf16.xpose.msra.mxu0 0
        %1271 = vmatprep.subr.bf16.mxu0 0
        %1272 = vmatpush2.bf16.xpose.msra.mxu0 0
        %1273 = vmatprep.subr.bf16.mxu0 0
        %1274 = vmatpush2.bf16.xpose.msra.mxu0 0
        %1275 = vmatprep.subr.bf16.mxu0 0
        %1276 = vmatpush2.bf16.xpose.msra.mxu0 0
        %1277 = vmatprep.subr.bf16.mxu0 0
        %1278 = vmatpush2.bf16.xpose.msra.mxu0 0
        %1279 = vmatprep.subr.bf16.mxu0 0
        %1280 = vmatpush2.bf16.xpose.msra.mxu0 0
        %1281 = vmatprep.subr.bf16.mxu0 0
        %1282 = vmatpush2.bf16.xpose.msra.mxu0 0
        %1283 = vmatprep.subr.bf16.mxu0 0
        %1284 = vmatpush2.bf16.xpose.msra.mxu0 0
        %1285 = vmatprep.mubr.bf16.mxu0 0
        %1286 = vmatmul.mubr.bf16.gmra.mxu0 %v1248
        %v1287 = vpop.f32.mrf.mxu0
        %v1288 = vadd.f32 0.0, %v1287
        %v1289 = vpop.f32.mrf.mxu0
        %v1290 = vpop.f32.mrf.mxu0
        %v1291 = vpop.f32.mrf.mxu0
        %1292 = vdwg.mxu0
        %v1294 = vsel %vm1136, %v1126, 0
        %v1297 = vsel %vm1136, %v1150, 0
        %1299 = vmatprep.subr.bf16.mxu0 0
        %1300 = vmatpush1.bf16.xpose.msra.mxu0 0
        %1301 = vmatprep.subr.bf16.mxu0 0
        %1302 = vmatpush1.bf16.xpose.msra.mxu0 0
        %1303 = vmatprep.subr.bf16.mxu0 0
        %1304 = vmatpush1.bf16.xpose.msra.mxu0 0
        %1305 = vmatprep.subr.bf16.mxu0 0
        %1306 = vmatpush1.bf16.xpose.msra.mxu0 0
        %1307 = vmatprep.subr.bf16.mxu0 0
        %1308 = vmatpush1.bf16.xpose.msra.mxu0 0
        %1309 = vmatprep.subr.bf16.mxu0 0
        %1310 = vmatpush1.bf16.xpose.msra.mxu0 0
        %1311 = vmatprep.subr.bf16.mxu0 0
        %1312 = vmatpush1.bf16.xpose.msra.mxu0 0
        %1313 = vmatprep.subr.bf16.mxu0 0
        %1314 = vmatpush1.bf16.xpose.msra.mxu0 %v1297
        %1315 = vmatprep.subr.bf16.mxu0 0
        %1316 = vmatpush2.bf16.xpose.msra.mxu0 0
        %1317 = vmatprep.subr.bf16.mxu0 0
        %1318 = vmatpush2.bf16.xpose.msra.mxu0 0
        %1319 = vmatprep.subr.bf16.mxu0 0
        %1320 = vmatpush2.bf16.xpose.msra.mxu0 0
        %1321 = vmatprep.subr.bf16.mxu0 0
        %1322 = vmatpush2.bf16.xpose.msra.mxu0 0
        %1323 = vmatprep.subr.bf16.mxu0 0
        %1324 = vmatpush2.bf16.xpose.msra.mxu0 0
        %1325 = vmatprep.subr.bf16.mxu0 0
        %1326 = vmatpush2.bf16.xpose.msra.mxu0 0
        %1327 = vmatprep.subr.bf16.mxu0 0
        %1328 = vmatpush2.bf16.xpose.msra.mxu0 0
        %1329 = vmatprep.subr.bf16.mxu0 0
        %1330 = vmatpush2.bf16.xpose.msra.mxu0 0
        %1331 = vmatprep.mubr.bf16.mxu0 0
        %1332 = vmatmul.mubr.bf16.gmra.mxu0 %v1294
        %v1333 = vpop.f32.mrf.mxu0
        %v1334 = vadd.f32 0.0, %v1333
        %v1335 = vpop.f32.mrf.mxu0
        %v1336 = vpop.f32.mrf.mxu0
        %v1337 = vpop.f32.mrf.mxu0
        %1338 = vdwg.mxu0
        %v1339 = vstv 0
        %v1340 = vadd.s32 %v1339, %v1146
        %vm1341 = vcmp.le.s32.totalorder %v1340, %v1144
        %v1342 = vsel %vm1341, 1, 0
        %vm1343 = vcmp.eq.s32.totalorder %v1342, 1
        %v1344 = vsel %vm1343, %v1196, -1e+30
        %v1345 = vsel %vm1343, %v1242, -1e+30
        %v1346 = vsel %vm1343, %v1288, -1e+30
        %v1347 = vsel %vm1343, %v1334, -1e+30
        %v1348 = vld [vmem:[#allocation4] sm:$0xff]
        %v1349 = vld [vmem:[#allocation4 + $0x8] sm:$0xff]
        %v1350 = vld [vmem:[#allocation4 + $0x10] sm:$0xff]
        %v1351 = vld [vmem:[#allocation4 + $0x18] sm:$0xff]
        %v1352 = vsel %vm1136, %v1344, -inf
        %1353 = vmax.xlane.f32.xlu0 %v1352
        %v1354 = vpop.xlane.xlu0 %1353
        %v1355 = vsel %vm1136, %v1345, -inf
        %1356 = vmax.xlane.f32.xlu0 %v1355
        %v1357 = vpop.xlane.xlu0 %1356
        %v1358 = vsel %vm1136, %v1346, -inf
        %1359 = vmax.xlane.f32.xlu0 %v1358
        %v1360 = vpop.xlane.xlu0 %1359
        %v1361 = vsel %vm1136, %v1347, -inf
        %1362 = vmax.xlane.f32.xlu0 %v1361
        %v1363 = vpop.xlane.xlu0 %1362
        %v1364 = vmax.f32 %v1348, %v1354
        %v1365 = vmax.f32 %v1349, %v1357
        %v1366 = vmax.f32 %v1350, %v1360
        %v1367 = vmax.f32 %v1351, %v1363
        %v1368 = vsub.f32 %v1348, %v1364
        %v1369 = vsub.f32 %v1349, %v1365
        %v1370 = vsub.f32 %v1350, %v1366
        %v1371 = vsub.f32 %v1351, %v1367
        %v1372 = vmul.f32 %v1368, 1.442695
        %v1373 = vpow.pop %v1372
        %v1374 = vmul.f32 %v1369, 1.442695
        %v1375 = vpow.pop %v1374
        %v1376 = vmul.f32 %v1370, 1.442695
        %v1377 = vpow.pop %v1376
        %v1378 = vmul.f32 %v1371, 1.442695
        %v1379 = vpow.pop %v1378
        %1381 = vset.pattern.permute.xlu0 0
        %1382 = vperm.xlu0 %1381, %v1364
        %v1383 = vpop.permute.xlu0 %1382
        %1386 = vset.pattern.permute.xlu0 0
        %1387 = vperm.xlu0 %1386, %v1365
        %v1388 = vpop.permute.xlu0 %1387
        %1391 = vset.pattern.permute.xlu0 0
        %1392 = vperm.xlu0 %1391, %v1366
        %v1393 = vpop.permute.xlu0 %1392
        %1396 = vset.pattern.permute.xlu0 0
        %1397 = vperm.xlu0 %1396, %v1367
        %v1398 = vpop.permute.xlu0 %1397
        %v1400 = vsub.f32 %v1344, %v1383
        %v1401 = vsub.f32 %v1345, %v1388
        %v1402 = vsub.f32 %v1346, %v1393
        %v1403 = vsub.f32 %v1347, %v1398
        %v1404 = vmul.f32 %v1400, 1.442695
        %v1405 = vpow.pop %v1404
        %v1406 = vmul.f32 %v1401, 1.442695
        %v1407 = vpow.pop %v1406
        %v1408 = vmul.f32 %v1402, 1.442695
        %v1409 = vpow.pop %v1408
        %v1410 = vmul.f32 %v1403, 1.442695
        %v1411 = vpow.pop %v1410
        %v1412 = vld [vmem:[#allocation5] sm:$0xff]
        %v1413 = vld [vmem:[#allocation5 + $0x8] sm:$0xff]
        %v1414 = vld [vmem:[#allocation5 + $0x10] sm:$0xff]
        %v1415 = vld [vmem:[#allocation5 + $0x18] sm:$0xff]
        %v1416 = vmul.f32 %v1373, %v1412
        %v1417 = vmul.f32 %v1375, %v1413
        %v1418 = vmul.f32 %v1377, %v1414
        %v1419 = vmul.f32 %v1379, %v1415
        %v1420 = vsel %vm1136, %v1405, 0.0
        %1421 = vadd.xlane.f32.xlu0 %v1420
        %v1422 = vpop.xlane.xlu0 %1421
        %v1423 = vsel %vm1136, %v1407, 0.0
        %1424 = vadd.xlane.f32.xlu0 %v1423
        %v1425 = vpop.xlane.xlu0 %1424
        %v1426 = vsel %vm1136, %v1409, 0.0
        %1427 = vadd.xlane.f32.xlu0 %v1426
        %v1428 = vpop.xlane.xlu0 %1427
        %v1429 = vsel %vm1136, %v1411, 0.0
        %1430 = vadd.xlane.f32.xlu0 %v1429
        %v1431 = vpop.xlane.xlu0 %1430
        %v1432 = vadd.f32 %v1416, %v1422
        %v1433 = vadd.f32 %v1417, %v1425
        %v1434 = vadd.f32 %v1418, %v1428
        %v1435 = vadd.f32 %v1419, %v1431
        %1436 = vst.msk [vmem:[#allocation5] sm:$0xff] %vm1127, %v1432
        %1437 = vst.msk [vmem:[#allocation5 + $0x8] sm:$0xff] %vm1127, %v1433
        %1438 = vst.msk [vmem:[#allocation5 + $0x10] sm:$0xff] %vm1127, %v1434
        %1439 = vst.msk [vmem:[#allocation5 + $0x18] sm:$0xff] %vm1127, %v1435
        %v1440 = vld [vmem:[#allocation6] sm:$0xff]
        %v1441 = vld [vmem:[#allocation6 + $0x8] sm:$0xff]
        %v1442 = vld [vmem:[#allocation6 + $0x10] sm:$0xff]
        %v1443 = vld [vmem:[#allocation6 + $0x18] sm:$0xff]
        %1445 = vset.pattern.permute.xlu0 0
        %1446 = vperm.xlu0 %1445, %v1373
        %v1447 = vpop.permute.xlu0 %1446
        %1450 = vset.pattern.permute.xlu0 0
        %1451 = vperm.xlu0 %1450, %v1375
        %v1452 = vpop.permute.xlu0 %1451
        %1455 = vset.pattern.permute.xlu0 0
        %1456 = vperm.xlu0 %1455, %v1377
        %v1457 = vpop.permute.xlu0 %1456
        %1460 = vset.pattern.permute.xlu0 0
        %1461 = vperm.xlu0 %1460, %v1379
        %v1462 = vpop.permute.xlu0 %1461
        %v1464 = vmul.f32 %v1447, %v1440
        %v1465 = vmul.f32 %v1452, %v1441
        %v1466 = vmul.f32 %v1457, %v1442
        %v1467 = vmul.f32 %v1462, %v1443
        %v1468 = vpack.c.bf16 %v1405, %v1405
        %v1469 = vpack.c.bf16 %v1407, %v1407
        %v1470 = vpack.c.bf16 %v1409, %v1409
        %v1471 = vpack.c.bf16 %v1411, %v1411
        %v1473 = vsel %vm1136, %v1468, 0
        %vm1475 = vcmask 1043456
        %v1477 = vsel %vm1475, %v1151, 0
        %1479 = vmatprep.subr.bf16.mxu0 0
        %1480 = vmatpush1.bf16.msra.mxu0 0
        %1481 = vmatprep.subr.bf16.mxu0 0
        %1482 = vmatpush1.bf16.msra.mxu0 0
        %1483 = vmatprep.subr.bf16.mxu0 0
        %1484 = vmatpush1.bf16.msra.mxu0 0
        %1485 = vmatprep.subr.bf16.mxu0 0
        %1486 = vmatpush1.bf16.msra.mxu0 0
        %1487 = vmatprep.subr.bf16.mxu0 0
        %1488 = vmatpush1.bf16.msra.mxu0 0
        %1489 = vmatprep.subr.bf16.mxu0 0
        %1490 = vmatpush1.bf16.msra.mxu0 0
        %1491 = vmatprep.subr.bf16.mxu0 0
        %1492 = vmatpush1.bf16.msra.mxu0 0
        %1493 = vmatprep.subr.bf16.mxu0 0
        %1494 = vmatpush1.bf16.msra.mxu0 %v1477
        %1495 = vmatprep.subr.bf16.mxu0 0
        %1496 = vmatpush2.bf16.msra.mxu0 0
        %1497 = vmatprep.subr.bf16.mxu0 0
        %1498 = vmatpush2.bf16.msra.mxu0 0
        %1499 = vmatprep.subr.bf16.mxu0 0
        %1500 = vmatpush2.bf16.msra.mxu0 0
        %1501 = vmatprep.subr.bf16.mxu0 0
        %1502 = vmatpush2.bf16.msra.mxu0 0
        %1503 = vmatprep.subr.bf16.mxu0 0
        %1504 = vmatpush2.bf16.msra.mxu0 0
        %1505 = vmatprep.subr.bf16.mxu0 0
        %1506 = vmatpush2.bf16.msra.mxu0 0
        %1507 = vmatprep.subr.bf16.mxu0 0
        %1508 = vmatpush2.bf16.msra.mxu0 0
        %1509 = vmatprep.subr.bf16.mxu0 0
        %1510 = vmatpush2.bf16.msra.mxu0 0
        %1511 = vmatprep.mubr.bf16.mxu0 0
        %1512 = vmatmul.mubr.bf16.gmra.mxu0 %v1473
        %v1513 = vpop.f32.mrf.mxu0
        %v1514 = vadd.f32 0.0, %v1513
        %v1515 = vpop.f32.mrf.mxu0
        %v1516 = vpop.f32.mrf.mxu0
        %v1517 = vpop.f32.mrf.mxu0
        %1518 = vdwg.mxu0
        %v1520 = vsel %vm1136, %v1469, 0
        %v1523 = vsel %vm1475, %v1152, 0
        %1525 = vmatprep.subr.bf16.mxu0 0
        %1526 = vmatpush1.bf16.msra.mxu0 0
        %1527 = vmatprep.subr.bf16.mxu0 0
        %1528 = vmatpush1.bf16.msra.mxu0 0
        %1529 = vmatprep.subr.bf16.mxu0 0
        %1530 = vmatpush1.bf16.msra.mxu0 0
        %1531 = vmatprep.subr.bf16.mxu0 0
        %1532 = vmatpush1.bf16.msra.mxu0 0
        %1533 = vmatprep.subr.bf16.mxu0 0
        %1534 = vmatpush1.bf16.msra.mxu0 0
        %1535 = vmatprep.subr.bf16.mxu0 0
        %1536 = vmatpush1.bf16.msra.mxu0 0
        %1537 = vmatprep.subr.bf16.mxu0 0
        %1538 = vmatpush1.bf16.msra.mxu0 0
        %1539 = vmatprep.subr.bf16.mxu0 0
        %1540 = vmatpush1.bf16.msra.mxu0 %v1523
        %1541 = vmatprep.subr.bf16.mxu0 0
        %1542 = vmatpush2.bf16.msra.mxu0 0
        %1543 = vmatprep.subr.bf16.mxu0 0
        %1544 = vmatpush2.bf16.msra.mxu0 0
        %1545 = vmatprep.subr.bf16.mxu0 0
        %1546 = vmatpush2.bf16.msra.mxu0 0
        %1547 = vmatprep.subr.bf16.mxu0 0
        %1548 = vmatpush2.bf16.msra.mxu0 0
        %1549 = vmatprep.subr.bf16.mxu0 0
        %1550 = vmatpush2.bf16.msra.mxu0 0
        %1551 = vmatprep.subr.bf16.mxu0 0
        %1552 = vmatpush2.bf16.msra.mxu0 0
        %1553 = vmatprep.subr.bf16.mxu0 0
        %1554 = vmatpush2.bf16.msra.mxu0 0
        %1555 = vmatprep.subr.bf16.mxu0 0
        %1556 = vmatpush2.bf16.msra.mxu0 0
        %1557 = vmatprep.mubr.bf16.mxu0 0
        %1558 = vmatmul.mubr.bf16.gmra.mxu0 %v1520
        %v1559 = vpop.f32.mrf.mxu0
        %v1560 = vadd.f32 0.0, %v1559
        %v1561 = vpop.f32.mrf.mxu0
        %v1562 = vpop.f32.mrf.mxu0
        %v1563 = vpop.f32.mrf.mxu0
        %1564 = vdwg.mxu0
        %v1566 = vsel %vm1136, %v1470, 0
        %v1569 = vsel %vm1475, %v1153, 0
        %1571 = vmatprep.subr.bf16.mxu0 0
        %1572 = vmatpush1.bf16.msra.mxu0 0
        %1573 = vmatprep.subr.bf16.mxu0 0
        %1574 = vmatpush1.bf16.msra.mxu0 0
        %1575 = vmatprep.subr.bf16.mxu0 0
        %1576 = vmatpush1.bf16.msra.mxu0 0
        %1577 = vmatprep.subr.bf16.mxu0 0
        %1578 = vmatpush1.bf16.msra.mxu0 0
        %1579 = vmatprep.subr.bf16.mxu0 0
        %1580 = vmatpush1.bf16.msra.mxu0 0
        %1581 = vmatprep.subr.bf16.mxu0 0
        %1582 = vmatpush1.bf16.msra.mxu0 0
        %1583 = vmatprep.subr.bf16.mxu0 0
        %1584 = vmatpush1.bf16.msra.mxu0 0
        %1585 = vmatprep.subr.bf16.mxu0 0
        %1586 = vmatpush1.bf16.msra.mxu0 %v1569
        %1587 = vmatprep.subr.bf16.mxu0 0
        %1588 = vmatpush2.bf16.msra.mxu0 0
        %1589 = vmatprep.subr.bf16.mxu0 0
        %1590 = vmatpush2.bf16.msra.mxu0 0
        %1591 = vmatprep.subr.bf16.mxu0 0
        %1592 = vmatpush2.bf16.msra.mxu0 0
        %1593 = vmatprep.subr.bf16.mxu0 0
        %1594 = vmatpush2.bf16.msra.mxu0 0
        %1595 = vmatprep.subr.bf16.mxu0 0
        %1596 = vmatpush2.bf16.msra.mxu0 0
        %1597 = vmatprep.subr.bf16.mxu0 0
        %1598 = vmatpush2.bf16.msra.mxu0 0
        %1599 = vmatprep.subr.bf16.mxu0 0
        %1600 = vmatpush2.bf16.msra.mxu0 0
        %1601 = vmatprep.subr.bf16.mxu0 0
        %1602 = vmatpush2.bf16.msra.mxu0 0
        %1603 = vmatprep.mubr.bf16.mxu0 0
        %1604 = vmatmul.mubr.bf16.gmra.mxu0 %v1566
        %v1605 = vpop.f32.mrf.mxu0
        %v1606 = vadd.f32 0.0, %v1605
        %v1607 = vpop.f32.mrf.mxu0
        %v1608 = vpop.f32.mrf.mxu0
        %v1609 = vpop.f32.mrf.mxu0
        %1610 = vdwg.mxu0
        %v1612 = vsel %vm1136, %v1471, 0
        %v1615 = vsel %vm1475, %v1154, 0
        %1617 = vmatprep.subr.bf16.mxu0 0
        %1618 = vmatpush1.bf16.msra.mxu0 0
        %1619 = vmatprep.subr.bf16.mxu0 0
        %1620 = vmatpush1.bf16.msra.mxu0 0
        %1621 = vmatprep.subr.bf16.mxu0 0
        %1622 = vmatpush1.bf16.msra.mxu0 0
        %1623 = vmatprep.subr.bf16.mxu0 0
        %1624 = vmatpush1.bf16.msra.mxu0 0
        %1625 = vmatprep.subr.bf16.mxu0 0
        %1626 = vmatpush1.bf16.msra.mxu0 0
        %1627 = vmatprep.subr.bf16.mxu0 0
        %1628 = vmatpush1.bf16.msra.mxu0 0
        %1629 = vmatprep.subr.bf16.mxu0 0
        %1630 = vmatpush1.bf16.msra.mxu0 0
        %1631 = vmatprep.subr.bf16.mxu0 0
        %1632 = vmatpush1.bf16.msra.mxu0 %v1615
        %1633 = vmatprep.subr.bf16.mxu0 0
        %1634 = vmatpush2.bf16.msra.mxu0 0
        %1635 = vmatprep.subr.bf16.mxu0 0
        %1636 = vmatpush2.bf16.msra.mxu0 0
        %1637 = vmatprep.subr.bf16.mxu0 0
        %1638 = vmatpush2.bf16.msra.mxu0 0
        %1639 = vmatprep.subr.bf16.mxu0 0
        %1640 = vmatpush2.bf16.msra.mxu0 0
        %1641 = vmatprep.subr.bf16.mxu0 0
        %1642 = vmatpush2.bf16.msra.mxu0 0
        %1643 = vmatprep.subr.bf16.mxu0 0
        %1644 = vmatpush2.bf16.msra.mxu0 0
        %1645 = vmatprep.subr.bf16.mxu0 0
        %1646 = vmatpush2.bf16.msra.mxu0 0
        %1647 = vmatprep.subr.bf16.mxu0 0
        %1648 = vmatpush2.bf16.msra.mxu0 0
        %1649 = vmatprep.mubr.bf16.mxu0 0
        %1650 = vmatmul.mubr.bf16.gmra.mxu0 %v1612
        %v1651 = vpop.f32.mrf.mxu0
        %v1652 = vadd.f32 0.0, %v1651
        %v1653 = vpop.f32.mrf.mxu0
        %v1654 = vpop.f32.mrf.mxu0
        %v1655 = vpop.f32.mrf.mxu0
        %1656 = vdwg.mxu0
        %v1657 = vadd.f32 %v1464, %v1514
        %v1658 = vadd.f32 %v1465, %v1560
        %v1659 = vadd.f32 %v1466, %v1606
        %v1660 = vadd.f32 %v1467, %v1652
        %1661 = vst.msk [vmem:[#allocation6] sm:$0xff] %vm1136, %v1657
        %1662 = vst.msk [vmem:[#allocation6 + $0x8] sm:$0xff] %vm1136, %v1658
        %1663 = vst.msk [vmem:[#allocation6 + $0x10] sm:$0xff] %vm1136, %v1659
        %1664 = vst.msk [vmem:[#allocation6 + $0x18] sm:$0xff] %vm1136, %v1660
        %1665 = vst.msk [vmem:[#allocation4] sm:$0xff] %vm1127, %v1364
        %1666 = vst.msk [vmem:[#allocation4 + $0x8] sm:$0xff] %vm1127, %v1365
        %1667 = vst.msk [vmem:[#allocation4 + $0x10] sm:$0xff] %vm1127, %v1366
        %1668 = vst.msk [vmem:[#allocation4 + $0x18] sm:$0xff] %vm1127, %v1367
        %v1669 = vld [vmem:[#allocation6] sm:$0xff]
        %v1670 = vld [vmem:[#allocation6 + $0x8] sm:$0xff]
        %v1671 = vld [vmem:[#allocation6 + $0x10] sm:$0xff]
        %v1672 = vld [vmem:[#allocation6 + $0x18] sm:$0xff]
        %v1673 = vld [vmem:[#allocation5] sm:$0xff]
        %v1674 = vld [vmem:[#allocation5 + $0x8] sm:$0xff]
        %v1675 = vld [vmem:[#allocation5 + $0x10] sm:$0xff]
        %v1676 = vld [vmem:[#allocation5 + $0x18] sm:$0xff]
        %v1677 = vrcp.pop %v1673
        %v1678 = vrcp.pop %v1674
        %v1679 = vrcp.pop %v1675
        %v1680 = vrcp.pop %v1676
        %1682 = vset.pattern.permute.xlu0 0
        %1683 = vperm.xlu0 %1682, %v1677
        %v1684 = vpop.permute.xlu0 %1683
        %1687 = vset.pattern.permute.xlu0 0
        %1688 = vperm.xlu0 %1687, %v1678
        %v1689 = vpop.permute.xlu0 %1688
        %1692 = vset.pattern.permute.xlu0 0
        %1693 = vperm.xlu0 %1692, %v1679
        %v1694 = vpop.permute.xlu0 %1693
        %1697 = vset.pattern.permute.xlu0 0
        %1698 = vperm.xlu0 %1697, %v1680
        %v1699 = vpop.permute.xlu0 %1698
        %v1701 = vmul.f32 %v1669, %v1684
        %v1702 = vmul.f32 %v1670, %v1689
        %v1703 = vmul.f32 %v1671, %v1694
        %v1704 = vmul.f32 %v1672, %v1699
        %v1705 = vcombine.low %v1701, %v1703
        %v1706 = vcombine.high %v1701, %v1703
        %v1708 = vunpack.c.l.s4 1983009808
        %v1709 = vunpack.c.0.s8 %v1708
        %v1710 = vlaneseq
        %v1711 = vshrl.u32 %v1710, 7
        %v1712 = vsub.s32 %v1709, %v1711
        %v1713 = vrot.slane %v1705, %v1712
        %v1715 = vunpack.c.l.s4 1983009808
        %v1716 = vunpack.c.0.s8 %v1715
        %v1717 = vlaneseq
        %v1718 = vshrl.u32 %v1717, 7
        %v1719 = vsub.s32 %v1716, %v1718
        %v1720 = vrot.slane %v1706, %v1719
        %v1721 = vcombine.low %v1702, %v1704
        %v1722 = vcombine.high %v1702, %v1704
        %v1724 = vunpack.c.l.s4 1983009808
        %v1725 = vunpack.c.0.s8 %v1724
        %v1726 = vlaneseq
        %v1727 = vshrl.u32 %v1726, 7
        %v1728 = vsub.s32 %v1725, %v1727
        %v1729 = vrot.slane %v1721, %v1728
        %v1731 = vunpack.c.l.s4 1983009808
        %v1732 = vunpack.c.0.s8 %v1731
        %v1733 = vlaneseq
        %v1734 = vshrl.u32 %v1733, 7
        %v1735 = vsub.s32 %v1732, %v1734
        %v1736 = vrot.slane %v1722, %v1735
        %v1737 = vcombine.low %v1713, %v1729
        %v1738 = vcombine.high %v1713, %v1729
        %v1740 = vunpack.c.l.s4 1934713408
        %v1741 = vunpack.c.0.s8 %v1740
        %v1742 = vlaneseq
        %v1743 = vshrl.u32 %v1742, 7
        %v1744 = vsub.s32 %v1741, %v1743
        %v1745 = vrot.slane %v1737, %v1744
        %v1747 = vunpack.c.l.s4 1934713408
        %v1748 = vunpack.c.0.s8 %v1747
        %v1749 = vlaneseq
        %v1750 = vshrl.u32 %v1749, 7
        %v1751 = vsub.s32 %v1748, %v1750
        %v1752 = vrot.slane %v1738, %v1751
        %v1753 = vcombine.low %v1720, %v1736
        %v1754 = vcombine.high %v1720, %v1736
        %v1756 = vunpack.c.l.s4 1934713408
        %v1757 = vunpack.c.0.s8 %v1756
        %v1758 = vlaneseq
        %v1759 = vshrl.u32 %v1758, 7
        %v1760 = vsub.s32 %v1757, %v1759
        %v1761 = vrot.slane %v1753, %v1760
        %v1763 = vunpack.c.l.s4 1934713408
        %v1764 = vunpack.c.0.s8 %v1763
        %v1765 = vlaneseq
        %v1766 = vshrl.u32 %v1765, 7
        %v1767 = vsub.s32 %v1764, %v1766
        %v1768 = vrot.slane %v1754, %v1767
        %v1769 = vcombine.high %v1745, 0.0
        %v1770 = vcombine.high %v1752, 0.0
        %v1771 = vcombine.high %v1761, 0.0
        %v1772 = vcombine.high %v1768, 0.0
        %v1773 = vcombine.low %v1745, %v1752
        %v1775 = vunpack.c.l.s4 1983009808
        %v1776 = vunpack.c.0.s8 %v1775
        %v1777 = vlaneseq
        %v1778 = vshrl.u32 %v1777, 7
        %v1779 = vsub.s32 %v1776, %v1778
        %v1780 = vrot.slane %v1773, %v1779
        %v1781 = vcombine.low %v1769, %v1770
        %v1783 = vunpack.c.l.s4 1983009808
        %v1784 = vunpack.c.0.s8 %v1783
        %v1785 = vlaneseq
        %v1786 = vshrl.u32 %v1785, 7
        %v1787 = vsub.s32 %v1784, %v1786
        %v1788 = vrot.slane %v1781, %v1787
        %v1789 = vcombine.low %v1761, %v1768
        %v1791 = vunpack.c.l.s4 1983009808
        %v1792 = vunpack.c.0.s8 %v1791
        %v1793 = vlaneseq
        %v1794 = vshrl.u32 %v1793, 7
        %v1795 = vsub.s32 %v1792, %v1794
        %v1796 = vrot.slane %v1789, %v1795
        %v1797 = vcombine.low %v1771, %v1772
        %v1799 = vunpack.c.l.s4 1983009808
        %v1800 = vunpack.c.0.s8 %v1799
        %v1801 = vlaneseq
        %v1802 = vshrl.u32 %v1801, 7
        %v1803 = vsub.s32 %v1800, %v1802
        %v1804 = vrot.slane %v1797, %v1803
        %v1805 = vcombine.low %v1780, %v1788
        %v1806 = vcombine.high %v1780, %v1788
        %v1808 = vunpack.c.l.s4 1934713408
        %v1809 = vunpack.c.0.s8 %v1808
        %v1810 = vlaneseq
        %v1811 = vshrl.u32 %v1810, 7
        %v1812 = vsub.s32 %v1809, %v1811
        %v1813 = vrot.slane %v1805, %v1812
        %v1815 = vunpack.c.l.s4 1934713408
        %v1816 = vunpack.c.0.s8 %v1815
        %v1817 = vlaneseq
        %v1818 = vshrl.u32 %v1817, 7
        %v1819 = vsub.s32 %v1816, %v1818
        %v1820 = vrot.slane %v1806, %v1819
        %v1821 = vcombine.low %v1796, %v1804
        %v1822 = vcombine.high %v1796, %v1804
        %v1824 = vunpack.c.l.s4 1934713408
        %v1825 = vunpack.c.0.s8 %v1824
        %v1826 = vlaneseq
        %v1827 = vshrl.u32 %v1826, 7
        %v1828 = vsub.s32 %v1825, %v1827
        %v1829 = vrot.slane %v1821, %v1828
        %v1831 = vunpack.c.l.s4 1934713408
        %v1832 = vunpack.c.0.s8 %v1831
        %v1833 = vlaneseq
        %v1834 = vshrl.u32 %v1833, 7
        %v1835 = vsub.s32 %v1832, %v1834
        %v1836 = vrot.slane %v1822, %v1835
        %v1837 = vcombine.low %v1813, %v1829
        %v1838 = vcombine.high %v1813, %v1829
        %v1839 = vcombine.low %v1820, %v1836
        %v1840 = vcombine.high %v1820, %v1836
        %1842 = vrot.lane.b32.xlu0 %v1838, 8
        %v1843 = vpop.permute.xlu0 %1842
        %1846 = vrot.lane.b32.xlu0 %v1839, 16
        %v1847 = vpop.permute.xlu0 %1846
        %1850 = vrot.lane.b32.xlu0 %v1840, 24
        %v1851 = vpop.permute.xlu0 %1850
        %v1853 = vsel %vm1136, %v1837, %v1843
        %vm1854 = vcmask 130048
        %v1855 = vsel %vm1854, %v1853, %v1847
        %vm1856 = vcmask 195584
        %v1857 = vsel %vm1856, %v1855, %v1851
        %v1858 = vpack.c.bf16 %v1857, %v1857
        %v1859 = vld [vmem:[%s5] sm:$0xf]
        %v1860 = vld [vmem:[%s5 + $0x4] sm:$0xf]
        %v1861 = vld [vmem:[%s5 + $0x8] sm:$0xf]
        %v1862 = vld [vmem:[%s5 + $0xc] sm:$0xf]
        %v1863 = vld [vmem:[%s6] sm:$0x1]
        %v1865 = vlaneseq
        %v1866 = vshrl.u32 %v1865, 7
        %v1867 = vsub.s32 0, %v1866
        %v1868 = vrot.slane %v1863, %v1867
        %v1874 = vunpack.c.l.b16 %v1859
        %v1875 = vunpack.c.l.b16 %v1860
        %v1876 = vunpack.c.l.b16 %v1861
        %v1877 = vunpack.c.l.b16 %v1862
        %v1878 = vpack.c.b16 %v1875, %v1874
        %v1879 = vpack.c.b16 %v1877, %v1876
        %v1883 = vsel %vm887, %v1858, 0
        %1885 = vmatprep.subr.bf16.mxu0 0
        %1886 = vmatpush1.bf16.msra.mxu0 0
        %1887 = vmatprep.subr.bf16.mxu0 0
        %1888 = vmatpush1.bf16.msra.mxu0 0
        %1889 = vmatprep.subr.bf16.mxu0 0
        %1890 = vmatpush1.bf16.msra.mxu0 0
        %1891 = vmatprep.subr.bf16.mxu0 0
        %1892 = vmatpush1.bf16.msra.mxu0 0
        %1893 = vmatprep.subr.bf16.mxu0 0
        %1894 = vmatpush1.bf16.msra.mxu0 0
        %1895 = vmatprep.subr.bf16.mxu0 0
        %1896 = vmatpush1.bf16.msra.mxu0 0
        %1897 = vmatprep.subr.bf16.mxu0 0
        %1898 = vmatpush1.bf16.msra.mxu0 %v1879
        %1899 = vmatprep.subr.bf16.mxu0 0
        %1900 = vmatpush1.bf16.msra.mxu0 %v1878
        %1901 = vmatprep.subr.bf16.mxu0 0
        %1902 = vmatpush2.bf16.msra.mxu0 0
        %1903 = vmatprep.subr.bf16.mxu0 0
        %1904 = vmatpush2.bf16.msra.mxu0 0
        %1905 = vmatprep.subr.bf16.mxu0 0
        %1906 = vmatpush2.bf16.msra.mxu0 0
        %1907 = vmatprep.subr.bf16.mxu0 0
        %1908 = vmatpush2.bf16.msra.mxu0 0
        %1909 = vmatprep.subr.bf16.mxu0 0
        %1910 = vmatpush2.bf16.msra.mxu0 0
        %1911 = vmatprep.subr.bf16.mxu0 0
        %1912 = vmatpush2.bf16.msra.mxu0 0
        %1913 = vmatprep.subr.bf16.mxu0 0
        %1914 = vmatpush2.bf16.msra.mxu0 0
        %1915 = vmatprep.subr.bf16.mxu0 0
        %1916 = vmatpush2.bf16.msra.mxu0 0
        %1917 = vmatprep.mubr.bf16.mxu0 0
        %1918 = vmatmul.mubr.bf16.gmra.mxu0 %v1883
        %v1919 = vpop.f32.mrf.mxu0
        %v1920 = vadd.f32 %v1868, %v1919
        %v1921 = vpop.f32.mrf.mxu0
        %v1922 = vpop.f32.mrf.mxu0
        %v1923 = vpop.f32.mrf.mxu0
        %1924 = vdwg.mxu0
        %v1925 = vadd.f32 %v886, %v1920
        %v1926 = vld [vmem:[%s7] sm:$0x1]
        %v1927 = vld [vmem:[#allocation7] sm:$0x1]
        %v1928 = vsel %vm887, %v1925, 0.0
        %1929 = vadd.xlane.f32.xlu0 %v1928
        %v1930 = vpop.xlane.xlu0 %1929
        %v1931 = vmul.f32 %v1930, %v891
        %v1932 = vsub.f32 %v1925, %v1931
        %v1933 = vmul.f32 %v1932, %v1932
        %v1934 = vsel %vm887, %v1933, 0.0
        %1935 = vadd.xlane.f32.xlu0 %v1934
        %v1936 = vpop.xlane.xlu0 %1935
        %v1937 = vmul.f32 %v1936, %v891
        %v1938 = vadd.f32 %v1937, 1e-05
        %v1939 = vrsqrt.pop %v1938
        %v1940 = vmul.f32 %v1932, %v1939
        %v1942 = vlaneseq
        %v1943 = vshrl.u32 %v1942, 7
        %v1944 = vsub.s32 0, %v1943
        %v1945 = vrot.slane %v1926, %v1944
        %v1947 = vmul.f32 %v1940, %v1945
        %v1949 = vlaneseq
        %v1950 = vshrl.u32 %v1949, 7
        %v1951 = vsub.s32 0, %v1950
        %v1952 = vrot.slane %v1927, %v1951
        %v1954 = vadd.f32 %v1947, %v1952
        %v1955 = vpack.c.bf16 %v1954, %v1954
        %v1956 = vld [vmem:[%s9] sm:$0xf]
        %v1957 = vld [vmem:[%s9 + $0x4] sm:$0xf]
        %v1958 = vld [vmem:[%s9 + $0x8] sm:$0xf]
        %v1959 = vld [vmem:[%s9 + $0xc] sm:$0xf]
        %v1960 = vld [vmem:[#allocation10] sm:$0x1]
        %v1962 = vlaneseq
        %v1963 = vshrl.u32 %v1962, 7
        %v1964 = vsub.s32 0, %v1963
        %v1965 = vrot.slane %v1960, %v1964
        %v1971 = vunpack.c.l.b16 %v1956
        %v1972 = vunpack.c.l.b16 %v1957
        %v1973 = vunpack.c.l.b16 %v1958
        %v1974 = vunpack.c.l.b16 %v1959
        %v1975 = vpack.c.b16 %v1972, %v1971
        %v1976 = vpack.c.b16 %v1974, %v1973
        %v1980 = vsel %vm887, %v1955, 0
        %1982 = vmatprep.subr.bf16.mxu0 0
        %1983 = vmatpush1.bf16.msra.mxu0 0
        %1984 = vmatprep.subr.bf16.mxu0 0
        %1985 = vmatpush1.bf16.msra.mxu0 0
        %1986 = vmatprep.subr.bf16.mxu0 0
        %1987 = vmatpush1.bf16.msra.mxu0 0
        %1988 = vmatprep.subr.bf16.mxu0 0
        %1989 = vmatpush1.bf16.msra.mxu0 0
        %1990 = vmatprep.subr.bf16.mxu0 0
        %1991 = vmatpush1.bf16.msra.mxu0 0
        %1992 = vmatprep.subr.bf16.mxu0 0
        %1993 = vmatpush1.bf16.msra.mxu0 0
        %1994 = vmatprep.subr.bf16.mxu0 0
        %1995 = vmatpush1.bf16.msra.mxu0 %v1976
        %1996 = vmatprep.subr.bf16.mxu0 0
        %1997 = vmatpush1.bf16.msra.mxu0 %v1975
        %1998 = vmatprep.subr.bf16.mxu0 0
        %1999 = vmatpush2.bf16.msra.mxu0 0
        %2000 = vmatprep.subr.bf16.mxu0 0
        %2001 = vmatpush2.bf16.msra.mxu0 0
        %2002 = vmatprep.subr.bf16.mxu0 0
        %2003 = vmatpush2.bf16.msra.mxu0 0
        %2004 = vmatprep.subr.bf16.mxu0 0
        %2005 = vmatpush2.bf16.msra.mxu0 0
        %2006 = vmatprep.subr.bf16.mxu0 0
        %2007 = vmatpush2.bf16.msra.mxu0 0
        %2008 = vmatprep.subr.bf16.mxu0 0
        %2009 = vmatpush2.bf16.msra.mxu0 0
        %2010 = vmatprep.subr.bf16.mxu0 0
        %2011 = vmatpush2.bf16.msra.mxu0 0
        %2012 = vmatprep.subr.bf16.mxu0 0
        %2013 = vmatpush2.bf16.msra.mxu0 0
        %2014 = vmatprep.mubr.bf16.mxu0 0
        %2015 = vmatmul.mubr.bf16.gmra.mxu0 %v1980
        %v2016 = vpop.f32.mrf.mxu0
        %v2017 = vadd.f32 %v1965, %v2016
        %v2018 = vpop.f32.mrf.mxu0
        %v2019 = vpop.f32.mrf.mxu0
        %v2020 = vpop.f32.mrf.mxu0
        %2021 = vdwg.mxu0
        %v2022 = vmax.f32 %v2017, 0.0
        %v2023 = vpack.c.bf16 %v2022, %v2022
        %v2024 = vld [vmem:[%s11] sm:$0xf]
        %v2025 = vld [vmem:[%s11 + $0x4] sm:$0xf]
        %v2026 = vld [vmem:[%s11 + $0x8] sm:$0xf]
        %v2027 = vld [vmem:[%s11 + $0xc] sm:$0xf]
        %v2028 = vld [vmem:[%s11 + $0x10] sm:$0xf]
        %v2029 = vld [vmem:[%s11 + $0x14] sm:$0xf]
        %v2030 = vld [vmem:[%s11 + $0x18] sm:$0xf]
        %v2031 = vld [vmem:[%s11 + $0x1c] sm:$0xf]
        %v2032 = vld [vmem:[%s11 + $0x20] sm:$0xf]
        %v2033 = vld [vmem:[%s11 + $0x24] sm:$0xf]
        %v2034 = vld [vmem:[%s11 + $0x28] sm:$0xf]
        %v2035 = vld [vmem:[%s11 + $0x2c] sm:$0xf]
        %v2036 = vld [vmem:[%s11 + $0x30] sm:$0xf]
        %v2037 = vld [vmem:[%s11 + $0x34] sm:$0xf]
        %v2038 = vld [vmem:[%s11 + $0x38] sm:$0xf]
        %v2039 = vld [vmem:[%s11 + $0x3c] sm:$0xf]
        %v2040 = vld [vmem:[%s12] sm:$0x1]
        %v2042 = vlaneseq
        %v2043 = vshrl.u32 %v2042, 7
        %v2044 = vsub.s32 0, %v2043
        %v2045 = vrot.slane %v2040, %v2044
        %v2063 = vunpack.c.l.b16 %v2024
        %v2064 = vunpack.c.l.b16 %v2025
        %v2065 = vunpack.c.l.b16 %v2026
        %v2066 = vunpack.c.l.b16 %v2027
        %v2067 = vunpack.c.l.b16 %v2028
        %v2068 = vunpack.c.l.b16 %v2029
        %v2069 = vunpack.c.l.b16 %v2030
        %v2070 = vunpack.c.l.b16 %v2031
        %v2071 = vunpack.c.l.b16 %v2032
        %v2072 = vunpack.c.l.b16 %v2033
        %v2073 = vunpack.c.l.b16 %v2034
        %v2074 = vunpack.c.l.b16 %v2035
        %v2075 = vunpack.c.l.b16 %v2036
        %v2076 = vunpack.c.l.b16 %v2037
        %v2077 = vunpack.c.l.b16 %v2038
        %v2078 = vunpack.c.l.b16 %v2039
        %v2079 = vpack.c.b16 %v2064, %v2063
        %v2080 = vpack.c.b16 %v2066, %v2065
        %v2081 = vpack.c.b16 %v2068, %v2067
        %v2082 = vpack.c.b16 %v2070, %v2069
        %v2083 = vpack.c.b16 %v2072, %v2071
        %v2084 = vpack.c.b16 %v2074, %v2073
        %v2085 = vpack.c.b16 %v2076, %v2075
        %v2086 = vpack.c.b16 %v2078, %v2077
        %2095 = vmatprep.subr.bf16.mxu0 0
        %2096 = vmatpush1.bf16.msra.mxu0 %v2086
        %2097 = vmatprep.subr.bf16.mxu0 0
        %2098 = vmatpush1.bf16.msra.mxu0 %v2085
        %2099 = vmatprep.subr.bf16.mxu0 0
        %2100 = vmatpush1.bf16.msra.mxu0 %v2084
        %2101 = vmatprep.subr.bf16.mxu0 0
        %2102 = vmatpush1.bf16.msra.mxu0 %v2083
        %2103 = vmatprep.subr.bf16.mxu0 0
        %2104 = vmatpush1.bf16.msra.mxu0 %v2082
        %2105 = vmatprep.subr.bf16.mxu0 0
        %2106 = vmatpush1.bf16.msra.mxu0 %v2081
        %2107 = vmatprep.subr.bf16.mxu0 0
        %2108 = vmatpush1.bf16.msra.mxu0 %v2080
        %2109 = vmatprep.subr.bf16.mxu0 0
        %2110 = vmatpush1.bf16.msra.mxu0 %v2079
        %2111 = vmatprep.subr.bf16.mxu0 0
        %2112 = vmatpush2.bf16.msra.mxu0 0
        %2113 = vmatprep.subr.bf16.mxu0 0
        %2114 = vmatpush2.bf16.msra.mxu0 0
        %2115 = vmatprep.subr.bf16.mxu0 0
        %2116 = vmatpush2.bf16.msra.mxu0 0
        %2117 = vmatprep.subr.bf16.mxu0 0
        %2118 = vmatpush2.bf16.msra.mxu0 0
        %2119 = vmatprep.subr.bf16.mxu0 0
        %2120 = vmatpush2.bf16.msra.mxu0 0
        %2121 = vmatprep.subr.bf16.mxu0 0
        %2122 = vmatpush2.bf16.msra.mxu0 0
        %2123 = vmatprep.subr.bf16.mxu0 0
        %2124 = vmatpush2.bf16.msra.mxu0 0
        %2125 = vmatprep.subr.bf16.mxu0 0
        %2126 = vmatpush2.bf16.msra.mxu0 0
        %2127 = vmatprep.mubr.bf16.mxu0 0
        %2128 = vmatmul.mubr.bf16.gmra.mxu0 %v2023
        %v2129 = vpop.f32.mrf.mxu0
        %v2130 = vadd.f32 %v2045, %v2129
        %v2131 = vpop.f32.mrf.mxu0
        %v2132 = vpop.f32.mrf.mxu0
        %v2133 = vpop.f32.mrf.mxu0
        %2134 = vdwg.mxu0
        %v2135 = vadd.f32 %v1925, %v2130
        %2136 = vst.msk [vmem:[%s471] sm:$0xff] %vm887, %v2135
        %s2137 = sand.u32 %s329, 1
        %s2138 = scalar_lea.sflag [#allocation9], %s2137
        %s2139 = sand.u32 %s329, 1
        %s2140 = smul.addr %s2139, 8
        %s2141 = scalar_lea.vmem [#allocation12], %s2140
        // Predicated region
        $region85: #{tpu_custom_call.1} parent=71 // pred_check
          %p2142 = pneg %p339
        $region86: #{tpu_custom_call.1} parent=71 // pred_check_branch
          %2144 = sbr.rel (%p2142) target = $region88
        $region87: #{tpu_custom_call.1} parent=71 // pred_region
          %s2146 = ssub.s32 128, 128
          %2147 = vsyncadd %s2138, %s2146
          %s2148 = sadd.s32 %s34, %s33
          %s2149 = smul.addr %s2148, 128
          %s2150 = scalar_lea.hbm %s13, %s2149
          %s2152 = sshll.u32 %s2141, 4
          %s2153 = int_to_ptr.vmem [resolvable:$true] %s2152
          %2155 = dma.vmem_to_hbm [thread:$0]  %s2153, 128, %s2150, %s2138
        $region88: #{tpu_custom_call.1} parent=71 // pred_fallthru
          _
      $region72: #{tpu_custom_call.1} parent=5 // pred_fallthru
        _
      %p2156 = scmp.le.s32.totalorder 2, %s24
      // Predicated region
      $region89: #{tpu_custom_call.1} parent=5 // pred_check
        %p2157 = pneg %p2156
      $region90: #{tpu_custom_call.1} parent=5 // pred_check_branch
        %2159 = sbr.rel (%p2157) target = $region92
      $region91: #{tpu_custom_call.1} parent=5 // pred_region
        %s2160 = ssub.s32 %s24, 2
        // Predicated region
        $region93: #{tpu_custom_call.1} parent=91 // pred_check
          %p2161 = pneg %p345
        $region94: #{tpu_custom_call.1} parent=91 // pred_check_branch
          %2163 = sbr.rel (%p2161) target = $region96
        $region95: #{tpu_custom_call.1} parent=91 // pred_region
          %s2164 = sand.u32 %s330, 1
          %s2165 = scalar_lea.sflag [#allocation9], %s2164
          %s2166 = sand.u32 %s330, 1
          %s2167 = smul.addr %s2166, 8
          %s2168 = scalar_lea.vmem [#allocation12], %s2167
          %2169 = dma.done %s2165, 128
        $region96: #{tpu_custom_call.1} parent=91 // pred_fallthru
          _
      $region92: #{tpu_custom_call.1} parent=5 // pred_fallthru
        _
    $region6: #{tpu_custom_call.1} parent=1 // loop_footer
      %s28 = sadd.s32 1, %s24
    $region7: #{tpu_custom_call.1} parent=1 // loop_footer_branch
      %23 = sbr.rel target = $region3
    $region8: #{tpu_custom_call.1} parent=1 // loop_exit
      _
    %2170 = vsyncpa [#allocation8], 1
    %s2171 = scalar_lea.sflag [#allocation8], 1
    %2172 = vsyncpa %s2171, 1
    %2173 = vsyncpa [#allocation11], 1
    %2174 = vsyncpa [#allocation9], 1
    %s2175 = scalar_lea.sflag [#allocation9], 1
    %2176 = vsyncpa %s2175, 1

</llo_original>
